<compile_context>
chip_gen: v6e
topology: v6e:2x2x1
jax: 0.10.0
libtpu: 0.0.40
codegen_flags: <defaults>
</compile_context>

<pallas_src>
import jax
import jax.numpy as jnp
from jax.experimental import pallas as pl
from jax.experimental.pallas import tpu as pltpu

# ----------------------------- model config ---------------------------------
VOCAB_SIZE = 100
TYPE_VOCAB_SIZE = 2
MAX_POS = 16
HIDDEN = 32          # EMOTION_CONFIG.hidden_size (small synthetic)
NUM_HEADS = 2
HEAD_DIM = HIDDEN // NUM_HEADS
NUM_LAYERS = 2
FFN_DIM = 64
N_CLASSES = 7        # config.n_classes (synthetic)
OUT_PAD = 128        # lane-dense padded classifier width
BATCH = 2
SEQ = 8
TOKENS = BATCH * SEQ
LN_EPS = 1e-12

# row offsets inside the fused (word | position | token-type) embedding table
POS_OFF = VOCAB_SIZE
TYPE_OFF = VOCAB_SIZE + MAX_POS
EMB_ROWS = VOCAB_SIZE + MAX_POS + TYPE_VOCAB_SIZE

# ------------- bias / LayerNorm slab row layout (rows padded to 128) --------
ROW_EMB_LN_G = 0
ROW_EMB_LN_B = 1
_ROWS_PER_LAYER = 3 * NUM_HEADS + 7


def _layer_base(l):
    return 2 + l * _ROWS_PER_LAYER


def row_qkv_b(l, qkv, h):       # q/k/v projection bias of head h (width HEAD_DIM)
    return _layer_base(l) + qkv * NUM_HEADS + h


def row_attn_out_b(l): return _layer_base(l) + 3 * NUM_HEADS + 0
def row_ln1_g(l):      return _layer_base(l) + 3 * NUM_HEADS + 1
def row_ln1_b(l):      return _layer_base(l) + 3 * NUM_HEADS + 2
def row_ffn_b1(l):     return _layer_base(l) + 3 * NUM_HEADS + 3
def row_ffn_b2(l):     return _layer_base(l) + 3 * NUM_HEADS + 4
def row_ln2_g(l):      return _layer_base(l) + 3 * NUM_HEADS + 5
def row_ln2_b(l):      return _layer_base(l) + 3 * NUM_HEADS + 6


ROW_POOL_B = 2 + NUM_LAYERS * _ROWS_PER_LAYER
ROW_OUT_B = ROW_POOL_B + 1
N_BIAS_ROWS = ROW_OUT_B + 1


# ------------------------------ in-kernel math -------------------------------
def _gelu(x):
    # tanh approximation of GELU (exact erf GELU differs by <1e-3)
    c = jnp.float32(0.7978845608028654)  # sqrt(2/pi)
    return 0.5 * x * (1.0 + jnp.tanh(c * (x + 0.044715 * x * x * x)))


def _layernorm(x, g, b):
    mu = jnp.mean(x, axis=-1, keepdims=True)
    var = jnp.mean((x - mu) * (x - mu), axis=-1, keepdims=True)
    return (x - mu) * jax.lax.rsqrt(var + LN_EPS) * g + b


# ------------------------------ fused kernel ---------------------------------
def fused_bert_kernel(ids_ref, tt_ref, mask_ref, emb_ref, bias_ref,
                      wqkv_ref, wo_ref, w1_ref, w2_ref, headw_ref,
                      logits_ref, x_scr):
    B, S, T = BATCH, SEQ, TOKENS
    H, nH, dh, F = HIDDEN, NUM_HEADS, HEAD_DIM, FFN_DIM

    def brow(i, w):                      # (1, w) f32 row of the bias/LN slab
        return bias_ref[i:i + 1, :w]

    # ---- embedding gather (word + position + token-type), fully in-kernel ----
    for b in range(B):
        for s in range(S):
            wid = ids_ref[b, s]                       # SMEM scalar reads
            tid = tt_ref[b, s]
            row = (emb_ref[pl.ds(wid, 1), :]
                   + emb_ref[POS_OFF + s:POS_OFF + s + 1, :]
                   + emb_ref[pl.ds(TYPE_OFF + tid, 1), :])
            x_scr[b * S + s:b * S + s + 1, :] = row

    x = _layernorm(x_scr[...], brow(ROW_EMB_LN_G, H), brow(ROW_EMB_LN_B, H))   # (T, H) f32

    # additive attention-mask bias built in-kernel: (B, 1, S)
    maskf = mask_ref[...].astype(jnp.float32)
    attn_bias = ((1.0 - maskf) * jnp.float32(-1e9)).reshape(B, 1, S)

    for l in range(NUM_LAYERS):                        # static unroll (2 layers)
        # ---- multi-head self-attention (head-major weights, no lane slicing) ----
        x_bf = x.astype(jnp.bfloat16)
        attn = jnp.zeros((T, H), jnp.float32)
        for h in range(nH):                            # static unroll over heads
            # 1/sqrt(head_dim) is folded into the Q weights (and bias) at init.
            q = jnp.dot(x_bf, wqkv_ref[l, 0, h],
                        preferred_element_type=jnp.float32) + brow(row_qkv_b(l, 0, h), dh)
            k = jnp.dot(x_bf, wqkv_ref[l, 1, h],
                        preferred_element_type=jnp.float32) + brow(row_qkv_b(l, 1, h), dh)
            v = jnp.dot(x_bf, wqkv_ref[l, 2, h],
                        preferred_element_type=jnp.float32) + brow(row_qkv_b(l, 2, h), dh)
            qb = q.reshape(B, S, dh).astype(jnp.bfloat16)   # tile-aligned leading split
            kb = k.reshape(B, S, dh).astype(jnp.bfloat16)
            vb = v.reshape(B, S, dh).astype(jnp.bfloat16)

            sc = jnp.einsum("bqd,bkd->bqk", qb, kb,
                            preferred_element_type=jnp.float32) + attn_bias   # (B,S,S)
            m = jnp.max(sc, axis=-1, keepdims=True)
            p = jnp.exp(sc - m)
            p = p * pl.reciprocal(jnp.sum(p, axis=-1, keepdims=True), approx=True)
            ctx = jnp.einsum("bqk,bkd->bqd", p.astype(jnp.bfloat16), vb,
                             preferred_element_type=jnp.float32)              # (B,S,dh)

            # distribute the output projection over heads (head-major wo)
            attn = attn + jnp.dot(ctx.reshape(T, dh).astype(jnp.bfloat16),
                                  wo_ref[l, h],
                                  preferred_element_type=jnp.float32)

        attn = attn + brow(row_attn_out_b(l), H)
        x = _layernorm(attn + x, brow(row_ln1_g(l), H), brow(row_ln1_b(l), H))

        # ---- feed-forward ----
        h1 = _gelu(jnp.dot(x.astype(jnp.bfloat16), w1_ref[l],
                           preferred_element_type=jnp.float32) + brow(row_ffn_b1(l), F))
        h2 = jnp.dot(h1.astype(jnp.bfloat16), w2_ref[l],
                     preferred_element_type=jnp.float32) + brow(row_ffn_b2(l), H)
        x = _layernorm(h2 + x, brow(row_ln2_g(l), H), brow(row_ln2_b(l), H))

    # ---- BERT pooler on the [CLS] token, then classifier head ----
    cls = x.reshape(B, S, H)[:, 0, :]                                    # (B, H)
    pooled_full = jnp.dot(cls.astype(jnp.bfloat16), headw_ref[0],
                          preferred_element_type=jnp.float32)            # (B, OUT_PAD)
    pooled = jnp.tanh(pooled_full[:, :H] + brow(ROW_POOL_B, H))          # (B, H)
    logits = jnp.dot(pooled.astype(jnp.bfloat16), headw_ref[1],
                     preferred_element_type=jnp.float32) + brow(ROW_OUT_B, OUT_PAD)
    logits_ref[...] = logits.astype(logits_ref.dtype)


# --------------------------- parameter construction --------------------------
def init_params(key):
    H, F, L = HIDDEN, FFN_DIM, NUM_LAYERS
    nH, dh = NUM_HEADS, HEAD_DIM

    def dense_w(k, fan_in, fan_out):
        return jax.random.normal(k, (fan_in, fan_out), jnp.float32) * 0.02

    def to_head_major(w):                 # (H, nH*dh) -> (nH, H, dh)
        return w.reshape(H, nH, dh).transpose(1, 0, 2)

    def pad_row(v):                       # (w,) -> (128,)
        return jnp.pad(v, (0, OUT_PAD - v.shape[0]))

    keys = jax.random.split(key, 5 + L)
    inv_sqrt_dh = 1.0 / (dh ** 0.5)

    # fused (word | position | token-type) embedding table, f32 (118, H)
    word_emb = dense_w(keys[0], VOCAB_SIZE, H)
    pos_emb = dense_w(keys[1], MAX_POS, H)
    type_emb = dense_w(keys[2], TYPE_VOCAB_SIZE, H)
    emb_tables = jnp.concatenate([word_emb, pos_emb, type_emb], axis=0)

    bias_rows = [pad_row(jnp.ones((H,), jnp.float32)),       # embedding LN gamma
                 pad_row(jnp.zeros((H,), jnp.float32))]      # embedding LN beta

    wqkv, wo, w1, w2 = [], [], [], []
    for l in range(L):
        lk = jax.random.split(keys[3 + l], 6)
        wq = dense_w(lk[0], H, H) * inv_sqrt_dh   # attention scale folded into Q
        wk = dense_w(lk[1], H, H)
        wv = dense_w(lk[2], H, H)
        wqkv.append(jnp.stack([to_head_major(wq), to_head_major(wk),
                               to_head_major(wv)]))            # (3, nH, H, dh)
        wo.append(dense_w(lk[3], H, H).reshape(nH, dh, H))     # head-major rows
        w1.append(dense_w(lk[4], H, F))
        w2.append(dense_w(lk[5], F, H))

        # per-head q/k/v biases (zero-init; Q bias would also carry the folded scale)
        for _ in range(3 * nH):
            bias_rows.append(pad_row(jnp.zeros((dh,), jnp.float32)))
        bias_rows += [pad_row(jnp.zeros((H,), jnp.float32)),   # attn output bias
                      pad_row(jnp.ones((H,), jnp.float32)),    # LN1 gamma
                      pad_row(jnp.zeros((H,), jnp.float32)),   # LN1 beta
                      pad_row(jnp.zeros((F,), jnp.float32)),   # FFN b1
                      pad_row(jnp.zeros((H,), jnp.float32)),   # FFN b2
                      pad_row(jnp.ones((H,), jnp.float32)),    # LN2 gamma
                      pad_row(jnp.zeros((H,), jnp.float32))]   # LN2 beta

    pool_w = dense_w(keys[3 + L], H, H)
    out_w = dense_w(keys[4 + L], H, N_CLASSES)                 # one_layer=True head
    bias_rows.append(pad_row(jnp.zeros((H,), jnp.float32)))        # pooler bias
    bias_rows.append(pad_row(jnp.zeros((OUT_PAD,), jnp.float32)))  # classifier bias
    assert len(bias_rows) == N_BIAS_ROWS

    head_w = jnp.stack([jnp.pad(pool_w, ((0, 0), (0, OUT_PAD - H))),
                        jnp.pad(out_w, ((0, 0), (0, OUT_PAD - N_CLASSES)))])

    return {
        "emb_tables": emb_tables,                              # f32 (118, H)
        "bias_slab": jnp.stack(bias_rows),                     # f32 (30, 128)
        "wqkv": jnp.stack(wqkv).astype(jnp.bfloat16),          # (L, 3, nH, H, dh)
        "wo": jnp.stack(wo).astype(jnp.bfloat16),              # (L, nH, dh, H)
        "w1": jnp.stack(w1).astype(jnp.bfloat16),              # (L, H, F)
        "w2": jnp.stack(w2).astype(jnp.bfloat16),              # (L, F, H)
        "head_w": head_w.astype(jnp.bfloat16),                 # (2, H, OUT_PAD)
    }


# ------------------------------ forward pass ---------------------------------
@jax.jit
def emotion_model_forward(params, input_ids, token_type_ids, attention_mask):
    smem = pl.BlockSpec(memory_space=pltpu.MemorySpace.SMEM)
    vmem = pl.BlockSpec(memory_space=pltpu.MemorySpace.VMEM)

    flops = (2 * TOKENS * HIDDEN * (3 * HIDDEN + HIDDEN + 2 * FFN_DIM) * NUM_LAYERS
             + 4 * NUM_HEADS * BATCH * SEQ * SEQ * HEAD_DIM * NUM_LAYERS
             + 2 * BATCH * HIDDEN * (HIDDEN + OUT_PAD))
    transcendentals = (NUM_LAYERS * (NUM_HEADS * BATCH * SEQ * SEQ + TOKENS * FFN_DIM)
                       + BATCH * HIDDEN)
    cost = pl.CostEstimate(flops=flops, transcendentals=transcendentals,
                           bytes_accessed=96 * 1024)

    logits_pad = pl.pallas_call(
        fused_bert_kernel,
        out_shape=jax.ShapeDtypeStruct((BATCH, OUT_PAD), jnp.float32),
        in_specs=[smem, smem] + [vmem] * 8,
        out_specs=vmem,
        scratch_shapes=[pltpu.VMEM((TOKENS, HIDDEN), jnp.float32)],
        cost_estimate=cost,
    )(input_ids, token_type_ids, attention_mask,
      params["emb_tables"], params["bias_slab"],
      params["wqkv"], params["wo"], params["w1"], params["w2"], params["head_w"])

    return logits_pad[:, :N_CLASSES]


# ----------------------------------- main ------------------------------------
if __name__ == "__main__":
    key = jax.random.PRNGKey(0)
    k_param, k_ids, k_tt = jax.random.split(key, 3)

    params = init_params(k_param)

    utterance_input_ids = jax.random.randint(
        k_ids, (BATCH, SEQ), 0, VOCAB_SIZE, dtype=jnp.int32)
    utterance_token_type_ids = jax.random.randint(
        k_tt, (BATCH, SEQ), 0, TYPE_VOCAB_SIZE, dtype=jnp.int32)
    utterance_mask = jnp.ones((BATCH, SEQ), jnp.int32).at[:, -2:].set(0)

    logits = emotion_model_forward(
        params, utterance_input_ids, utterance_token_type_ids, utterance_mask)
    logits = jax.block_until_ready(logits)

    assert logits.shape == (BATCH, N_CLASSES)
    assert bool(jnp.all(jnp.isfinite(logits)))
    print("KERNEL_OK")
</pallas_src>

<mosaic_0001>
module attributes {stable_mosaic.version = 11 : i64} {
  func.func @fused_bert_kernel(%arg0: memref<2x8xi32, #tpu.memory_space<smem>>, %arg1: memref<2x8xi32, #tpu.memory_space<smem>>, %arg2: memref<2x8xi32, #tpu.memory_space<vmem>>, %arg3: memref<118x32xf32, #tpu.memory_space<vmem>>, %arg4: memref<30x128xf32, #tpu.memory_space<vmem>>, %arg5: memref<2x3x2x32x16xbf16, #tpu.memory_space<vmem>>, %arg6: memref<2x2x16x32xbf16, #tpu.memory_space<vmem>>, %arg7: memref<2x32x64xbf16, #tpu.memory_space<vmem>>, %arg8: memref<2x64x32xbf16, #tpu.memory_space<vmem>>, %arg9: memref<2x32x128xbf16, #tpu.memory_space<vmem>>, %arg10: memref<2x128xf32, #tpu.memory_space<vmem>>, %arg11: memref<16x32xf32, #tpu.memory_space<vmem>>) attributes {dimension_semantics = [], scalar_prefetch = 0 : i64, scratch_operands = 1 : i64, tpu.core_type = #tpu.core_type<tc>} {
    %c0 = arith.constant 0 : index
    %c0_0 = arith.constant 0 : index
    %0 = memref.load %arg0[%c0, %c0_0] : memref<2x8xi32, #tpu.memory_space<smem>>
    %c0_1 = arith.constant 0 : index
    %c0_2 = arith.constant 0 : index
    %1 = memref.load %arg1[%c0_1, %c0_2] : memref<2x8xi32, #tpu.memory_space<smem>>
    %2 = arith.index_cast %0 : i32 to index
    %c0_3 = arith.constant 0 : index
    %3 = vector.load %arg3[%2, %c0_3] : memref<118x32xf32, #tpu.memory_space<vmem>>, vector<1x32xf32>
    %c100 = arith.constant 100 : index
    %c0_4 = arith.constant 0 : index
    %4 = vector.load %arg3[%c100, %c0_4] : memref<118x32xf32, #tpu.memory_space<vmem>>, vector<1x32xf32>
    %5 = arith.addf %3, %4 : vector<1x32xf32>
    %c116_i32 = arith.constant 116 : i32
    %6 = arith.addi %c116_i32, %1 : i32
    %7 = arith.index_cast %6 : i32 to index
    %c0_5 = arith.constant 0 : index
    %8 = vector.load %arg3[%7, %c0_5] : memref<118x32xf32, #tpu.memory_space<vmem>>, vector<1x32xf32>
    %9 = arith.addf %5, %8 : vector<1x32xf32>
    %c0_6 = arith.constant 0 : index
    %c0_7 = arith.constant 0 : index
    %10 = vector.load %arg11[%c0_6, %c0_7] : memref<16x32xf32, #tpu.memory_space<vmem>>, vector<1x32xf32>
    tpu.vector_store %arg11[%c0_6, %c0_7], %9 {strides = array<i32>} : memref<16x32xf32, #tpu.memory_space<vmem>>, vector<1x32xf32>,
    %c0_8 = arith.constant 0 : index
    %c1 = arith.constant 1 : index
    %11 = memref.load %arg0[%c0_8, %c1] : memref<2x8xi32, #tpu.memory_space<smem>>
    %c0_9 = arith.constant 0 : index
    %c1_10 = arith.constant 1 : index
    %12 = memref.load %arg1[%c0_9, %c1_10] : memref<2x8xi32, #tpu.memory_space<smem>>
    %13 = arith.index_cast %11 : i32 to index
    %c0_11 = arith.constant 0 : index
    %14 = vector.load %arg3[%13, %c0_11] : memref<118x32xf32, #tpu.memory_space<vmem>>, vector<1x32xf32>
    %c101 = arith.constant 101 : index
    %c0_12 = arith.constant 0 : index
    %15 = vector.load %arg3[%c101, %c0_12] : memref<118x32xf32, #tpu.memory_space<vmem>>, vector<1x32xf32>
    %16 = arith.addf %14, %15 : vector<1x32xf32>
    %c116_i32_13 = arith.constant 116 : i32
    %17 = arith.addi %c116_i32_13, %12 : i32
    %18 = arith.index_cast %17 : i32 to index
    %c0_14 = arith.constant 0 : index
    %19 = vector.load %arg3[%18, %c0_14] : memref<118x32xf32, #tpu.memory_space<vmem>>, vector<1x32xf32>
    %20 = arith.addf %16, %19 : vector<1x32xf32>
    %c1_15 = arith.constant 1 : index
    %c0_16 = arith.constant 0 : index
    %21 = vector.load %arg11[%c1_15, %c0_16] : memref<16x32xf32, #tpu.memory_space<vmem>>, vector<1x32xf32>
    tpu.vector_store %arg11[%c1_15, %c0_16], %20 {strides = array<i32>} : memref<16x32xf32, #tpu.memory_space<vmem>>, vector<1x32xf32>,
    %c0_17 = arith.constant 0 : index
    %c2 = arith.constant 2 : index
    %22 = memref.load %arg0[%c0_17, %c2] : memref<2x8xi32, #tpu.memory_space<smem>>
    %c0_18 = arith.constant 0 : index
    %c2_19 = arith.constant 2 : index
    %23 = memref.load %arg1[%c0_18, %c2_19] : memref<2x8xi32, #tpu.memory_space<smem>>
    %24 = arith.index_cast %22 : i32 to index
    %c0_20 = arith.constant 0 : index
    %25 = vector.load %arg3[%24, %c0_20] : memref<118x32xf32, #tpu.memory_space<vmem>>, vector<1x32xf32>
    %c102 = arith.constant 102 : index
    %c0_21 = arith.constant 0 : index
    %26 = vector.load %arg3[%c102, %c0_21] : memref<118x32xf32, #tpu.memory_space<vmem>>, vector<1x32xf32>
    %27 = arith.addf %25, %26 : vector<1x32xf32>
    %c116_i32_22 = arith.constant 116 : i32
    %28 = arith.addi %c116_i32_22, %23 : i32
    %29 = arith.index_cast %28 : i32 to index
    %c0_23 = arith.constant 0 : index
    %30 = vector.load %arg3[%29, %c0_23] : memref<118x32xf32, #tpu.memory_space<vmem>>, vector<1x32xf32>
    %31 = arith.addf %27, %30 : vector<1x32xf32>
    %c2_24 = arith.constant 2 : index
    %c0_25 = arith.constant 0 : index
    %32 = vector.load %arg11[%c2_24, %c0_25] : memref<16x32xf32, #tpu.memory_space<vmem>>, vector<1x32xf32>
    tpu.vector_store %arg11[%c2_24, %c0_25], %31 {strides = array<i32>} : memref<16x32xf32, #tpu.memory_space<vmem>>, vector<1x32xf32>,
    %c0_26 = arith.constant 0 : index
    %c3 = arith.constant 3 : index
    %33 = memref.load %arg0[%c0_26, %c3] : memref<2x8xi32, #tpu.memory_space<smem>>
    %c0_27 = arith.constant 0 : index
    %c3_28 = arith.constant 3 : index
    %34 = memref.load %arg1[%c0_27, %c3_28] : memref<2x8xi32, #tpu.memory_space<smem>>
    %35 = arith.index_cast %33 : i32 to index
    %c0_29 = arith.constant 0 : index
    %36 = vector.load %arg3[%35, %c0_29] : memref<118x32xf32, #tpu.memory_space<vmem>>, vector<1x32xf32>
    %c103 = arith.constant 103 : index
    %c0_30 = arith.constant 0 : index
    %37 = vector.load %arg3[%c103, %c0_30] : memref<118x32xf32, #tpu.memory_space<vmem>>, vector<1x32xf32>
    %38 = arith.addf %36, %37 : vector<1x32xf32>
    %c116_i32_31 = arith.constant 116 : i32
    %39 = arith.addi %c116_i32_31, %34 : i32
    %40 = arith.index_cast %39 : i32 to index
    %c0_32 = arith.constant 0 : index
    %41 = vector.load %arg3[%40, %c0_32] : memref<118x32xf32, #tpu.memory_space<vmem>>, vector<1x32xf32>
    %42 = arith.addf %38, %41 : vector<1x32xf32>
    %c3_33 = arith.constant 3 : index
    %c0_34 = arith.constant 0 : index
    %43 = vector.load %arg11[%c3_33, %c0_34] : memref<16x32xf32, #tpu.memory_space<vmem>>, vector<1x32xf32>
    tpu.vector_store %arg11[%c3_33, %c0_34], %42 {strides = array<i32>} : memref<16x32xf32, #tpu.memory_space<vmem>>, vector<1x32xf32>,
    %c0_35 = arith.constant 0 : index
    %c4 = arith.constant 4 : index
    %44 = memref.load %arg0[%c0_35, %c4] : memref<2x8xi32, #tpu.memory_space<smem>>
    %c0_36 = arith.constant 0 : index
    %c4_37 = arith.constant 4 : index
    %45 = memref.load %arg1[%c0_36, %c4_37] : memref<2x8xi32, #tpu.memory_space<smem>>
    %46 = arith.index_cast %44 : i32 to index
    %c0_38 = arith.constant 0 : index
    %47 = vector.load %arg3[%46, %c0_38] : memref<118x32xf32, #tpu.memory_space<vmem>>, vector<1x32xf32>
    %c104 = arith.constant 104 : index
    %c0_39 = arith.constant 0 : index
    %48 = vector.load %arg3[%c104, %c0_39] : memref<118x32xf32, #tpu.memory_space<vmem>>, vector<1x32xf32>
    %49 = arith.addf %47, %48 : vector<1x32xf32>
    %c116_i32_40 = arith.constant 116 : i32
    %50 = arith.addi %c116_i32_40, %45 : i32
    %51 = arith.index_cast %50 : i32 to index
    %c0_41 = arith.constant 0 : index
    %52 = vector.load %arg3[%51, %c0_41] : memref<118x32xf32, #tpu.memory_space<vmem>>, vector<1x32xf32>
    %53 = arith.addf %49, %52 : vector<1x32xf32>
    %c4_42 = arith.constant 4 : index
    %c0_43 = arith.constant 0 : index
    %54 = vector.load %arg11[%c4_42, %c0_43] : memref<16x32xf32, #tpu.memory_space<vmem>>, vector<1x32xf32>
    tpu.vector_store %arg11[%c4_42, %c0_43], %53 {strides = array<i32>} : memref<16x32xf32, #tpu.memory_space<vmem>>, vector<1x32xf32>,
    %c0_44 = arith.constant 0 : index
    %c5 = arith.constant 5 : index
    %55 = memref.load %arg0[%c0_44, %c5] : memref<2x8xi32, #tpu.memory_space<smem>>
    %c0_45 = arith.constant 0 : index
    %c5_46 = arith.constant 5 : index
    %56 = memref.load %arg1[%c0_45, %c5_46] : memref<2x8xi32, #tpu.memory_space<smem>>
    %57 = arith.index_cast %55 : i32 to index
    %c0_47 = arith.constant 0 : index
    %58 = vector.load %arg3[%57, %c0_47] : memref<118x32xf32, #tpu.memory_space<vmem>>, vector<1x32xf32>
    %c105 = arith.constant 105 : index
    %c0_48 = arith.constant 0 : index
    %59 = vector.load %arg3[%c105, %c0_48] : memref<118x32xf32, #tpu.memory_space<vmem>>, vector<1x32xf32>
    %60 = arith.addf %58, %59 : vector<1x32xf32>
    %c116_i32_49 = arith.constant 116 : i32
    %61 = arith.addi %c116_i32_49, %56 : i32
    %62 = arith.index_cast %61 : i32 to index
    %c0_50 = arith.constant 0 : index
    %63 = vector.load %arg3[%62, %c0_50] : memref<118x32xf32, #tpu.memory_space<vmem>>, vector<1x32xf32>
    %64 = arith.addf %60, %63 : vector<1x32xf32>
    %c5_51 = arith.constant 5 : index
    %c0_52 = arith.constant 0 : index
    %65 = vector.load %arg11[%c5_51, %c0_52] : memref<16x32xf32, #tpu.memory_space<vmem>>, vector<1x32xf32>
    tpu.vector_store %arg11[%c5_51, %c0_52], %64 {strides = array<i32>} : memref<16x32xf32, #tpu.memory_space<vmem>>, vector<1x32xf32>,
    %c0_53 = arith.constant 0 : index
    %c6 = arith.constant 6 : index
    %66 = memref.load %arg0[%c0_53, %c6] : memref<2x8xi32, #tpu.memory_space<smem>>
    %c0_54 = arith.constant 0 : index
    %c6_55 = arith.constant 6 : index
    %67 = memref.load %arg1[%c0_54, %c6_55] : memref<2x8xi32, #tpu.memory_space<smem>>
    %68 = arith.index_cast %66 : i32 to index
    %c0_56 = arith.constant 0 : index
    %69 = vector.load %arg3[%68, %c0_56] : memref<118x32xf32, #tpu.memory_space<vmem>>, vector<1x32xf32>
    %c106 = arith.constant 106 : index
    %c0_57 = arith.constant 0 : index
    %70 = vector.load %arg3[%c106, %c0_57] : memref<118x32xf32, #tpu.memory_space<vmem>>, vector<1x32xf32>
    %71 = arith.addf %69, %70 : vector<1x32xf32>
    %c116_i32_58 = arith.constant 116 : i32
    %72 = arith.addi %c116_i32_58, %67 : i32
    %73 = arith.index_cast %72 : i32 to index
    %c0_59 = arith.constant 0 : index
    %74 = vector.load %arg3[%73, %c0_59] : memref<118x32xf32, #tpu.memory_space<vmem>>, vector<1x32xf32>
    %75 = arith.addf %71, %74 : vector<1x32xf32>
    %c6_60 = arith.constant 6 : index
    %c0_61 = arith.constant 0 : index
    %76 = vector.load %arg11[%c6_60, %c0_61] : memref<16x32xf32, #tpu.memory_space<vmem>>, vector<1x32xf32>
    tpu.vector_store %arg11[%c6_60, %c0_61], %75 {strides = array<i32>} : memref<16x32xf32, #tpu.memory_space<vmem>>, vector<1x32xf32>,
    %c0_62 = arith.constant 0 : index
    %c7 = arith.constant 7 : index
    %77 = memref.load %arg0[%c0_62, %c7] : memref<2x8xi32, #tpu.memory_space<smem>>
    %c0_63 = arith.constant 0 : index
    %c7_64 = arith.constant 7 : index
    %78 = memref.load %arg1[%c0_63, %c7_64] : memref<2x8xi32, #tpu.memory_space<smem>>
    %79 = arith.index_cast %77 : i32 to index
    %c0_65 = arith.constant 0 : index
    %80 = vector.load %arg3[%79, %c0_65] : memref<118x32xf32, #tpu.memory_space<vmem>>, vector<1x32xf32>
    %c107 = arith.constant 107 : index
    %c0_66 = arith.constant 0 : index
    %81 = vector.load %arg3[%c107, %c0_66] : memref<118x32xf32, #tpu.memory_space<vmem>>, vector<1x32xf32>
    %82 = arith.addf %80, %81 : vector<1x32xf32>
    %c116_i32_67 = arith.constant 116 : i32
    %83 = arith.addi %c116_i32_67, %78 : i32
    %84 = arith.index_cast %83 : i32 to index
    %c0_68 = arith.constant 0 : index
    %85 = vector.load %arg3[%84, %c0_68] : memref<118x32xf32, #tpu.memory_space<vmem>>, vector<1x32xf32>
    %86 = arith.addf %82, %85 : vector<1x32xf32>
    %c7_69 = arith.constant 7 : index
    %c0_70 = arith.constant 0 : index
    %87 = vector.load %arg11[%c7_69, %c0_70] : memref<16x32xf32, #tpu.memory_space<vmem>>, vector<1x32xf32>
    tpu.vector_store %arg11[%c7_69, %c0_70], %86 {strides = array<i32>} : memref<16x32xf32, #tpu.memory_space<vmem>>, vector<1x32xf32>,
    %c1_71 = arith.constant 1 : index
    %c0_72 = arith.constant 0 : index
    %88 = memref.load %arg0[%c1_71, %c0_72] : memref<2x8xi32, #tpu.memory_space<smem>>
    %c1_73 = arith.constant 1 : index
    %c0_74 = arith.constant 0 : index
    %89 = memref.load %arg1[%c1_73, %c0_74] : memref<2x8xi32, #tpu.memory_space<smem>>
    %90 = arith.index_cast %88 : i32 to index
    %c0_75 = arith.constant 0 : index
    %91 = vector.load %arg3[%90, %c0_75] : memref<118x32xf32, #tpu.memory_space<vmem>>, vector<1x32xf32>
    %c100_76 = arith.constant 100 : index
    %c0_77 = arith.constant 0 : index
    %92 = vector.load %arg3[%c100_76, %c0_77] : memref<118x32xf32, #tpu.memory_space<vmem>>, vector<1x32xf32>
    %93 = arith.addf %91, %92 : vector<1x32xf32>
    %c116_i32_78 = arith.constant 116 : i32
    %94 = arith.addi %c116_i32_78, %89 : i32
    %95 = arith.index_cast %94 : i32 to index
    %c0_79 = arith.constant 0 : index
    %96 = vector.load %arg3[%95, %c0_79] : memref<118x32xf32, #tpu.memory_space<vmem>>, vector<1x32xf32>
    %97 = arith.addf %93, %96 : vector<1x32xf32>
    %c8 = arith.constant 8 : index
    %c0_80 = arith.constant 0 : index
    %98 = vector.load %arg11[%c8, %c0_80] : memref<16x32xf32, #tpu.memory_space<vmem>>, vector<1x32xf32>
    tpu.vector_store %arg11[%c8, %c0_80], %97 {strides = array<i32>} : memref<16x32xf32, #tpu.memory_space<vmem>>, vector<1x32xf32>,
    %c1_81 = arith.constant 1 : index
    %c1_82 = arith.constant 1 : index
    %99 = memref.load %arg0[%c1_81, %c1_82] : memref<2x8xi32, #tpu.memory_space<smem>>
    %c1_83 = arith.constant 1 : index
    %c1_84 = arith.constant 1 : index
    %100 = memref.load %arg1[%c1_83, %c1_84] : memref<2x8xi32, #tpu.memory_space<smem>>
    %101 = arith.index_cast %99 : i32 to index
    %c0_85 = arith.constant 0 : index
    %102 = vector.load %arg3[%101, %c0_85] : memref<118x32xf32, #tpu.memory_space<vmem>>, vector<1x32xf32>
    %c101_86 = arith.constant 101 : index
    %c0_87 = arith.constant 0 : index
    %103 = vector.load %arg3[%c101_86, %c0_87] : memref<118x32xf32, #tpu.memory_space<vmem>>, vector<1x32xf32>
    %104 = arith.addf %102, %103 : vector<1x32xf32>
    %c116_i32_88 = arith.constant 116 : i32
    %105 = arith.addi %c116_i32_88, %100 : i32
    %106 = arith.index_cast %105 : i32 to index
    %c0_89 = arith.constant 0 : index
    %107 = vector.load %arg3[%106, %c0_89] : memref<118x32xf32, #tpu.memory_space<vmem>>, vector<1x32xf32>
    %108 = arith.addf %104, %107 : vector<1x32xf32>
    %c9 = arith.constant 9 : index
    %c0_90 = arith.constant 0 : index
    %109 = vector.load %arg11[%c9, %c0_90] : memref<16x32xf32, #tpu.memory_space<vmem>>, vector<1x32xf32>
    tpu.vector_store %arg11[%c9, %c0_90], %108 {strides = array<i32>} : memref<16x32xf32, #tpu.memory_space<vmem>>, vector<1x32xf32>,
    %c1_91 = arith.constant 1 : index
    %c2_92 = arith.constant 2 : index
    %110 = memref.load %arg0[%c1_91, %c2_92] : memref<2x8xi32, #tpu.memory_space<smem>>
    %c1_93 = arith.constant 1 : index
    %c2_94 = arith.constant 2 : index
    %111 = memref.load %arg1[%c1_93, %c2_94] : memref<2x8xi32, #tpu.memory_space<smem>>
    %112 = arith.index_cast %110 : i32 to index
    %c0_95 = arith.constant 0 : index
    %113 = vector.load %arg3[%112, %c0_95] : memref<118x32xf32, #tpu.memory_space<vmem>>, vector<1x32xf32>
    %c102_96 = arith.constant 102 : index
    %c0_97 = arith.constant 0 : index
    %114 = vector.load %arg3[%c102_96, %c0_97] : memref<118x32xf32, #tpu.memory_space<vmem>>, vector<1x32xf32>
    %115 = arith.addf %113, %114 : vector<1x32xf32>
    %c116_i32_98 = arith.constant 116 : i32
    %116 = arith.addi %c116_i32_98, %111 : i32
    %117 = arith.index_cast %116 : i32 to index
    %c0_99 = arith.constant 0 : index
    %118 = vector.load %arg3[%117, %c0_99] : memref<118x32xf32, #tpu.memory_space<vmem>>, vector<1x32xf32>
    %119 = arith.addf %115, %118 : vector<1x32xf32>
    %c10 = arith.constant 10 : index
    %c0_100 = arith.constant 0 : index
    %120 = vector.load %arg11[%c10, %c0_100] : memref<16x32xf32, #tpu.memory_space<vmem>>, vector<1x32xf32>
    tpu.vector_store %arg11[%c10, %c0_100], %119 {strides = array<i32>} : memref<16x32xf32, #tpu.memory_space<vmem>>, vector<1x32xf32>,
    %c1_101 = arith.constant 1 : index
    %c3_102 = arith.constant 3 : index
    %121 = memref.load %arg0[%c1_101, %c3_102] : memref<2x8xi32, #tpu.memory_space<smem>>
    %c1_103 = arith.constant 1 : index
    %c3_104 = arith.constant 3 : index
    %122 = memref.load %arg1[%c1_103, %c3_104] : memref<2x8xi32, #tpu.memory_space<smem>>
    %123 = arith.index_cast %121 : i32 to index
    %c0_105 = arith.constant 0 : index
    %124 = vector.load %arg3[%123, %c0_105] : memref<118x32xf32, #tpu.memory_space<vmem>>, vector<1x32xf32>
    %c103_106 = arith.constant 103 : index
    %c0_107 = arith.constant 0 : index
    %125 = vector.load %arg3[%c103_106, %c0_107] : memref<118x32xf32, #tpu.memory_space<vmem>>, vector<1x32xf32>
    %126 = arith.addf %124, %125 : vector<1x32xf32>
    %c116_i32_108 = arith.constant 116 : i32
    %127 = arith.addi %c116_i32_108, %122 : i32
    %128 = arith.index_cast %127 : i32 to index
    %c0_109 = arith.constant 0 : index
    %129 = vector.load %arg3[%128, %c0_109] : memref<118x32xf32, #tpu.memory_space<vmem>>, vector<1x32xf32>
    %130 = arith.addf %126, %129 : vector<1x32xf32>
    %c11 = arith.constant 11 : index
    %c0_110 = arith.constant 0 : index
    %131 = vector.load %arg11[%c11, %c0_110] : memref<16x32xf32, #tpu.memory_space<vmem>>, vector<1x32xf32>
    tpu.vector_store %arg11[%c11, %c0_110], %130 {strides = array<i32>} : memref<16x32xf32, #tpu.memory_space<vmem>>, vector<1x32xf32>,
    %c1_111 = arith.constant 1 : index
    %c4_112 = arith.constant 4 : index
    %132 = memref.load %arg0[%c1_111, %c4_112] : memref<2x8xi32, #tpu.memory_space<smem>>
    %c1_113 = arith.constant 1 : index
    %c4_114 = arith.constant 4 : index
    %133 = memref.load %arg1[%c1_113, %c4_114] : memref<2x8xi32, #tpu.memory_space<smem>>
    %134 = arith.index_cast %132 : i32 to index
    %c0_115 = arith.constant 0 : index
    %135 = vector.load %arg3[%134, %c0_115] : memref<118x32xf32, #tpu.memory_space<vmem>>, vector<1x32xf32>
    %c104_116 = arith.constant 104 : index
    %c0_117 = arith.constant 0 : index
    %136 = vector.load %arg3[%c104_116, %c0_117] : memref<118x32xf32, #tpu.memory_space<vmem>>, vector<1x32xf32>
    %137 = arith.addf %135, %136 : vector<1x32xf32>
    %c116_i32_118 = arith.constant 116 : i32
    %138 = arith.addi %c116_i32_118, %133 : i32
    %139 = arith.index_cast %138 : i32 to index
    %c0_119 = arith.constant 0 : index
    %140 = vector.load %arg3[%139, %c0_119] : memref<118x32xf32, #tpu.memory_space<vmem>>, vector<1x32xf32>
    %141 = arith.addf %137, %140 : vector<1x32xf32>
    %c12 = arith.constant 12 : index
    %c0_120 = arith.constant 0 : index
    %142 = vector.load %arg11[%c12, %c0_120] : memref<16x32xf32, #tpu.memory_space<vmem>>, vector<1x32xf32>
    tpu.vector_store %arg11[%c12, %c0_120], %141 {strides = array<i32>} : memref<16x32xf32, #tpu.memory_space<vmem>>, vector<1x32xf32>,
    %c1_121 = arith.constant 1 : index
    %c5_122 = arith.constant 5 : index
    %143 = memref.load %arg0[%c1_121, %c5_122] : memref<2x8xi32, #tpu.memory_space<smem>>
    %c1_123 = arith.constant 1 : index
    %c5_124 = arith.constant 5 : index
    %144 = memref.load %arg1[%c1_123, %c5_124] : memref<2x8xi32, #tpu.memory_space<smem>>
    %145 = arith.index_cast %143 : i32 to index
    %c0_125 = arith.constant 0 : index
    %146 = vector.load %arg3[%145, %c0_125] : memref<118x32xf32, #tpu.memory_space<vmem>>, vector<1x32xf32>
    %c105_126 = arith.constant 105 : index
    %c0_127 = arith.constant 0 : index
    %147 = vector.load %arg3[%c105_126, %c0_127] : memref<118x32xf32, #tpu.memory_space<vmem>>, vector<1x32xf32>
    %148 = arith.addf %146, %147 : vector<1x32xf32>
    %c116_i32_128 = arith.constant 116 : i32
    %149 = arith.addi %c116_i32_128, %144 : i32
    %150 = arith.index_cast %149 : i32 to index
    %c0_129 = arith.constant 0 : index
    %151 = vector.load %arg3[%150, %c0_129] : memref<118x32xf32, #tpu.memory_space<vmem>>, vector<1x32xf32>
    %152 = arith.addf %148, %151 : vector<1x32xf32>
    %c13 = arith.constant 13 : index
    %c0_130 = arith.constant 0 : index
    %153 = vector.load %arg11[%c13, %c0_130] : memref<16x32xf32, #tpu.memory_space<vmem>>, vector<1x32xf32>
    tpu.vector_store %arg11[%c13, %c0_130], %152 {strides = array<i32>} : memref<16x32xf32, #tpu.memory_space<vmem>>, vector<1x32xf32>,
    %c1_131 = arith.constant 1 : index
    %c6_132 = arith.constant 6 : index
    %154 = memref.load %arg0[%c1_131, %c6_132] : memref<2x8xi32, #tpu.memory_space<smem>>
    %c1_133 = arith.constant 1 : index
    %c6_134 = arith.constant 6 : index
    %155 = memref.load %arg1[%c1_133, %c6_134] : memref<2x8xi32, #tpu.memory_space<smem>>
    %156 = arith.index_cast %154 : i32 to index
    %c0_135 = arith.constant 0 : index
    %157 = vector.load %arg3[%156, %c0_135] : memref<118x32xf32, #tpu.memory_space<vmem>>, vector<1x32xf32>
    %c106_136 = arith.constant 106 : index
    %c0_137 = arith.constant 0 : index
    %158 = vector.load %arg3[%c106_136, %c0_137] : memref<118x32xf32, #tpu.memory_space<vmem>>, vector<1x32xf32>
    %159 = arith.addf %157, %158 : vector<1x32xf32>
    %c116_i32_138 = arith.constant 116 : i32
    %160 = arith.addi %c116_i32_138, %155 : i32
    %161 = arith.index_cast %160 : i32 to index
    %c0_139 = arith.constant 0 : index
    %162 = vector.load %arg3[%161, %c0_139] : memref<118x32xf32, #tpu.memory_space<vmem>>, vector<1x32xf32>
    %163 = arith.addf %159, %162 : vector<1x32xf32>
    %c14 = arith.constant 14 : index
    %c0_140 = arith.constant 0 : index
    %164 = vector.load %arg11[%c14, %c0_140] : memref<16x32xf32, #tpu.memory_space<vmem>>, vector<1x32xf32>
    tpu.vector_store %arg11[%c14, %c0_140], %163 {strides = array<i32>} : memref<16x32xf32, #tpu.memory_space<vmem>>, vector<1x32xf32>,
    %c1_141 = arith.constant 1 : index
    %c7_142 = arith.constant 7 : index
    %165 = memref.load %arg0[%c1_141, %c7_142] : memref<2x8xi32, #tpu.memory_space<smem>>
    %c1_143 = arith.constant 1 : index
    %c7_144 = arith.constant 7 : index
    %166 = memref.load %arg1[%c1_143, %c7_144] : memref<2x8xi32, #tpu.memory_space<smem>>
    %167 = arith.index_cast %165 : i32 to index
    %c0_145 = arith.constant 0 : index
    %168 = vector.load %arg3[%167, %c0_145] : memref<118x32xf32, #tpu.memory_space<vmem>>, vector<1x32xf32>
    %c107_146 = arith.constant 107 : index
    %c0_147 = arith.constant 0 : index
    %169 = vector.load %arg3[%c107_146, %c0_147] : memref<118x32xf32, #tpu.memory_space<vmem>>, vector<1x32xf32>
    %170 = arith.addf %168, %169 : vector<1x32xf32>
    %c116_i32_148 = arith.constant 116 : i32
    %171 = arith.addi %c116_i32_148, %166 : i32
    %172 = arith.index_cast %171 : i32 to index
    %c0_149 = arith.constant 0 : index
    %173 = vector.load %arg3[%172, %c0_149] : memref<118x32xf32, #tpu.memory_space<vmem>>, vector<1x32xf32>
    %174 = arith.addf %170, %173 : vector<1x32xf32>
    %c15 = arith.constant 15 : index
    %c0_150 = arith.constant 0 : index
    %175 = vector.load %arg11[%c15, %c0_150] : memref<16x32xf32, #tpu.memory_space<vmem>>, vector<1x32xf32>
    tpu.vector_store %arg11[%c15, %c0_150], %174 {strides = array<i32>} : memref<16x32xf32, #tpu.memory_space<vmem>>, vector<1x32xf32>,
    %c0_151 = arith.constant 0 : index
    %c0_152 = arith.constant 0 : index
    %176 = vector.load %arg11[%c0_151, %c0_152] : memref<16x32xf32, #tpu.memory_space<vmem>>, vector<16x32xf32>
    %c0_153 = arith.constant 0 : index
    %c0_154 = arith.constant 0 : index
    %177 = vector.load %arg4[%c0_153, %c0_154] : memref<30x128xf32, #tpu.memory_space<vmem>>, vector<1x32xf32>
    %c1_155 = arith.constant 1 : index
    %c0_156 = arith.constant 0 : index
    %178 = vector.load %arg4[%c1_155, %c0_156] : memref<30x128xf32, #tpu.memory_space<vmem>>, vector<1x32xf32>
    %cst = arith.constant dense<0.000000e+00> : vector<16xf32>
    %179 = vector.multi_reduction <add>, %176, %cst [1] : vector<16x32xf32> to vector<16xf32>
    %180 = vector.shape_cast %179 : vector<16xf32> to vector<16x1xf32>
    %cst_157 = arith.constant 3.200000e+01 : f32
    %181 = vector.broadcast %cst_157 : f32 to vector<16x1xf32>
    %182 = arith.divf %180, %181 : vector<16x1xf32>
    %183 = vector.broadcast %182 : vector<16x1xf32> to vector<16x32xf32>
    %184 = arith.subf %176, %183 : vector<16x32xf32>
    %185 = vector.broadcast %182 : vector<16x1xf32> to vector<16x32xf32>
    %186 = arith.subf %176, %185 : vector<16x32xf32>
    %187 = arith.mulf %184, %186 : vector<16x32xf32>
    %cst_158 = arith.constant dense<0.000000e+00> : vector<16xf32>
    %188 = vector.multi_reduction <add>, %187, %cst_158 [1] : vector<16x32xf32> to vector<16xf32>
    %189 = vector.shape_cast %188 : vector<16xf32> to vector<16x1xf32>
    %cst_159 = arith.constant 3.200000e+01 : f32
    %190 = vector.broadcast %cst_159 : f32 to vector<16x1xf32>
    %191 = arith.divf %189, %190 : vector<16x1xf32>
    %192 = vector.broadcast %182 : vector<16x1xf32> to vector<16x32xf32>
    %193 = arith.subf %176, %192 : vector<16x32xf32>
    %cst_160 = arith.constant 9.99999996E-13 : f32
    %194 = vector.broadcast %cst_160 : f32 to vector<16x1xf32>
    %195 = arith.addf %191, %194 : vector<16x1xf32>
    %196 = math.rsqrt %195 : vector<16x1xf32>
    %197 = vector.broadcast %196 : vector<16x1xf32> to vector<16x32xf32>
    %198 = arith.mulf %193, %197 : vector<16x32xf32>
    %199 = vector.broadcast %177 : vector<1x32xf32> to vector<16x32xf32>
    %200 = arith.mulf %198, %199 : vector<16x32xf32>
    %201 = vector.broadcast %178 : vector<1x32xf32> to vector<16x32xf32>
    %202 = arith.addf %200, %201 : vector<16x32xf32>
    %c0_161 = arith.constant 0 : index
    %c0_162 = arith.constant 0 : index
    %203 = vector.load %arg2[%c0_161, %c0_162] : memref<2x8xi32, #tpu.memory_space<vmem>>, vector<2x8xi32>
    %204 = arith.sitofp %203 : vector<2x8xi32> to vector<2x8xf32>
    %cst_163 = arith.constant 1.000000e+00 : f32
    %205 = vector.broadcast %cst_163 : f32 to vector<2x8xf32>
    %206 = arith.subf %205, %204 : vector<2x8xf32>
    %cst_164 = arith.constant -1.000000e+09 : f32
    %207 = vector.broadcast %cst_164 : f32 to vector<2x8xf32>
    %208 = arith.mulf %206, %207 : vector<2x8xf32>
    %209 = vector.shape_cast %208 : vector<2x8xf32> to vector<2x1x8xf32>
    %210 = arith.truncf %202 : vector<16x32xf32> to vector<16x32xbf16>
    %cst_165 = arith.constant 0.000000e+00 : f32
    %211 = vector.broadcast %cst_165 : f32 to vector<16x32xf32>
    %c0_166 = arith.constant 0 : index
    %c0_167 = arith.constant 0 : index
    %c0_168 = arith.constant 0 : index
    %c0_169 = arith.constant 0 : index
    %c0_170 = arith.constant 0 : index
    %212 = vector.load %arg5[%c0_166, %c0_167, %c0_168, %c0_169, %c0_170] : memref<2x3x2x32x16xbf16, #tpu.memory_space<vmem>>, vector<1x1x1x32x16xbf16>
    %213 = vector.shape_cast %212 : vector<1x1x1x32x16xbf16> to vector<32x16xbf16>
    %cst_171 = arith.constant dense<0.000000e+00> : vector<16x16xf32>
    %214 = tpu.matmul %210, %213, %cst_171 {dimension_numbers = #tpu.dot_dimension_numbers<[1], [0], [0], [1], [0, 0, 1, 1], [], []>} : vector<16x32xbf16>, vector<32x16xbf16>, vector<16x16xf32> -> vector<16x16xf32>
    %c2_172 = arith.constant 2 : index
    %c0_173 = arith.constant 0 : index
    %215 = vector.load %arg4[%c2_172, %c0_173] : memref<30x128xf32, #tpu.memory_space<vmem>>, vector<1x16xf32>
    %216 = vector.broadcast %215 : vector<1x16xf32> to vector<16x16xf32>
    %217 = arith.addf %214, %216 : vector<16x16xf32>
    %c0_174 = arith.constant 0 : index
    %c1_175 = arith.constant 1 : index
    %c0_176 = arith.constant 0 : index
    %c0_177 = arith.constant 0 : index
    %c0_178 = arith.constant 0 : index
    %218 = vector.load %arg5[%c0_174, %c1_175, %c0_176, %c0_177, %c0_178] : memref<2x3x2x32x16xbf16, #tpu.memory_space<vmem>>, vector<1x1x1x32x16xbf16>
    %219 = vector.shape_cast %218 : vector<1x1x1x32x16xbf16> to vector<32x16xbf16>
    %cst_179 = arith.constant dense<0.000000e+00> : vector<16x16xf32>
    %220 = tpu.matmul %210, %219, %cst_179 {dimension_numbers = #tpu.dot_dimension_numbers<[1], [0], [0], [1], [0, 0, 1, 1], [], []>} : vector<16x32xbf16>, vector<32x16xbf16>, vector<16x16xf32> -> vector<16x16xf32>
    %c4_180 = arith.constant 4 : index
    %c0_181 = arith.constant 0 : index
    %221 = vector.load %arg4[%c4_180, %c0_181] : memref<30x128xf32, #tpu.memory_space<vmem>>, vector<1x16xf32>
    %222 = vector.broadcast %221 : vector<1x16xf32> to vector<16x16xf32>
    %223 = arith.addf %220, %222 : vector<16x16xf32>
    %c0_182 = arith.constant 0 : index
    %c2_183 = arith.constant 2 : index
    %c0_184 = arith.constant 0 : index
    %c0_185 = arith.constant 0 : index
    %c0_186 = arith.constant 0 : index
    %224 = vector.load %arg5[%c0_182, %c2_183, %c0_184, %c0_185, %c0_186] : memref<2x3x2x32x16xbf16, #tpu.memory_space<vmem>>, vector<1x1x1x32x16xbf16>
    %225 = vector.shape_cast %224 : vector<1x1x1x32x16xbf16> to vector<32x16xbf16>
    %cst_187 = arith.constant dense<0.000000e+00> : vector<16x16xf32>
    %226 = tpu.matmul %210, %225, %cst_187 {dimension_numbers = #tpu.dot_dimension_numbers<[1], [0], [0], [1], [0, 0, 1, 1], [], []>} : vector<16x32xbf16>, vector<32x16xbf16>, vector<16x16xf32> -> vector<16x16xf32>
    %c6_188 = arith.constant 6 : index
    %c0_189 = arith.constant 0 : index
    %227 = vector.load %arg4[%c6_188, %c0_189] : memref<30x128xf32, #tpu.memory_space<vmem>>, vector<1x16xf32>
    %228 = vector.broadcast %227 : vector<1x16xf32> to vector<16x16xf32>
    %229 = arith.addf %226, %228 : vector<16x16xf32>
    %230 = vector.shape_cast %217 : vector<16x16xf32> to vector<2x8x16xf32>
    %231 = arith.truncf %230 : vector<2x8x16xf32> to vector<2x8x16xbf16>
    %232 = vector.shape_cast %223 : vector<16x16xf32> to vector<2x8x16xf32>
    %233 = arith.truncf %232 : vector<2x8x16xf32> to vector<2x8x16xbf16>
    %234 = vector.shape_cast %229 : vector<16x16xf32> to vector<2x8x16xf32>
    %235 = arith.truncf %234 : vector<2x8x16xf32> to vector<2x8x16xbf16>
    "tpu.trace_start"() <{level = 10 : i32, message = "bqd,bkd->bqk"}> : () -> ()
    %cst_190 = arith.constant dense<0.000000e+00> : vector<2x8x8xf32>
    %236 = tpu.matmul %231, %233, %cst_190 {dimension_numbers = #tpu.dot_dimension_numbers<[2], [2], [1], [1], [0, 0, 0, 1, 1, 1], [0], [0]>} : vector<2x8x16xbf16>, vector<2x8x16xbf16>, vector<2x8x8xf32> -> vector<2x8x8xf32>
    "tpu.trace_stop"() : () -> ()
    %237 = vector.broadcast %209 : vector<2x1x8xf32> to vector<2x8x8xf32>
    %238 = arith.addf %236, %237 : vector<2x8x8xf32>
    %cst_191 = arith.constant dense<0xFF800000> : vector<2x8xf32>
    %239 = vector.multi_reduction <maximumf>, %238, %cst_191 [2] : vector<2x8x8xf32> to vector<2x8xf32>
    %240 = vector.shape_cast %239 : vector<2x8xf32> to vector<2x8x1xf32>
    %241 = vector.broadcast %240 : vector<2x8x1xf32> to vector<2x8x8xf32>
    %242 = arith.subf %238, %241 : vector<2x8x8xf32>
    %243 = math.exp %242 : vector<2x8x8xf32>
    %cst_192 = arith.constant dense<0.000000e+00> : vector<2x8xf32>
    %244 = vector.multi_reduction <add>, %243, %cst_192 [2] : vector<2x8x8xf32> to vector<2x8xf32>
    %245 = vector.shape_cast %244 : vector<2x8xf32> to vector<2x8x1xf32>
    %246 = tpu.reciprocal %245 {approx = true} : vector<2x8x1xf32> -> vector<2x8x1xf32>
    %247 = vector.broadcast %246 : vector<2x8x1xf32> to vector<2x8x8xf32>
    %248 = arith.mulf %243, %247 : vector<2x8x8xf32>
    %249 = arith.truncf %248 : vector<2x8x8xf32> to vector<2x8x8xbf16>
    "tpu.trace_start"() <{level = 10 : i32, message = "bqk,bkd->bqd"}> : () -> ()
    %cst_193 = arith.constant dense<0.000000e+00> : vector<2x8x16xf32>
    %250 = tpu.matmul %249, %235, %cst_193 {dimension_numbers = #tpu.dot_dimension_numbers<[2], [1], [1], [2], [0, 0, 0, 1, 1, 2], [0], [0]>} : vector<2x8x8xbf16>, vector<2x8x16xbf16>, vector<2x8x16xf32> -> vector<2x8x16xf32>
    "tpu.trace_stop"() : () -> ()
    %251 = vector.shape_cast %250 : vector<2x8x16xf32> to vector<16x16xf32>
    %252 = arith.truncf %251 : vector<16x16xf32> to vector<16x16xbf16>
    %c0_194 = arith.constant 0 : index
    %c0_195 = arith.constant 0 : index
    %c0_196 = arith.constant 0 : index
    %c0_197 = arith.constant 0 : index
    %253 = vector.load %arg6[%c0_194, %c0_195, %c0_196, %c0_197] : memref<2x2x16x32xbf16, #tpu.memory_space<vmem>>, vector<1x1x16x32xbf16>
    %254 = vector.shape_cast %253 : vector<1x1x16x32xbf16> to vector<16x32xbf16>
    %cst_198 = arith.constant dense<0.000000e+00> : vector<16x32xf32>
    %255 = tpu.matmul %252, %254, %cst_198 {dimension_numbers = #tpu.dot_dimension_numbers<[1], [0], [0], [1], [0, 0, 1, 1], [], []>} : vector<16x16xbf16>, vector<16x32xbf16>, vector<16x32xf32> -> vector<16x32xf32>
    %256 = arith.addf %211, %255 : vector<16x32xf32>
    %c0_199 = arith.constant 0 : index
    %c0_200 = arith.constant 0 : index
    %c1_201 = arith.constant 1 : index
    %c0_202 = arith.constant 0 : index
    %c0_203 = arith.constant 0 : index
    %257 = vector.load %arg5[%c0_199, %c0_200, %c1_201, %c0_202, %c0_203] : memref<2x3x2x32x16xbf16, #tpu.memory_space<vmem>>, vector<1x1x1x32x16xbf16>
    %258 = vector.shape_cast %257 : vector<1x1x1x32x16xbf16> to vector<32x16xbf16>
    %cst_204 = arith.constant dense<0.000000e+00> : vector<16x16xf32>
    %259 = tpu.matmul %210, %258, %cst_204 {dimension_numbers = #tpu.dot_dimension_numbers<[1], [0], [0], [1], [0, 0, 1, 1], [], []>} : vector<16x32xbf16>, vector<32x16xbf16>, vector<16x16xf32> -> vector<16x16xf32>
    %c3_205 = arith.constant 3 : index
    %c0_206 = arith.constant 0 : index
    %260 = vector.load %arg4[%c3_205, %c0_206] : memref<30x128xf32, #tpu.memory_space<vmem>>, vector<1x16xf32>
    %261 = vector.broadcast %260 : vector<1x16xf32> to vector<16x16xf32>
    %262 = arith.addf %259, %261 : vector<16x16xf32>
    %c0_207 = arith.constant 0 : index
    %c1_208 = arith.constant 1 : index
    %c1_209 = arith.constant 1 : index
    %c0_210 = arith.constant 0 : index
    %c0_211 = arith.constant 0 : index
    %263 = vector.load %arg5[%c0_207, %c1_208, %c1_209, %c0_210, %c0_211] : memref<2x3x2x32x16xbf16, #tpu.memory_space<vmem>>, vector<1x1x1x32x16xbf16>
    %264 = vector.shape_cast %263 : vector<1x1x1x32x16xbf16> to vector<32x16xbf16>
    %cst_212 = arith.constant dense<0.000000e+00> : vector<16x16xf32>
    %265 = tpu.matmul %210, %264, %cst_212 {dimension_numbers = #tpu.dot_dimension_numbers<[1], [0], [0], [1], [0, 0, 1, 1], [], []>} : vector<16x32xbf16>, vector<32x16xbf16>, vector<16x16xf32> -> vector<16x16xf32>
    %c5_213 = arith.constant 5 : index
    %c0_214 = arith.constant 0 : index
    %266 = vector.load %arg4[%c5_213, %c0_214] : memref<30x128xf32, #tpu.memory_space<vmem>>, vector<1x16xf32>
    %267 = vector.broadcast %266 : vector<1x16xf32> to vector<16x16xf32>
    %268 = arith.addf %265, %267 : vector<16x16xf32>
    %c0_215 = arith.constant 0 : index
    %c2_216 = arith.constant 2 : index
    %c1_217 = arith.constant 1 : index
    %c0_218 = arith.constant 0 : index
    %c0_219 = arith.constant 0 : index
    %269 = vector.load %arg5[%c0_215, %c2_216, %c1_217, %c0_218, %c0_219] : memref<2x3x2x32x16xbf16, #tpu.memory_space<vmem>>, vector<1x1x1x32x16xbf16>
    %270 = vector.shape_cast %269 : vector<1x1x1x32x16xbf16> to vector<32x16xbf16>
    %cst_220 = arith.constant dense<0.000000e+00> : vector<16x16xf32>
    %271 = tpu.matmul %210, %270, %cst_220 {dimension_numbers = #tpu.dot_dimension_numbers<[1], [0], [0], [1], [0, 0, 1, 1], [], []>} : vector<16x32xbf16>, vector<32x16xbf16>, vector<16x16xf32> -> vector<16x16xf32>
    %c7_221 = arith.constant 7 : index
    %c0_222 = arith.constant 0 : index
    %272 = vector.load %arg4[%c7_221, %c0_222] : memref<30x128xf32, #tpu.memory_space<vmem>>, vector<1x16xf32>
    %273 = vector.broadcast %272 : vector<1x16xf32> to vector<16x16xf32>
    %274 = arith.addf %271, %273 : vector<16x16xf32>
    %275 = vector.shape_cast %262 : vector<16x16xf32> to vector<2x8x16xf32>
    %276 = arith.truncf %275 : vector<2x8x16xf32> to vector<2x8x16xbf16>
    %277 = vector.shape_cast %268 : vector<16x16xf32> to vector<2x8x16xf32>
    %278 = arith.truncf %277 : vector<2x8x16xf32> to vector<2x8x16xbf16>
    %279 = vector.shape_cast %274 : vector<16x16xf32> to vector<2x8x16xf32>
    %280 = arith.truncf %279 : vector<2x8x16xf32> to vector<2x8x16xbf16>
    "tpu.trace_start"() <{level = 10 : i32, message = "bqd,bkd->bqk"}> : () -> ()
    %cst_223 = arith.constant dense<0.000000e+00> : vector<2x8x8xf32>
    %281 = tpu.matmul %276, %278, %cst_223 {dimension_numbers = #tpu.dot_dimension_numbers<[2], [2], [1], [1], [0, 0, 0, 1, 1, 1], [0], [0]>} : vector<2x8x16xbf16>, vector<2x8x16xbf16>, vector<2x8x8xf32> -> vector<2x8x8xf32>
    "tpu.trace_stop"() : () -> ()
    %282 = vector.broadcast %209 : vector<2x1x8xf32> to vector<2x8x8xf32>
    %283 = arith.addf %281, %282 : vector<2x8x8xf32>
    %cst_224 = arith.constant dense<0xFF800000> : vector<2x8xf32>
    %284 = vector.multi_reduction <maximumf>, %283, %cst_224 [2] : vector<2x8x8xf32> to vector<2x8xf32>
    %285 = vector.shape_cast %284 : vector<2x8xf32> to vector<2x8x1xf32>
    %286 = vector.broadcast %285 : vector<2x8x1xf32> to vector<2x8x8xf32>
    %287 = arith.subf %283, %286 : vector<2x8x8xf32>
    %288 = math.exp %287 : vector<2x8x8xf32>
    %cst_225 = arith.constant dense<0.000000e+00> : vector<2x8xf32>
    %289 = vector.multi_reduction <add>, %288, %cst_225 [2] : vector<2x8x8xf32> to vector<2x8xf32>
    %290 = vector.shape_cast %289 : vector<2x8xf32> to vector<2x8x1xf32>
    %291 = tpu.reciprocal %290 {approx = true} : vector<2x8x1xf32> -> vector<2x8x1xf32>
    %292 = vector.broadcast %291 : vector<2x8x1xf32> to vector<2x8x8xf32>
    %293 = arith.mulf %288, %292 : vector<2x8x8xf32>
    %294 = arith.truncf %293 : vector<2x8x8xf32> to vector<2x8x8xbf16>
    "tpu.trace_start"() <{level = 10 : i32, message = "bqk,bkd->bqd"}> : () -> ()
    %cst_226 = arith.constant dense<0.000000e+00> : vector<2x8x16xf32>
    %295 = tpu.matmul %294, %280, %cst_226 {dimension_numbers = #tpu.dot_dimension_numbers<[2], [1], [1], [2], [0, 0, 0, 1, 1, 2], [0], [0]>} : vector<2x8x8xbf16>, vector<2x8x16xbf16>, vector<2x8x16xf32> -> vector<2x8x16xf32>
    "tpu.trace_stop"() : () -> ()
    %296 = vector.shape_cast %295 : vector<2x8x16xf32> to vector<16x16xf32>
    %297 = arith.truncf %296 : vector<16x16xf32> to vector<16x16xbf16>
    %c0_227 = arith.constant 0 : index
    %c1_228 = arith.constant 1 : index
    %c0_229 = arith.constant 0 : index
    %c0_230 = arith.constant 0 : index
    %298 = vector.load %arg6[%c0_227, %c1_228, %c0_229, %c0_230] : memref<2x2x16x32xbf16, #tpu.memory_space<vmem>>, vector<1x1x16x32xbf16>
    %299 = vector.shape_cast %298 : vector<1x1x16x32xbf16> to vector<16x32xbf16>
    %cst_231 = arith.constant dense<0.000000e+00> : vector<16x32xf32>
    %300 = tpu.matmul %297, %299, %cst_231 {dimension_numbers = #tpu.dot_dimension_numbers<[1], [0], [0], [1], [0, 0, 1, 1], [], []>} : vector<16x16xbf16>, vector<16x32xbf16>, vector<16x32xf32> -> vector<16x32xf32>
    %301 = arith.addf %256, %300 : vector<16x32xf32>
    %c8_232 = arith.constant 8 : index
    %c0_233 = arith.constant 0 : index
    %302 = vector.load %arg4[%c8_232, %c0_233] : memref<30x128xf32, #tpu.memory_space<vmem>>, vector<1x32xf32>
    %303 = vector.broadcast %302 : vector<1x32xf32> to vector<16x32xf32>
    %304 = arith.addf %301, %303 : vector<16x32xf32>
    %305 = arith.addf %304, %202 : vector<16x32xf32>
    %c9_234 = arith.constant 9 : index
    %c0_235 = arith.constant 0 : index
    %306 = vector.load %arg4[%c9_234, %c0_235] : memref<30x128xf32, #tpu.memory_space<vmem>>, vector<1x32xf32>
    %c10_236 = arith.constant 10 : index
    %c0_237 = arith.constant 0 : index
    %307 = vector.load %arg4[%c10_236, %c0_237] : memref<30x128xf32, #tpu.memory_space<vmem>>, vector<1x32xf32>
    %cst_238 = arith.constant dense<0.000000e+00> : vector<16xf32>
    %308 = vector.multi_reduction <add>, %305, %cst_238 [1] : vector<16x32xf32> to vector<16xf32>
    %309 = vector.shape_cast %308 : vector<16xf32> to vector<16x1xf32>
    %cst_239 = arith.constant 3.200000e+01 : f32
    %310 = vector.broadcast %cst_239 : f32 to vector<16x1xf32>
    %311 = arith.divf %309, %310 : vector<16x1xf32>
    %312 = vector.broadcast %311 : vector<16x1xf32> to vector<16x32xf32>
    %313 = arith.subf %305, %312 : vector<16x32xf32>
    %314 = vector.broadcast %311 : vector<16x1xf32> to vector<16x32xf32>
    %315 = arith.subf %305, %314 : vector<16x32xf32>
    %316 = arith.mulf %313, %315 : vector<16x32xf32>
    %cst_240 = arith.constant dense<0.000000e+00> : vector<16xf32>
    %317 = vector.multi_reduction <add>, %316, %cst_240 [1] : vector<16x32xf32> to vector<16xf32>
    %318 = vector.shape_cast %317 : vector<16xf32> to vector<16x1xf32>
    %cst_241 = arith.constant 3.200000e+01 : f32
    %319 = vector.broadcast %cst_241 : f32 to vector<16x1xf32>
    %320 = arith.divf %318, %319 : vector<16x1xf32>
    %321 = vector.broadcast %311 : vector<16x1xf32> to vector<16x32xf32>
    %322 = arith.subf %305, %321 : vector<16x32xf32>
    %cst_242 = arith.constant 9.99999996E-13 : f32
    %323 = vector.broadcast %cst_242 : f32 to vector<16x1xf32>
    %324 = arith.addf %320, %323 : vector<16x1xf32>
    %325 = math.rsqrt %324 : vector<16x1xf32>
    %326 = vector.broadcast %325 : vector<16x1xf32> to vector<16x32xf32>
    %327 = arith.mulf %322, %326 : vector<16x32xf32>
    %328 = vector.broadcast %306 : vector<1x32xf32> to vector<16x32xf32>
    %329 = arith.mulf %327, %328 : vector<16x32xf32>
    %330 = vector.broadcast %307 : vector<1x32xf32> to vector<16x32xf32>
    %331 = arith.addf %329, %330 : vector<16x32xf32>
    %332 = arith.truncf %331 : vector<16x32xf32> to vector<16x32xbf16>
    %c0_243 = arith.constant 0 : index
    %c0_244 = arith.constant 0 : index
    %c0_245 = arith.constant 0 : index
    %333 = vector.load %arg7[%c0_243, %c0_244, %c0_245] : memref<2x32x64xbf16, #tpu.memory_space<vmem>>, vector<1x32x64xbf16>
    %334 = vector.shape_cast %333 : vector<1x32x64xbf16> to vector<32x64xbf16>
    %cst_246 = arith.constant dense<0.000000e+00> : vector<16x64xf32>
    %335 = tpu.matmul %332, %334, %cst_246 {dimension_numbers = #tpu.dot_dimension_numbers<[1], [0], [0], [1], [0, 0, 1, 1], [], []>} : vector<16x32xbf16>, vector<32x64xbf16>, vector<16x64xf32> -> vector<16x64xf32>
    %c11_247 = arith.constant 11 : index
    %c0_248 = arith.constant 0 : index
    %336 = vector.load %arg4[%c11_247, %c0_248] : memref<30x128xf32, #tpu.memory_space<vmem>>, vector<1x64xf32>
    %337 = vector.broadcast %336 : vector<1x64xf32> to vector<16x64xf32>
    %338 = arith.addf %335, %337 : vector<16x64xf32>
    %cst_249 = arith.constant 5.000000e-01 : f32
    %339 = vector.broadcast %cst_249 : f32 to vector<16x64xf32>
    %340 = arith.mulf %339, %338 : vector<16x64xf32>
    %cst_250 = arith.constant 4.471500e-02 : f32
    %341 = vector.broadcast %cst_250 : f32 to vector<16x64xf32>
    %342 = arith.mulf %341, %338 : vector<16x64xf32>
    %343 = arith.mulf %342, %338 : vector<16x64xf32>
    %344 = arith.mulf %343, %338 : vector<16x64xf32>
    %345 = arith.addf %338, %344 : vector<16x64xf32>
    %cst_251 = arith.constant 0.797884583 : f32
    %346 = vector.broadcast %cst_251 : f32 to vector<16x64xf32>
    %347 = arith.mulf %346, %345 : vector<16x64xf32>
    %348 = math.tanh %347 : vector<16x64xf32>
    %cst_252 = arith.constant 1.000000e+00 : f32
    %349 = vector.broadcast %cst_252 : f32 to vector<16x64xf32>
    %350 = arith.addf %349, %348 : vector<16x64xf32>
    %351 = arith.mulf %340, %350 : vector<16x64xf32>
    %352 = arith.truncf %351 : vector<16x64xf32> to vector<16x64xbf16>
    %c0_253 = arith.constant 0 : index
    %c0_254 = arith.constant 0 : index
    %c0_255 = arith.constant 0 : index
    %353 = vector.load %arg8[%c0_253, %c0_254, %c0_255] : memref<2x64x32xbf16, #tpu.memory_space<vmem>>, vector<1x64x32xbf16>
    %354 = vector.shape_cast %353 : vector<1x64x32xbf16> to vector<64x32xbf16>
    %cst_256 = arith.constant dense<0.000000e+00> : vector<16x32xf32>
    %355 = tpu.matmul %352, %354, %cst_256 {dimension_numbers = #tpu.dot_dimension_numbers<[1], [0], [0], [1], [0, 0, 1, 1], [], []>} : vector<16x64xbf16>, vector<64x32xbf16>, vector<16x32xf32> -> vector<16x32xf32>
    %c12_257 = arith.constant 12 : index
    %c0_258 = arith.constant 0 : index
    %356 = vector.load %arg4[%c12_257, %c0_258] : memref<30x128xf32, #tpu.memory_space<vmem>>, vector<1x32xf32>
    %357 = vector.broadcast %356 : vector<1x32xf32> to vector<16x32xf32>
    %358 = arith.addf %355, %357 : vector<16x32xf32>
    %359 = arith.addf %358, %331 : vector<16x32xf32>
    %c13_259 = arith.constant 13 : index
    %c0_260 = arith.constant 0 : index
    %360 = vector.load %arg4[%c13_259, %c0_260] : memref<30x128xf32, #tpu.memory_space<vmem>>, vector<1x32xf32>
    %c14_261 = arith.constant 14 : index
    %c0_262 = arith.constant 0 : index
    %361 = vector.load %arg4[%c14_261, %c0_262] : memref<30x128xf32, #tpu.memory_space<vmem>>, vector<1x32xf32>
    %cst_263 = arith.constant dense<0.000000e+00> : vector<16xf32>
    %362 = vector.multi_reduction <add>, %359, %cst_263 [1] : vector<16x32xf32> to vector<16xf32>
    %363 = vector.shape_cast %362 : vector<16xf32> to vector<16x1xf32>
    %cst_264 = arith.constant 3.200000e+01 : f32
    %364 = vector.broadcast %cst_264 : f32 to vector<16x1xf32>
    %365 = arith.divf %363, %364 : vector<16x1xf32>
    %366 = vector.broadcast %365 : vector<16x1xf32> to vector<16x32xf32>
    %367 = arith.subf %359, %366 : vector<16x32xf32>
    %368 = vector.broadcast %365 : vector<16x1xf32> to vector<16x32xf32>
    %369 = arith.subf %359, %368 : vector<16x32xf32>
    %370 = arith.mulf %367, %369 : vector<16x32xf32>
    %cst_265 = arith.constant dense<0.000000e+00> : vector<16xf32>
    %371 = vector.multi_reduction <add>, %370, %cst_265 [1] : vector<16x32xf32> to vector<16xf32>
    %372 = vector.shape_cast %371 : vector<16xf32> to vector<16x1xf32>
    %cst_266 = arith.constant 3.200000e+01 : f32
    %373 = vector.broadcast %cst_266 : f32 to vector<16x1xf32>
    %374 = arith.divf %372, %373 : vector<16x1xf32>
    %375 = vector.broadcast %365 : vector<16x1xf32> to vector<16x32xf32>
    %376 = arith.subf %359, %375 : vector<16x32xf32>
    %cst_267 = arith.constant 9.99999996E-13 : f32
    %377 = vector.broadcast %cst_267 : f32 to vector<16x1xf32>
    %378 = arith.addf %374, %377 : vector<16x1xf32>
    %379 = math.rsqrt %378 : vector<16x1xf32>
    %380 = vector.broadcast %379 : vector<16x1xf32> to vector<16x32xf32>
    %381 = arith.mulf %376, %380 : vector<16x32xf32>
    %382 = vector.broadcast %360 : vector<1x32xf32> to vector<16x32xf32>
    %383 = arith.mulf %381, %382 : vector<16x32xf32>
    %384 = vector.broadcast %361 : vector<1x32xf32> to vector<16x32xf32>
    %385 = arith.addf %383, %384 : vector<16x32xf32>
    %386 = arith.truncf %385 : vector<16x32xf32> to vector<16x32xbf16>
    %cst_268 = arith.constant 0.000000e+00 : f32
    %387 = vector.broadcast %cst_268 : f32 to vector<16x32xf32>
    %c1_269 = arith.constant 1 : index
    %c0_270 = arith.constant 0 : index
    %c0_271 = arith.constant 0 : index
    %c0_272 = arith.constant 0 : index
    %c0_273 = arith.constant 0 : index
    %388 = vector.load %arg5[%c1_269, %c0_270, %c0_271, %c0_272, %c0_273] : memref<2x3x2x32x16xbf16, #tpu.memory_space<vmem>>, vector<1x1x1x32x16xbf16>
    %389 = vector.shape_cast %388 : vector<1x1x1x32x16xbf16> to vector<32x16xbf16>
    %cst_274 = arith.constant dense<0.000000e+00> : vector<16x16xf32>
    %390 = tpu.matmul %386, %389, %cst_274 {dimension_numbers = #tpu.dot_dimension_numbers<[1], [0], [0], [1], [0, 0, 1, 1], [], []>} : vector<16x32xbf16>, vector<32x16xbf16>, vector<16x16xf32> -> vector<16x16xf32>
    %c15_275 = arith.constant 15 : index
    %c0_276 = arith.constant 0 : index
    %391 = vector.load %arg4[%c15_275, %c0_276] : memref<30x128xf32, #tpu.memory_space<vmem>>, vector<1x16xf32>
    %392 = vector.broadcast %391 : vector<1x16xf32> to vector<16x16xf32>
    %393 = arith.addf %390, %392 : vector<16x16xf32>
    %c1_277 = arith.constant 1 : index
    %c1_278 = arith.constant 1 : index
    %c0_279 = arith.constant 0 : index
    %c0_280 = arith.constant 0 : index
    %c0_281 = arith.constant 0 : index
    %394 = vector.load %arg5[%c1_277, %c1_278, %c0_279, %c0_280, %c0_281] : memref<2x3x2x32x16xbf16, #tpu.memory_space<vmem>>, vector<1x1x1x32x16xbf16>
    %395 = vector.shape_cast %394 : vector<1x1x1x32x16xbf16> to vector<32x16xbf16>
    %cst_282 = arith.constant dense<0.000000e+00> : vector<16x16xf32>
    %396 = tpu.matmul %386, %395, %cst_282 {dimension_numbers = #tpu.dot_dimension_numbers<[1], [0], [0], [1], [0, 0, 1, 1], [], []>} : vector<16x32xbf16>, vector<32x16xbf16>, vector<16x16xf32> -> vector<16x16xf32>
    %c17 = arith.constant 17 : index
    %c0_283 = arith.constant 0 : index
    %397 = vector.load %arg4[%c17, %c0_283] : memref<30x128xf32, #tpu.memory_space<vmem>>, vector<1x16xf32>
    %398 = vector.broadcast %397 : vector<1x16xf32> to vector<16x16xf32>
    %399 = arith.addf %396, %398 : vector<16x16xf32>
    %c1_284 = arith.constant 1 : index
    %c2_285 = arith.constant 2 : index
    %c0_286 = arith.constant 0 : index
    %c0_287 = arith.constant 0 : index
    %c0_288 = arith.constant 0 : index
    %400 = vector.load %arg5[%c1_284, %c2_285, %c0_286, %c0_287, %c0_288] : memref<2x3x2x32x16xbf16, #tpu.memory_space<vmem>>, vector<1x1x1x32x16xbf16>
    %401 = vector.shape_cast %400 : vector<1x1x1x32x16xbf16> to vector<32x16xbf16>
    %cst_289 = arith.constant dense<0.000000e+00> : vector<16x16xf32>
    %402 = tpu.matmul %386, %401, %cst_289 {dimension_numbers = #tpu.dot_dimension_numbers<[1], [0], [0], [1], [0, 0, 1, 1], [], []>} : vector<16x32xbf16>, vector<32x16xbf16>, vector<16x16xf32> -> vector<16x16xf32>
    %c19 = arith.constant 19 : index
    %c0_290 = arith.constant 0 : index
    %403 = vector.load %arg4[%c19, %c0_290] : memref<30x128xf32, #tpu.memory_space<vmem>>, vector<1x16xf32>
    %404 = vector.broadcast %403 : vector<1x16xf32> to vector<16x16xf32>
    %405 = arith.addf %402, %404 : vector<16x16xf32>
    %406 = vector.shape_cast %393 : vector<16x16xf32> to vector<2x8x16xf32>
    %407 = arith.truncf %406 : vector<2x8x16xf32> to vector<2x8x16xbf16>
    %408 = vector.shape_cast %399 : vector<16x16xf32> to vector<2x8x16xf32>
    %409 = arith.truncf %408 : vector<2x8x16xf32> to vector<2x8x16xbf16>
    %410 = vector.shape_cast %405 : vector<16x16xf32> to vector<2x8x16xf32>
    %411 = arith.truncf %410 : vector<2x8x16xf32> to vector<2x8x16xbf16>
    "tpu.trace_start"() <{level = 10 : i32, message = "bqd,bkd->bqk"}> : () -> ()
    %cst_291 = arith.constant dense<0.000000e+00> : vector<2x8x8xf32>
    %412 = tpu.matmul %407, %409, %cst_291 {dimension_numbers = #tpu.dot_dimension_numbers<[2], [2], [1], [1], [0, 0, 0, 1, 1, 1], [0], [0]>} : vector<2x8x16xbf16>, vector<2x8x16xbf16>, vector<2x8x8xf32> -> vector<2x8x8xf32>
    "tpu.trace_stop"() : () -> ()
    %413 = vector.broadcast %209 : vector<2x1x8xf32> to vector<2x8x8xf32>
    %414 = arith.addf %412, %413 : vector<2x8x8xf32>
    %cst_292 = arith.constant dense<0xFF800000> : vector<2x8xf32>
    %415 = vector.multi_reduction <maximumf>, %414, %cst_292 [2] : vector<2x8x8xf32> to vector<2x8xf32>
    %416 = vector.shape_cast %415 : vector<2x8xf32> to vector<2x8x1xf32>
    %417 = vector.broadcast %416 : vector<2x8x1xf32> to vector<2x8x8xf32>
    %418 = arith.subf %414, %417 : vector<2x8x8xf32>
    %419 = math.exp %418 : vector<2x8x8xf32>
    %cst_293 = arith.constant dense<0.000000e+00> : vector<2x8xf32>
    %420 = vector.multi_reduction <add>, %419, %cst_293 [2] : vector<2x8x8xf32> to vector<2x8xf32>
    %421 = vector.shape_cast %420 : vector<2x8xf32> to vector<2x8x1xf32>
    %422 = tpu.reciprocal %421 {approx = true} : vector<2x8x1xf32> -> vector<2x8x1xf32>
    %423 = vector.broadcast %422 : vector<2x8x1xf32> to vector<2x8x8xf32>
    %424 = arith.mulf %419, %423 : vector<2x8x8xf32>
    %425 = arith.truncf %424 : vector<2x8x8xf32> to vector<2x8x8xbf16>
    "tpu.trace_start"() <{level = 10 : i32, message = "bqk,bkd->bqd"}> : () -> ()
    %cst_294 = arith.constant dense<0.000000e+00> : vector<2x8x16xf32>
    %426 = tpu.matmul %425, %411, %cst_294 {dimension_numbers = #tpu.dot_dimension_numbers<[2], [1], [1], [2], [0, 0, 0, 1, 1, 2], [0], [0]>} : vector<2x8x8xbf16>, vector<2x8x16xbf16>, vector<2x8x16xf32> -> vector<2x8x16xf32>
    "tpu.trace_stop"() : () -> ()
    %427 = vector.shape_cast %426 : vector<2x8x16xf32> to vector<16x16xf32>
    %428 = arith.truncf %427 : vector<16x16xf32> to vector<16x16xbf16>
    %c1_295 = arith.constant 1 : index
    %c0_296 = arith.constant 0 : index
    %c0_297 = arith.constant 0 : index
    %c0_298 = arith.constant 0 : index
    %429 = vector.load %arg6[%c1_295, %c0_296, %c0_297, %c0_298] : memref<2x2x16x32xbf16, #tpu.memory_space<vmem>>, vector<1x1x16x32xbf16>
    %430 = vector.shape_cast %429 : vector<1x1x16x32xbf16> to vector<16x32xbf16>
    %cst_299 = arith.constant dense<0.000000e+00> : vector<16x32xf32>
    %431 = tpu.matmul %428, %430, %cst_299 {dimension_numbers = #tpu.dot_dimension_numbers<[1], [0], [0], [1], [0, 0, 1, 1], [], []>} : vector<16x16xbf16>, vector<16x32xbf16>, vector<16x32xf32> -> vector<16x32xf32>
    %432 = arith.addf %387, %431 : vector<16x32xf32>
    %c1_300 = arith.constant 1 : index
    %c0_301 = arith.constant 0 : index
    %c1_302 = arith.constant 1 : index
    %c0_303 = arith.constant 0 : index
    %c0_304 = arith.constant 0 : index
    %433 = vector.load %arg5[%c1_300, %c0_301, %c1_302, %c0_303, %c0_304] : memref<2x3x2x32x16xbf16, #tpu.memory_space<vmem>>, vector<1x1x1x32x16xbf16>
    %434 = vector.shape_cast %433 : vector<1x1x1x32x16xbf16> to vector<32x16xbf16>
    %cst_305 = arith.constant dense<0.000000e+00> : vector<16x16xf32>
    %435 = tpu.matmul %386, %434, %cst_305 {dimension_numbers = #tpu.dot_dimension_numbers<[1], [0], [0], [1], [0, 0, 1, 1], [], []>} : vector<16x32xbf16>, vector<32x16xbf16>, vector<16x16xf32> -> vector<16x16xf32>
    %c16 = arith.constant 16 : index
    %c0_306 = arith.constant 0 : index
    %436 = vector.load %arg4[%c16, %c0_306] : memref<30x128xf32, #tpu.memory_space<vmem>>, vector<1x16xf32>
    %437 = vector.broadcast %436 : vector<1x16xf32> to vector<16x16xf32>
    %438 = arith.addf %435, %437 : vector<16x16xf32>
    %c1_307 = arith.constant 1 : index
    %c1_308 = arith.constant 1 : index
    %c1_309 = arith.constant 1 : index
    %c0_310 = arith.constant 0 : index
    %c0_311 = arith.constant 0 : index
    %439 = vector.load %arg5[%c1_307, %c1_308, %c1_309, %c0_310, %c0_311] : memref<2x3x2x32x16xbf16, #tpu.memory_space<vmem>>, vector<1x1x1x32x16xbf16>
    %440 = vector.shape_cast %439 : vector<1x1x1x32x16xbf16> to vector<32x16xbf16>
    %cst_312 = arith.constant dense<0.000000e+00> : vector<16x16xf32>
    %441 = tpu.matmul %386, %440, %cst_312 {dimension_numbers = #tpu.dot_dimension_numbers<[1], [0], [0], [1], [0, 0, 1, 1], [], []>} : vector<16x32xbf16>, vector<32x16xbf16>, vector<16x16xf32> -> vector<16x16xf32>
    %c18 = arith.constant 18 : index
    %c0_313 = arith.constant 0 : index
    %442 = vector.load %arg4[%c18, %c0_313] : memref<30x128xf32, #tpu.memory_space<vmem>>, vector<1x16xf32>
    %443 = vector.broadcast %442 : vector<1x16xf32> to vector<16x16xf32>
    %444 = arith.addf %441, %443 : vector<16x16xf32>
    %c1_314 = arith.constant 1 : index
    %c2_315 = arith.constant 2 : index
    %c1_316 = arith.constant 1 : index
    %c0_317 = arith.constant 0 : index
    %c0_318 = arith.constant 0 : index
    %445 = vector.load %arg5[%c1_314, %c2_315, %c1_316, %c0_317, %c0_318] : memref<2x3x2x32x16xbf16, #tpu.memory_space<vmem>>, vector<1x1x1x32x16xbf16>
    %446 = vector.shape_cast %445 : vector<1x1x1x32x16xbf16> to vector<32x16xbf16>
    %cst_319 = arith.constant dense<0.000000e+00> : vector<16x16xf32>
    %447 = tpu.matmul %386, %446, %cst_319 {dimension_numbers = #tpu.dot_dimension_numbers<[1], [0], [0], [1], [0, 0, 1, 1], [], []>} : vector<16x32xbf16>, vector<32x16xbf16>, vector<16x16xf32> -> vector<16x16xf32>
    %c20 = arith.constant 20 : index
    %c0_320 = arith.constant 0 : index
    %448 = vector.load %arg4[%c20, %c0_320] : memref<30x128xf32, #tpu.memory_space<vmem>>, vector<1x16xf32>
    %449 = vector.broadcast %448 : vector<1x16xf32> to vector<16x16xf32>
    %450 = arith.addf %447, %449 : vector<16x16xf32>
    %451 = vector.shape_cast %438 : vector<16x16xf32> to vector<2x8x16xf32>
    %452 = arith.truncf %451 : vector<2x8x16xf32> to vector<2x8x16xbf16>
    %453 = vector.shape_cast %444 : vector<16x16xf32> to vector<2x8x16xf32>
    %454 = arith.truncf %453 : vector<2x8x16xf32> to vector<2x8x16xbf16>
    %455 = vector.shape_cast %450 : vector<16x16xf32> to vector<2x8x16xf32>
    %456 = arith.truncf %455 : vector<2x8x16xf32> to vector<2x8x16xbf16>
    "tpu.trace_start"() <{level = 10 : i32, message = "bqd,bkd->bqk"}> : () -> ()
    %cst_321 = arith.constant dense<0.000000e+00> : vector<2x8x8xf32>
    %457 = tpu.matmul %452, %454, %cst_321 {dimension_numbers = #tpu.dot_dimension_numbers<[2], [2], [1], [1], [0, 0, 0, 1, 1, 1], [0], [0]>} : vector<2x8x16xbf16>, vector<2x8x16xbf16>, vector<2x8x8xf32> -> vector<2x8x8xf32>
    "tpu.trace_stop"() : () -> ()
    %458 = vector.broadcast %209 : vector<2x1x8xf32> to vector<2x8x8xf32>
    %459 = arith.addf %457, %458 : vector<2x8x8xf32>
    %cst_322 = arith.constant dense<0xFF800000> : vector<2x8xf32>
    %460 = vector.multi_reduction <maximumf>, %459, %cst_322 [2] : vector<2x8x8xf32> to vector<2x8xf32>
    %461 = vector.shape_cast %460 : vector<2x8xf32> to vector<2x8x1xf32>
    %462 = vector.broadcast %461 : vector<2x8x1xf32> to vector<2x8x8xf32>
    %463 = arith.subf %459, %462 : vector<2x8x8xf32>
    %464 = math.exp %463 : vector<2x8x8xf32>
    %cst_323 = arith.constant dense<0.000000e+00> : vector<2x8xf32>
    %465 = vector.multi_reduction <add>, %464, %cst_323 [2] : vector<2x8x8xf32> to vector<2x8xf32>
    %466 = vector.shape_cast %465 : vector<2x8xf32> to vector<2x8x1xf32>
    %467 = tpu.reciprocal %466 {approx = true} : vector<2x8x1xf32> -> vector<2x8x1xf32>
    %468 = vector.broadcast %467 : vector<2x8x1xf32> to vector<2x8x8xf32>
    %469 = arith.mulf %464, %468 : vector<2x8x8xf32>
    %470 = arith.truncf %469 : vector<2x8x8xf32> to vector<2x8x8xbf16>
    "tpu.trace_start"() <{level = 10 : i32, message = "bqk,bkd->bqd"}> : () -> ()
    %cst_324 = arith.constant dense<0.000000e+00> : vector<2x8x16xf32>
    %471 = tpu.matmul %470, %456, %cst_324 {dimension_numbers = #tpu.dot_dimension_numbers<[2], [1], [1], [2], [0, 0, 0, 1, 1, 2], [0], [0]>} : vector<2x8x8xbf16>, vector<2x8x16xbf16>, vector<2x8x16xf32> -> vector<2x8x16xf32>
    "tpu.trace_stop"() : () -> ()
    %472 = vector.shape_cast %471 : vector<2x8x16xf32> to vector<16x16xf32>
    %473 = arith.truncf %472 : vector<16x16xf32> to vector<16x16xbf16>
    %c1_325 = arith.constant 1 : index
    %c1_326 = arith.constant 1 : index
    %c0_327 = arith.constant 0 : index
    %c0_328 = arith.constant 0 : index
    %474 = vector.load %arg6[%c1_325, %c1_326, %c0_327, %c0_328] : memref<2x2x16x32xbf16, #tpu.memory_space<vmem>>, vector<1x1x16x32xbf16>
    %475 = vector.shape_cast %474 : vector<1x1x16x32xbf16> to vector<16x32xbf16>
    %cst_329 = arith.constant dense<0.000000e+00> : vector<16x32xf32>
    %476 = tpu.matmul %473, %475, %cst_329 {dimension_numbers = #tpu.dot_dimension_numbers<[1], [0], [0], [1], [0, 0, 1, 1], [], []>} : vector<16x16xbf16>, vector<16x32xbf16>, vector<16x32xf32> -> vector<16x32xf32>
    %477 = arith.addf %432, %476 : vector<16x32xf32>
    %c21 = arith.constant 21 : index
    %c0_330 = arith.constant 0 : index
    %478 = vector.load %arg4[%c21, %c0_330] : memref<30x128xf32, #tpu.memory_space<vmem>>, vector<1x32xf32>
    %479 = vector.broadcast %478 : vector<1x32xf32> to vector<16x32xf32>
    %480 = arith.addf %477, %479 : vector<16x32xf32>
    %481 = arith.addf %480, %385 : vector<16x32xf32>
    %c22 = arith.constant 22 : index
    %c0_331 = arith.constant 0 : index
    %482 = vector.load %arg4[%c22, %c0_331] : memref<30x128xf32, #tpu.memory_space<vmem>>, vector<1x32xf32>
    %c23 = arith.constant 23 : index
    %c0_332 = arith.constant 0 : index
    %483 = vector.load %arg4[%c23, %c0_332] : memref<30x128xf32, #tpu.memory_space<vmem>>, vector<1x32xf32>
    %cst_333 = arith.constant dense<0.000000e+00> : vector<16xf32>
    %484 = vector.multi_reduction <add>, %481, %cst_333 [1] : vector<16x32xf32> to vector<16xf32>
    %485 = vector.shape_cast %484 : vector<16xf32> to vector<16x1xf32>
    %cst_334 = arith.constant 3.200000e+01 : f32
    %486 = vector.broadcast %cst_334 : f32 to vector<16x1xf32>
    %487 = arith.divf %485, %486 : vector<16x1xf32>
    %488 = vector.broadcast %487 : vector<16x1xf32> to vector<16x32xf32>
    %489 = arith.subf %481, %488 : vector<16x32xf32>
    %490 = vector.broadcast %487 : vector<16x1xf32> to vector<16x32xf32>
    %491 = arith.subf %481, %490 : vector<16x32xf32>
    %492 = arith.mulf %489, %491 : vector<16x32xf32>
    %cst_335 = arith.constant dense<0.000000e+00> : vector<16xf32>
    %493 = vector.multi_reduction <add>, %492, %cst_335 [1] : vector<16x32xf32> to vector<16xf32>
    %494 = vector.shape_cast %493 : vector<16xf32> to vector<16x1xf32>
    %cst_336 = arith.constant 3.200000e+01 : f32
    %495 = vector.broadcast %cst_336 : f32 to vector<16x1xf32>
    %496 = arith.divf %494, %495 : vector<16x1xf32>
    %497 = vector.broadcast %487 : vector<16x1xf32> to vector<16x32xf32>
    %498 = arith.subf %481, %497 : vector<16x32xf32>
    %cst_337 = arith.constant 9.99999996E-13 : f32
    %499 = vector.broadcast %cst_337 : f32 to vector<16x1xf32>
    %500 = arith.addf %496, %499 : vector<16x1xf32>
    %501 = math.rsqrt %500 : vector<16x1xf32>
    %502 = vector.broadcast %501 : vector<16x1xf32> to vector<16x32xf32>
    %503 = arith.mulf %498, %502 : vector<16x32xf32>
    %504 = vector.broadcast %482 : vector<1x32xf32> to vector<16x32xf32>
    %505 = arith.mulf %503, %504 : vector<16x32xf32>
    %506 = vector.broadcast %483 : vector<1x32xf32> to vector<16x32xf32>
    %507 = arith.addf %505, %506 : vector<16x32xf32>
    %508 = arith.truncf %507 : vector<16x32xf32> to vector<16x32xbf16>
    %c1_338 = arith.constant 1 : index
    %c0_339 = arith.constant 0 : index
    %c0_340 = arith.constant 0 : index
    %509 = vector.load %arg7[%c1_338, %c0_339, %c0_340] : memref<2x32x64xbf16, #tpu.memory_space<vmem>>, vector<1x32x64xbf16>
    %510 = vector.shape_cast %509 : vector<1x32x64xbf16> to vector<32x64xbf16>
    %cst_341 = arith.constant dense<0.000000e+00> : vector<16x64xf32>
    %511 = tpu.matmul %508, %510, %cst_341 {dimension_numbers = #tpu.dot_dimension_numbers<[1], [0], [0], [1], [0, 0, 1, 1], [], []>} : vector<16x32xbf16>, vector<32x64xbf16>, vector<16x64xf32> -> vector<16x64xf32>
    %c24 = arith.constant 24 : index
    %c0_342 = arith.constant 0 : index
    %512 = vector.load %arg4[%c24, %c0_342] : memref<30x128xf32, #tpu.memory_space<vmem>>, vector<1x64xf32>
    %513 = vector.broadcast %512 : vector<1x64xf32> to vector<16x64xf32>
    %514 = arith.addf %511, %513 : vector<16x64xf32>
    %cst_343 = arith.constant 5.000000e-01 : f32
    %515 = vector.broadcast %cst_343 : f32 to vector<16x64xf32>
    %516 = arith.mulf %515, %514 : vector<16x64xf32>
    %cst_344 = arith.constant 4.471500e-02 : f32
    %517 = vector.broadcast %cst_344 : f32 to vector<16x64xf32>
    %518 = arith.mulf %517, %514 : vector<16x64xf32>
    %519 = arith.mulf %518, %514 : vector<16x64xf32>
    %520 = arith.mulf %519, %514 : vector<16x64xf32>
    %521 = arith.addf %514, %520 : vector<16x64xf32>
    %cst_345 = arith.constant 0.797884583 : f32
    %522 = vector.broadcast %cst_345 : f32 to vector<16x64xf32>
    %523 = arith.mulf %522, %521 : vector<16x64xf32>
    %524 = math.tanh %523 : vector<16x64xf32>
    %cst_346 = arith.constant 1.000000e+00 : f32
    %525 = vector.broadcast %cst_346 : f32 to vector<16x64xf32>
    %526 = arith.addf %525, %524 : vector<16x64xf32>
    %527 = arith.mulf %516, %526 : vector<16x64xf32>
    %528 = arith.truncf %527 : vector<16x64xf32> to vector<16x64xbf16>
    %c1_347 = arith.constant 1 : index
    %c0_348 = arith.constant 0 : index
    %c0_349 = arith.constant 0 : index
    %529 = vector.load %arg8[%c1_347, %c0_348, %c0_349] : memref<2x64x32xbf16, #tpu.memory_space<vmem>>, vector<1x64x32xbf16>
    %530 = vector.shape_cast %529 : vector<1x64x32xbf16> to vector<64x32xbf16>
    %cst_350 = arith.constant dense<0.000000e+00> : vector<16x32xf32>
    %531 = tpu.matmul %528, %530, %cst_350 {dimension_numbers = #tpu.dot_dimension_numbers<[1], [0], [0], [1], [0, 0, 1, 1], [], []>} : vector<16x64xbf16>, vector<64x32xbf16>, vector<16x32xf32> -> vector<16x32xf32>
    %c25 = arith.constant 25 : index
    %c0_351 = arith.constant 0 : index
    %532 = vector.load %arg4[%c25, %c0_351] : memref<30x128xf32, #tpu.memory_space<vmem>>, vector<1x32xf32>
    %533 = vector.broadcast %532 : vector<1x32xf32> to vector<16x32xf32>
    %534 = arith.addf %531, %533 : vector<16x32xf32>
    %535 = arith.addf %534, %507 : vector<16x32xf32>
    %c26 = arith.constant 26 : index
    %c0_352 = arith.constant 0 : index
    %536 = vector.load %arg4[%c26, %c0_352] : memref<30x128xf32, #tpu.memory_space<vmem>>, vector<1x32xf32>
    %c27 = arith.constant 27 : index
    %c0_353 = arith.constant 0 : index
    %537 = vector.load %arg4[%c27, %c0_353] : memref<30x128xf32, #tpu.memory_space<vmem>>, vector<1x32xf32>
    %cst_354 = arith.constant dense<0.000000e+00> : vector<16xf32>
    %538 = vector.multi_reduction <add>, %535, %cst_354 [1] : vector<16x32xf32> to vector<16xf32>
    %539 = vector.shape_cast %538 : vector<16xf32> to vector<16x1xf32>
    %cst_355 = arith.constant 3.200000e+01 : f32
    %540 = vector.broadcast %cst_355 : f32 to vector<16x1xf32>
    %541 = arith.divf %539, %540 : vector<16x1xf32>
    %542 = vector.broadcast %541 : vector<16x1xf32> to vector<16x32xf32>
    %543 = arith.subf %535, %542 : vector<16x32xf32>
    %544 = vector.broadcast %541 : vector<16x1xf32> to vector<16x32xf32>
    %545 = arith.subf %535, %544 : vector<16x32xf32>
    %546 = arith.mulf %543, %545 : vector<16x32xf32>
    %cst_356 = arith.constant dense<0.000000e+00> : vector<16xf32>
    %547 = vector.multi_reduction <add>, %546, %cst_356 [1] : vector<16x32xf32> to vector<16xf32>
    %548 = vector.shape_cast %547 : vector<16xf32> to vector<16x1xf32>
    %cst_357 = arith.constant 3.200000e+01 : f32
    %549 = vector.broadcast %cst_357 : f32 to vector<16x1xf32>
    %550 = arith.divf %548, %549 : vector<16x1xf32>
    %551 = vector.broadcast %541 : vector<16x1xf32> to vector<16x32xf32>
    %552 = arith.subf %535, %551 : vector<16x32xf32>
    %cst_358 = arith.constant 9.99999996E-13 : f32
    %553 = vector.broadcast %cst_358 : f32 to vector<16x1xf32>
    %554 = arith.addf %550, %553 : vector<16x1xf32>
    %555 = math.rsqrt %554 : vector<16x1xf32>
    %556 = vector.broadcast %555 : vector<16x1xf32> to vector<16x32xf32>
    %557 = arith.mulf %552, %556 : vector<16x32xf32>
    %558 = vector.broadcast %536 : vector<1x32xf32> to vector<16x32xf32>
    %559 = arith.mulf %557, %558 : vector<16x32xf32>
    %560 = vector.broadcast %537 : vector<1x32xf32> to vector<16x32xf32>
    %561 = arith.addf %559, %560 : vector<16x32xf32>
    %562 = vector.shape_cast %561 : vector<16x32xf32> to vector<2x8x32xf32>
    %563 = vector.extract_strided_slice %562 {offsets = [0, 0, 0], sizes = [2, 1, 32], strides = [1, 1, 1]} : vector<2x8x32xf32> to vector<2x1x32xf32>
    %564 = vector.shape_cast %563 : vector<2x1x32xf32> to vector<2x32xf32>
    %565 = arith.truncf %564 : vector<2x32xf32> to vector<2x32xbf16>
    %c0_359 = arith.constant 0 : index
    %c0_360 = arith.constant 0 : index
    %c0_361 = arith.constant 0 : index
    %566 = vector.load %arg9[%c0_359, %c0_360, %c0_361] : memref<2x32x128xbf16, #tpu.memory_space<vmem>>, vector<1x32x128xbf16>
    %567 = vector.shape_cast %566 : vector<1x32x128xbf16> to vector<32x128xbf16>
    %cst_362 = arith.constant dense<0.000000e+00> : vector<2x128xf32>
    %568 = tpu.matmul %565, %567, %cst_362 {dimension_numbers = #tpu.dot_dimension_numbers<[1], [0], [0], [1], [0, 0, 1, 1], [], []>} : vector<2x32xbf16>, vector<32x128xbf16>, vector<2x128xf32> -> vector<2x128xf32>
    %569 = vector.extract_strided_slice %568 {offsets = [0, 0], sizes = [2, 32], strides = [1, 1]} : vector<2x128xf32> to vector<2x32xf32>
    %c28 = arith.constant 28 : index
    %c0_363 = arith.constant 0 : index
    %570 = vector.load %arg4[%c28, %c0_363] : memref<30x128xf32, #tpu.memory_space<vmem>>, vector<1x32xf32>
    %571 = vector.broadcast %570 : vector<1x32xf32> to vector<2x32xf32>
    %572 = arith.addf %569, %571 : vector<2x32xf32>
    %573 = math.tanh %572 : vector<2x32xf32>
    %574 = arith.truncf %573 : vector<2x32xf32> to vector<2x32xbf16>
    %c1_364 = arith.constant 1 : index
    %c0_365 = arith.constant 0 : index
    %c0_366 = arith.constant 0 : index
    %575 = vector.load %arg9[%c1_364, %c0_365, %c0_366] : memref<2x32x128xbf16, #tpu.memory_space<vmem>>, vector<1x32x128xbf16>
    %576 = vector.shape_cast %575 : vector<1x32x128xbf16> to vector<32x128xbf16>
    %cst_367 = arith.constant dense<0.000000e+00> : vector<2x128xf32>
    %577 = tpu.matmul %574, %576, %cst_367 {dimension_numbers = #tpu.dot_dimension_numbers<[1], [0], [0], [1], [0, 0, 1, 1], [], []>} : vector<2x32xbf16>, vector<32x128xbf16>, vector<2x128xf32> -> vector<2x128xf32>
    %c29 = arith.constant 29 : index
    %c0_368 = arith.constant 0 : index
    %578 = vector.load %arg4[%c29, %c0_368] : memref<30x128xf32, #tpu.memory_space<vmem>>, vector<1x128xf32>
    %579 = vector.broadcast %578 : vector<1x128xf32> to vector<2x128xf32>
    %580 = arith.addf %577, %579 : vector<2x128xf32>
    %c0_369 = arith.constant 0 : index
    %c0_370 = arith.constant 0 : index
    %581 = vector.load %arg10[%c0_369, %c0_370] : memref<2x128xf32, #tpu.memory_space<vmem>>, vector<2x128xf32>
    tpu.vector_store %arg10[%c0_369, %c0_370], %580 {strides = array<i32>} : memref<2x128xf32, #tpu.memory_space<vmem>>, vector<2x128xf32>,
    return
  }
}

</mosaic_0001>

<llo_original>
// kernel: emotion_model_forward.1
$region0: #{emotion_model_forward.1}
  #allocation0 [shape = 'u32[]', space=smem, size = 0x4, offset = 0x4, fixed_abs, tag = 'smem constant byte address 0x4 - core index']
  #allocation1 [shape = 'u32[144,128]{1,0:T(1,128)}', space=vmem, size = 0x12000, scoped, tag = 'internal scratch']
  #allocation2 [shape = 'f32[16,32]{1,0:T(8,128)}', space=vmem, size = 0x2000, scoped, tag = 'scratch operand']
  %s0 = inlined_call_operand.vmem [shape: s32[2,8], index: 0, kind: input, shape index: {}]
  %s1 = inlined_call_operand.vmem [shape: s32[2,8], index: 1, kind: input, shape index: {}]
  %s2 = inlined_call_operand.vmem [shape: s32[2,8], index: 2, kind: input, shape index: {}]
  %s3 = inlined_call_operand.vmem [shape: f32[118,32], index: 3, kind: input, shape index: {}]
  %s4 = inlined_call_operand.vmem [shape: f32[30,128], index: 4, kind: input, shape index: {}]
  %s5 = inlined_call_operand.vmem [shape: bf16[2,3,2,32,16], index: 5, kind: input, shape index: {}]
  %s6 = inlined_call_operand.vmem [shape: bf16[2,2,16,32], index: 6, kind: input, shape index: {}]
  %s7 = inlined_call_operand.vmem [shape: bf16[2,32,64], index: 7, kind: input, shape index: {}]
  %s8 = inlined_call_operand.vmem [shape: bf16[2,64,32], index: 8, kind: input, shape index: {}]
  %s9 = inlined_call_operand.vmem [shape: bf16[2,32,128], index: 9, kind: input, shape index: {}]
  %s10 = inlined_call_operand.hbm [shape: f32[2,128], index: 10, kind: output, shape index: {}]
  %s11 = sld [smem:[#allocation0]]
  $region58: #{emotion_model_forward.1} parent=0
    _
  %s13 = ssub.s32 1, %s11
  %s14 = scalar_select 0, %s13, %s11
  $region1: #{emotion_model_forward.1} parent=0
    #allocation3 [shape = 'u8[1024]{0}', space=smem, size = 0x400, scoped, tag = 'input window, operand 0, single buffered']
    #allocation4 [shape = 's32[1]{0}', space=sflag, size = 0x4, scoped, tag = 'scoped memory for emotion_model_forward.1']
    #allocation5 [shape = 's32[1]{0}', space=sflag, size = 0x4, scoped, tag = 'scoped memory for emotion_model_forward.1']
    #allocation6 [shape = 'u8[1024]{0}', space=smem, size = 0x400, scoped, tag = 'input window, operand 1, single buffered']
    #allocation7 [shape = 's32[1]{0}', space=sflag, size = 0x4, scoped, tag = 'scoped memory for emotion_model_forward.1']
    #allocation8 [shape = 'u8[1024]{0}', space=vmem, size = 0x400, scoped, tag = 'output window, operand 0, single buffered']
    %15 = vsyncpa [#allocation5], 0
    %16 = vsyncpa [#allocation7], 0
    %17 = vsyncpa [#allocation4], 0
    // Predicated region
    $region2: #{emotion_model_forward.1} parent=1 // pred_check
      _
    $region3: #{emotion_model_forward.1} parent=1 // pred_check_branch
      %19 = sbr.rel (0) target = $region5
    $region4: #{emotion_model_forward.1} parent=1 // pred_region
      %s21 = ssub.s32 32, 32
      %22 = vsyncadd [#allocation5], %s21
      %s24 = sshll.u32 %s0, 4
      %s25 = int_to_ptr.vmem [resolvable:$true] %s24
      %27 = dma.vmem_to_smem %s25, 32, [#allocation3], [#allocation5]
    $region5: #{emotion_model_forward.1} parent=1 // pred_fallthru
      _
    // Predicated region
    $region6: #{emotion_model_forward.1} parent=1 // pred_check
      _
    $region7: #{emotion_model_forward.1} parent=1 // pred_check_branch
      %29 = sbr.rel (0) target = $region9
    $region8: #{emotion_model_forward.1} parent=1 // pred_region
      %s31 = ssub.s32 32, 32
      %32 = vsyncadd [#allocation7], %s31
      %s34 = sshll.u32 %s1, 4
      %s35 = int_to_ptr.vmem [resolvable:$true] %s34
      %37 = dma.vmem_to_smem %s35, 32, [#allocation6], [#allocation7]
    $region9: #{emotion_model_forward.1} parent=1 // pred_fallthru
      _
    // Predicated region
    $region10: #{emotion_model_forward.1} parent=1 // pred_check
      _
    $region11: #{emotion_model_forward.1} parent=1 // pred_check_branch
      %39 = sbr.rel (0) target = $region13
    $region12: #{emotion_model_forward.1} parent=1 // pred_region
      _
    $region13: #{emotion_model_forward.1} parent=1 // pred_fallthru
      _
    // Predicated region
    $region14: #{emotion_model_forward.1} parent=1 // pred_check
      _
    $region15: #{emotion_model_forward.1} parent=1 // pred_check_branch
      %41 = sbr.rel (0) target = $region17
    $region16: #{emotion_model_forward.1} parent=1 // pred_region
      _
    $region17: #{emotion_model_forward.1} parent=1 // pred_fallthru
      _
    // Predicated region
    $region18: #{emotion_model_forward.1} parent=1 // pred_check
      _
    $region19: #{emotion_model_forward.1} parent=1 // pred_check_branch
      %43 = sbr.rel (0) target = $region21
    $region20: #{emotion_model_forward.1} parent=1 // pred_region
      _
    $region21: #{emotion_model_forward.1} parent=1 // pred_fallthru
      _
    // Predicated region
    $region22: #{emotion_model_forward.1} parent=1 // pred_check
      _
    $region23: #{emotion_model_forward.1} parent=1 // pred_check_branch
      %45 = sbr.rel (0) target = $region25
    $region24: #{emotion_model_forward.1} parent=1 // pred_region
      _
    $region25: #{emotion_model_forward.1} parent=1 // pred_fallthru
      _
    // Predicated region
    $region26: #{emotion_model_forward.1} parent=1 // pred_check
      _
    $region27: #{emotion_model_forward.1} parent=1 // pred_check_branch
      %47 = sbr.rel (0) target = $region29
    $region28: #{emotion_model_forward.1} parent=1 // pred_region
      _
    $region29: #{emotion_model_forward.1} parent=1 // pred_fallthru
      _
    // Predicated region
    $region30: #{emotion_model_forward.1} parent=1 // pred_check
      _
    $region31: #{emotion_model_forward.1} parent=1 // pred_check_branch
      %49 = sbr.rel (0) target = $region33
    $region32: #{emotion_model_forward.1} parent=1 // pred_region
      _
    $region33: #{emotion_model_forward.1} parent=1 // pred_fallthru
      _
    // Predicated region
    $region34: #{emotion_model_forward.1} parent=1 // pred_check
      _
    $region35: #{emotion_model_forward.1} parent=1 // pred_check_branch
      %51 = sbr.rel (0) target = $region37
    $region36: #{emotion_model_forward.1} parent=1 // pred_region
      _
    $region37: #{emotion_model_forward.1} parent=1 // pred_fallthru
      _
    // Predicated region
    $region38: #{emotion_model_forward.1} parent=1 // pred_check
      _
    $region39: #{emotion_model_forward.1} parent=1 // pred_check_branch
      %53 = sbr.rel (0) target = $region41
    $region40: #{emotion_model_forward.1} parent=1 // pred_region
      _
    $region41: #{emotion_model_forward.1} parent=1 // pred_fallthru
      _
    // Predicated region
    $region42: #{emotion_model_forward.1} parent=1 // pred_check
      _
    $region43: #{emotion_model_forward.1} parent=1 // pred_check_branch
      %55 = sbr.rel (0) target = $region45
    $region44: #{emotion_model_forward.1} parent=1 // pred_region
      %56 = dma.done [#allocation5], 32
    $region45: #{emotion_model_forward.1} parent=1 // pred_fallthru
      _
    // Predicated region
    $region46: #{emotion_model_forward.1} parent=1 // pred_check
      _
    $region47: #{emotion_model_forward.1} parent=1 // pred_check_branch
      %58 = sbr.rel (0) target = $region49
    $region48: #{emotion_model_forward.1} parent=1 // pred_region
      %59 = dma.done [#allocation7], 32
    $region49: #{emotion_model_forward.1} parent=1 // pred_fallthru
      _
    %60 = sfence
    %s62 = sld [smem:[#allocation3]]
    %s63 = sld [smem:[#allocation6]]
    %s64 = scalar_lea.vmem %s3, %s62
    %v65 = vld [vmem:[%s64] sm:$0x1]
    %v66 = vld [vmem:[%s3 + $0x64] sm:$0x1]
    %v67 = vadd.f32 %v65, %v66
    %s68 = sadd.s32 %s63, 116
    %s69 = scalar_lea.vmem %s3, %s68
    %v70 = vld [vmem:[%s69] sm:$0x1]
    %v71 = vadd.f32 %v67, %v70
    %vm72 = vcmask 253952
    %73 = vst.msk [vmem:[#allocation2] sm:$0x1] %vm72, %v71
    %s74 = sld [smem:[#allocation3 + $0x1]]
    %s75 = sld [smem:[#allocation6 + $0x1]]
    %s76 = scalar_lea.vmem %s3, %s74
    %v77 = vld [vmem:[%s76] sm:$0x1]
    %v78 = vld [vmem:[%s3 + $0x65] sm:$0x1]
    %v79 = vadd.f32 %v77, %v78
    %s80 = sadd.s32 %s75, 116
    %s81 = scalar_lea.vmem %s3, %s80
    %v82 = vld [vmem:[%s81] sm:$0x1]
    %v83 = vadd.f32 %v79, %v82
    %84 = vst.msk [vmem:[#allocation2 + $0x1] sm:$0x1] %vm72, %v83
    %s85 = sld [smem:[#allocation3 + $0x2]]
    %s86 = sld [smem:[#allocation6 + $0x2]]
    %s87 = scalar_lea.vmem %s3, %s85
    %v88 = vld [vmem:[%s87] sm:$0x1]
    %v89 = vld [vmem:[%s3 + $0x66] sm:$0x1]
    %v90 = vadd.f32 %v88, %v89
    %s91 = sadd.s32 %s86, 116
    %s92 = scalar_lea.vmem %s3, %s91
    %v93 = vld [vmem:[%s92] sm:$0x1]
    %v94 = vadd.f32 %v90, %v93
    %95 = vst.msk [vmem:[#allocation2 + $0x2] sm:$0x1] %vm72, %v94
    %s96 = sld [smem:[#allocation3 + $0x3]]
    %s97 = sld [smem:[#allocation6 + $0x3]]
    %s98 = scalar_lea.vmem %s3, %s96
    %v99 = vld [vmem:[%s98] sm:$0x1]
    %v100 = vld [vmem:[%s3 + $0x67] sm:$0x1]
    %v101 = vadd.f32 %v99, %v100
    %s102 = sadd.s32 %s97, 116
    %s103 = scalar_lea.vmem %s3, %s102
    %v104 = vld [vmem:[%s103] sm:$0x1]
    %v105 = vadd.f32 %v101, %v104
    %106 = vst.msk [vmem:[#allocation2 + $0x3] sm:$0x1] %vm72, %v105
    %s107 = sld [smem:[#allocation3 + $0x4]]
    %s108 = sld [smem:[#allocation6 + $0x4]]
    %s109 = scalar_lea.vmem %s3, %s107
    %v110 = vld [vmem:[%s109] sm:$0x1]
    %v111 = vld [vmem:[%s3 + $0x68] sm:$0x1]
    %v112 = vadd.f32 %v110, %v111
    %s113 = sadd.s32 %s108, 116
    %s114 = scalar_lea.vmem %s3, %s113
    %v115 = vld [vmem:[%s114] sm:$0x1]
    %v116 = vadd.f32 %v112, %v115
    %117 = vst.msk [vmem:[#allocation2 + $0x4] sm:$0x1] %vm72, %v116
    %s118 = sld [smem:[#allocation3 + $0x5]]
    %s119 = sld [smem:[#allocation6 + $0x5]]
    %s120 = scalar_lea.vmem %s3, %s118
    %v121 = vld [vmem:[%s120] sm:$0x1]
    %v122 = vld [vmem:[%s3 + $0x69] sm:$0x1]
    %v123 = vadd.f32 %v121, %v122
    %s124 = sadd.s32 %s119, 116
    %s125 = scalar_lea.vmem %s3, %s124
    %v126 = vld [vmem:[%s125] sm:$0x1]
    %v127 = vadd.f32 %v123, %v126
    %128 = vst.msk [vmem:[#allocation2 + $0x5] sm:$0x1] %vm72, %v127
    %s129 = sld [smem:[#allocation3 + $0x6]]
    %s130 = sld [smem:[#allocation6 + $0x6]]
    %s131 = scalar_lea.vmem %s3, %s129
    %v132 = vld [vmem:[%s131] sm:$0x1]
    %v133 = vld [vmem:[%s3 + $0x6a] sm:$0x1]
    %v134 = vadd.f32 %v132, %v133
    %s135 = sadd.s32 %s130, 116
    %s136 = scalar_lea.vmem %s3, %s135
    %v137 = vld [vmem:[%s136] sm:$0x1]
    %v138 = vadd.f32 %v134, %v137
    %139 = vst.msk [vmem:[#allocation2 + $0x6] sm:$0x1] %vm72, %v138
    %s140 = sld [smem:[#allocation3 + $0x7]]
    %s141 = sld [smem:[#allocation6 + $0x7]]
    %s142 = scalar_lea.vmem %s3, %s140
    %v143 = vld [vmem:[%s142] sm:$0x1]
    %v144 = vld [vmem:[%s3 + $0x6b] sm:$0x1]
    %v145 = vadd.f32 %v143, %v144
    %s146 = sadd.s32 %s141, 116
    %s147 = scalar_lea.vmem %s3, %s146
    %v148 = vld [vmem:[%s147] sm:$0x1]
    %v149 = vadd.f32 %v145, %v148
    %150 = vst.msk [vmem:[#allocation2 + $0x7] sm:$0x1] %vm72, %v149
    %s151 = sld [smem:[#allocation3 + $0x80]]
    %s152 = sld [smem:[#allocation6 + $0x80]]
    %s153 = scalar_lea.vmem %s3, %s151
    %v154 = vld [vmem:[%s153] sm:$0x1]
    %v155 = vld [vmem:[%s3 + $0x64] sm:$0x1]
    %v156 = vadd.f32 %v154, %v155
    %s157 = sadd.s32 %s152, 116
    %s158 = scalar_lea.vmem %s3, %s157
    %v159 = vld [vmem:[%s158] sm:$0x1]
    %v160 = vadd.f32 %v156, %v159
    %161 = vst.msk [vmem:[#allocation2 + $0x8] sm:$0x1] %vm72, %v160
    %s162 = sld [smem:[#allocation3 + $0x81]]
    %s163 = sld [smem:[#allocation6 + $0x81]]
    %s164 = scalar_lea.vmem %s3, %s162
    %v165 = vld [vmem:[%s164] sm:$0x1]
    %v166 = vld [vmem:[%s3 + $0x65] sm:$0x1]
    %v167 = vadd.f32 %v165, %v166
    %s168 = sadd.s32 %s163, 116
    %s169 = scalar_lea.vmem %s3, %s168
    %v170 = vld [vmem:[%s169] sm:$0x1]
    %v171 = vadd.f32 %v167, %v170
    %172 = vst.msk [vmem:[#allocation2 + $0x9] sm:$0x1] %vm72, %v171
    %s173 = sld [smem:[#allocation3 + $0x82]]
    %s174 = sld [smem:[#allocation6 + $0x82]]
    %s175 = scalar_lea.vmem %s3, %s173
    %v176 = vld [vmem:[%s175] sm:$0x1]
    %v177 = vld [vmem:[%s3 + $0x66] sm:$0x1]
    %v178 = vadd.f32 %v176, %v177
    %s179 = sadd.s32 %s174, 116
    %s180 = scalar_lea.vmem %s3, %s179
    %v181 = vld [vmem:[%s180] sm:$0x1]
    %v182 = vadd.f32 %v178, %v181
    %183 = vst.msk [vmem:[#allocation2 + $0xa] sm:$0x1] %vm72, %v182
    %s184 = sld [smem:[#allocation3 + $0x83]]
    %s185 = sld [smem:[#allocation6 + $0x83]]
    %s186 = scalar_lea.vmem %s3, %s184
    %v187 = vld [vmem:[%s186] sm:$0x1]
    %v188 = vld [vmem:[%s3 + $0x67] sm:$0x1]
    %v189 = vadd.f32 %v187, %v188
    %s190 = sadd.s32 %s185, 116
    %s191 = scalar_lea.vmem %s3, %s190
    %v192 = vld [vmem:[%s191] sm:$0x1]
    %v193 = vadd.f32 %v189, %v192
    %194 = vst.msk [vmem:[#allocation2 + $0xb] sm:$0x1] %vm72, %v193
    %s195 = sld [smem:[#allocation3 + $0x84]]
    %s196 = sld [smem:[#allocation6 + $0x84]]
    %s197 = scalar_lea.vmem %s3, %s195
    %v198 = vld [vmem:[%s197] sm:$0x1]
    %v199 = vld [vmem:[%s3 + $0x68] sm:$0x1]
    %v200 = vadd.f32 %v198, %v199
    %s201 = sadd.s32 %s196, 116
    %s202 = scalar_lea.vmem %s3, %s201
    %v203 = vld [vmem:[%s202] sm:$0x1]
    %v204 = vadd.f32 %v200, %v203
    %205 = vst.msk [vmem:[#allocation2 + $0xc] sm:$0x1] %vm72, %v204
    %s206 = sld [smem:[#allocation3 + $0x85]]
    %s207 = sld [smem:[#allocation6 + $0x85]]
    %s208 = scalar_lea.vmem %s3, %s206
    %v209 = vld [vmem:[%s208] sm:$0x1]
    %v210 = vld [vmem:[%s3 + $0x69] sm:$0x1]
    %v211 = vadd.f32 %v209, %v210
    %s212 = sadd.s32 %s207, 116
    %s213 = scalar_lea.vmem %s3, %s212
    %v214 = vld [vmem:[%s213] sm:$0x1]
    %v215 = vadd.f32 %v211, %v214
    %216 = vst.msk [vmem:[#allocation2 + $0xd] sm:$0x1] %vm72, %v215
    %s217 = sld [smem:[#allocation3 + $0x86]]
    %s218 = sld [smem:[#allocation6 + $0x86]]
    %s219 = scalar_lea.vmem %s3, %s217
    %v220 = vld [vmem:[%s219] sm:$0x1]
    %v221 = vld [vmem:[%s3 + $0x6a] sm:$0x1]
    %v222 = vadd.f32 %v220, %v221
    %s223 = sadd.s32 %s218, 116
    %s224 = scalar_lea.vmem %s3, %s223
    %v225 = vld [vmem:[%s224] sm:$0x1]
    %v226 = vadd.f32 %v222, %v225
    %227 = vst.msk [vmem:[#allocation2 + $0xe] sm:$0x1] %vm72, %v226
    %s228 = sld [smem:[#allocation3 + $0x87]]
    %s229 = sld [smem:[#allocation6 + $0x87]]
    %s230 = scalar_lea.vmem %s3, %s228
    %v231 = vld [vmem:[%s230] sm:$0x1]
    %v232 = vld [vmem:[%s3 + $0x6b] sm:$0x1]
    %v233 = vadd.f32 %v231, %v232
    %s234 = sadd.s32 %s229, 116
    %s235 = scalar_lea.vmem %s3, %s234
    %v236 = vld [vmem:[%s235] sm:$0x1]
    %v237 = vadd.f32 %v233, %v236
    %238 = vst.msk [vmem:[#allocation2 + $0xf] sm:$0x1] %vm72, %v237
    %v239 = vld [vmem:[#allocation2] sm:$0xff]
    %v240 = vld [vmem:[#allocation2 + $0x8] sm:$0xff]
    %v241 = vld [vmem:[%s4] sm:$0x1]
    %v242 = vld [vmem:[%s4 + $0x1] sm:$0x1]
    %vm243 = vcmask 261120
    %v244 = vsel %vm243, %v239, 0.0
    %245 = vadd.xlane.f32.xlu0 %v244
    %v246 = vpop.xlane.xlu0 %245
    %v247 = vsel %vm243, %v240, 0.0
    %248 = vadd.xlane.f32.xlu0 %v247
    %v249 = vpop.xlane.xlu0 %248
    %v250 = vrcp.pop 32.0
    %v251 = vmul.f32 %v246, %v250
    %v252 = vmul.f32 %v249, %v250
    %v253 = vsub.f32 %v239, %v251
    %v254 = vsub.f32 %v240, %v252
    %v255 = vmul.f32 %v253, %v253
    %v256 = vmul.f32 %v254, %v254
    %v257 = vsel %vm243, %v255, 0.0
    %258 = vadd.xlane.f32.xlu0 %v257
    %v259 = vpop.xlane.xlu0 %258
    %v260 = vsel %vm243, %v256, 0.0
    %261 = vadd.xlane.f32.xlu0 %v260
    %v262 = vpop.xlane.xlu0 %261
    %v263 = vmul.f32 %v259, %v250
    %v264 = vmul.f32 %v262, %v250
    %v265 = vadd.f32 %v263, 1e-12
    %v266 = vadd.f32 %v264, 1e-12
    %v267 = vrsqrt.pop %v265
    %v268 = vrsqrt.pop %v266
    %v269 = vmul.f32 %v253, %v267
    %v270 = vmul.f32 %v254, %v268
    %v271 = vlaneseq
    %v272 = vshrl.u32 %v271, 7
    %v273 = vsub.s32 0, %v272
    %v274 = vrot.slane %v241, %v273
    %v275 = vmul.f32 %v269, %v274
    %v276 = vmul.f32 %v270, %v274
    %v277 = vlaneseq
    %v278 = vshrl.u32 %v277, 7
    %v279 = vsub.s32 0, %v278
    %v280 = vrot.slane %v242, %v279
    %v281 = vadd.f32 %v275, %v280
    %v282 = vadd.f32 %v276, %v280
    %v283 = vld [vmem:[%s2] sm:$0x3]
    %v284 = vcvt.s32.f32 %v283
    %v285 = vsub.f32 1.0, %v284
    %v286 = vmul.f32 %v285, -1e+09
    %v289 = vunpack.c.l.s4 1966171168
    %v290 = vunpack.c.0.s8 %v289
    %v291 = vlaneseq
    %v292 = vshrl.u32 %v291, 7
    %v293 = vsub.s32 %v290, %v292
    %v294 = vrot.slane %v286, %v293
    %v295 = vcombine.high %v294, %v294
    %v297 = vunpack.c.l.s4 1966171168
    %v298 = vunpack.c.0.s8 %v297
    %v299 = vlaneseq
    %v300 = vshrl.u32 %v299, 7
    %v301 = vsub.s32 %v298, %v300
    %v302 = vrot.slane %v294, %v301
    %v304 = vunpack.c.l.s4 1966171168
    %v305 = vunpack.c.0.s8 %v304
    %v306 = vlaneseq
    %v307 = vshrl.u32 %v306, 7
    %v308 = vsub.s32 %v305, %v307
    %v309 = vrot.slane %v295, %v308
    %v310 = vpack.c.bf16 %v282, %v281
    %v311 = vld [vmem:[%s5] sm:$0xf]
    %v312 = vld [vmem:[%s5 + $0x4] sm:$0xf]
    %v313 = vld [vmem:[%s5 + $0x8] sm:$0xf]
    %v314 = vld [vmem:[%s5 + $0xc] sm:$0xf]
    %v315 = vld [vmem:[%s4 + $0x2] sm:$0x1]
    %v316 = vlaneseq
    %v317 = vshrl.u32 %v316, 7
    %v318 = vsub.s32 0, %v317
    %v319 = vrot.slane %v315, %v318
    %v324 = vunpack.c.l.b16 %v311
    %v325 = vunpack.c.l.b16 %v312
    %v326 = vunpack.c.l.b16 %v313
    %v327 = vunpack.c.l.b16 %v314
    %v328 = vpack.c.b16 %v325, %v324
    %v329 = vpack.c.b16 %v327, %v326
    %v333 = vsel %vm243, %v310, 0
    %335 = vmatprep.subr.bf16.mxu0 0
    %336 = vmatpush1.bf16.msra.mxu0 0
    %337 = vmatprep.subr.bf16.mxu0 0
    %338 = vmatpush1.bf16.msra.mxu0 0
    %339 = vmatprep.subr.bf16.mxu0 0
    %340 = vmatpush1.bf16.msra.mxu0 0
    %341 = vmatprep.subr.bf16.mxu0 0
    %342 = vmatpush1.bf16.msra.mxu0 0
    %343 = vmatprep.subr.bf16.mxu0 0
    %344 = vmatpush1.bf16.msra.mxu0 0
    %345 = vmatprep.subr.bf16.mxu0 0
    %346 = vmatpush1.bf16.msra.mxu0 0
    %347 = vmatprep.subr.bf16.mxu0 0
    %348 = vmatpush1.bf16.msra.mxu0 %v329
    %349 = vmatprep.subr.bf16.mxu0 0
    %350 = vmatpush1.bf16.msra.mxu0 %v328
    %351 = vmatprep.subr.bf16.mxu0 0
    %352 = vmatpush2.bf16.msra.mxu0 0
    %353 = vmatprep.subr.bf16.mxu0 0
    %354 = vmatpush2.bf16.msra.mxu0 0
    %355 = vmatprep.subr.bf16.mxu0 0
    %356 = vmatpush2.bf16.msra.mxu0 0
    %357 = vmatprep.subr.bf16.mxu0 0
    %358 = vmatpush2.bf16.msra.mxu0 0
    %359 = vmatprep.subr.bf16.mxu0 0
    %360 = vmatpush2.bf16.msra.mxu0 0
    %361 = vmatprep.subr.bf16.mxu0 0
    %362 = vmatpush2.bf16.msra.mxu0 0
    %363 = vmatprep.subr.bf16.mxu0 0
    %364 = vmatpush2.bf16.msra.mxu0 0
    %365 = vmatprep.subr.bf16.mxu0 0
    %366 = vmatpush2.bf16.msra.mxu0 0
    %367 = vmatprep.mubr.bf16.mxu0 0
    %368 = vmatmul.mubr.bf16.gmra.mxu0 %v333
    %v369 = vpop.f32.mrf.mxu0
    %v370 = vadd.f32 %v319, %v369
    %v371 = vpop.f32.mrf.mxu0
    %v372 = vpop.f32.mrf.mxu0
    %v373 = vadd.f32 %v319, %v372
    %v374 = vpop.f32.mrf.mxu0
    %375 = vdwg.mxu0
    %s376 = scalar_lea.vmem %s5, 32
    %v377 = vld [vmem:[%s376] sm:$0xf]
    %v378 = vld [vmem:[%s376 + $0x4] sm:$0xf]
    %v379 = vld [vmem:[%s376 + $0x8] sm:$0xf]
    %v380 = vld [vmem:[%s376 + $0xc] sm:$0xf]
    %v381 = vld [vmem:[%s4 + $0x4] sm:$0x1]
    %v382 = vlaneseq
    %v383 = vshrl.u32 %v382, 7
    %v384 = vsub.s32 0, %v383
    %v385 = vrot.slane %v381, %v384
    %v390 = vunpack.c.l.b16 %v377
    %v391 = vunpack.c.l.b16 %v378
    %v392 = vunpack.c.l.b16 %v379
    %v393 = vunpack.c.l.b16 %v380
    %v394 = vpack.c.b16 %v391, %v390
    %v395 = vpack.c.b16 %v393, %v392
    %398 = vmatprep.subr.bf16.mxu0 0
    %399 = vmatpush1.bf16.msra.mxu0 0
    %400 = vmatprep.subr.bf16.mxu0 0
    %401 = vmatpush1.bf16.msra.mxu0 0
    %402 = vmatprep.subr.bf16.mxu0 0
    %403 = vmatpush1.bf16.msra.mxu0 0
    %404 = vmatprep.subr.bf16.mxu0 0
    %405 = vmatpush1.bf16.msra.mxu0 0
    %406 = vmatprep.subr.bf16.mxu0 0
    %407 = vmatpush1.bf16.msra.mxu0 0
    %408 = vmatprep.subr.bf16.mxu0 0
    %409 = vmatpush1.bf16.msra.mxu0 0
    %410 = vmatprep.subr.bf16.mxu0 0
    %411 = vmatpush1.bf16.msra.mxu0 %v395
    %412 = vmatprep.subr.bf16.mxu0 0
    %413 = vmatpush1.bf16.msra.mxu0 %v394
    %414 = vmatprep.subr.bf16.mxu0 0
    %415 = vmatpush2.bf16.msra.mxu0 0
    %416 = vmatprep.subr.bf16.mxu0 0
    %417 = vmatpush2.bf16.msra.mxu0 0
    %418 = vmatprep.subr.bf16.mxu0 0
    %419 = vmatpush2.bf16.msra.mxu0 0
    %420 = vmatprep.subr.bf16.mxu0 0
    %421 = vmatpush2.bf16.msra.mxu0 0
    %422 = vmatprep.subr.bf16.mxu0 0
    %423 = vmatpush2.bf16.msra.mxu0 0
    %424 = vmatprep.subr.bf16.mxu0 0
    %425 = vmatpush2.bf16.msra.mxu0 0
    %426 = vmatprep.subr.bf16.mxu0 0
    %427 = vmatpush2.bf16.msra.mxu0 0
    %428 = vmatprep.subr.bf16.mxu0 0
    %429 = vmatpush2.bf16.msra.mxu0 0
    %430 = vmatprep.mubr.bf16.mxu0 0
    %431 = vmatmul.mubr.bf16.gmra.mxu0 %v333
    %v432 = vpop.f32.mrf.mxu0
    %v433 = vadd.f32 %v385, %v432
    %v434 = vpop.f32.mrf.mxu0
    %v435 = vpop.f32.mrf.mxu0
    %v436 = vadd.f32 %v385, %v435
    %v437 = vpop.f32.mrf.mxu0
    %438 = vdwg.mxu0
    %s439 = scalar_lea.vmem %s5, 64
    %v440 = vld [vmem:[%s439] sm:$0xf]
    %v441 = vld [vmem:[%s439 + $0x4] sm:$0xf]
    %v442 = vld [vmem:[%s439 + $0x8] sm:$0xf]
    %v443 = vld [vmem:[%s439 + $0xc] sm:$0xf]
    %v444 = vld [vmem:[%s4 + $0x6] sm:$0x1]
    %v445 = vlaneseq
    %v446 = vshrl.u32 %v445, 7
    %v447 = vsub.s32 0, %v446
    %v448 = vrot.slane %v444, %v447
    %v453 = vunpack.c.l.b16 %v440
    %v454 = vunpack.c.l.b16 %v441
    %v455 = vunpack.c.l.b16 %v442
    %v456 = vunpack.c.l.b16 %v443
    %v457 = vpack.c.b16 %v454, %v453
    %v458 = vpack.c.b16 %v456, %v455
    %461 = vmatprep.subr.bf16.mxu0 0
    %462 = vmatpush1.bf16.msra.mxu0 0
    %463 = vmatprep.subr.bf16.mxu0 0
    %464 = vmatpush1.bf16.msra.mxu0 0
    %465 = vmatprep.subr.bf16.mxu0 0
    %466 = vmatpush1.bf16.msra.mxu0 0
    %467 = vmatprep.subr.bf16.mxu0 0
    %468 = vmatpush1.bf16.msra.mxu0 0
    %469 = vmatprep.subr.bf16.mxu0 0
    %470 = vmatpush1.bf16.msra.mxu0 0
    %471 = vmatprep.subr.bf16.mxu0 0
    %472 = vmatpush1.bf16.msra.mxu0 0
    %473 = vmatprep.subr.bf16.mxu0 0
    %474 = vmatpush1.bf16.msra.mxu0 %v458
    %475 = vmatprep.subr.bf16.mxu0 0
    %476 = vmatpush1.bf16.msra.mxu0 %v457
    %477 = vmatprep.subr.bf16.mxu0 0
    %478 = vmatpush2.bf16.msra.mxu0 0
    %479 = vmatprep.subr.bf16.mxu0 0
    %480 = vmatpush2.bf16.msra.mxu0 0
    %481 = vmatprep.subr.bf16.mxu0 0
    %482 = vmatpush2.bf16.msra.mxu0 0
    %483 = vmatprep.subr.bf16.mxu0 0
    %484 = vmatpush2.bf16.msra.mxu0 0
    %485 = vmatprep.subr.bf16.mxu0 0
    %486 = vmatpush2.bf16.msra.mxu0 0
    %487 = vmatprep.subr.bf16.mxu0 0
    %488 = vmatpush2.bf16.msra.mxu0 0
    %489 = vmatprep.subr.bf16.mxu0 0
    %490 = vmatpush2.bf16.msra.mxu0 0
    %491 = vmatprep.subr.bf16.mxu0 0
    %492 = vmatpush2.bf16.msra.mxu0 0
    %493 = vmatprep.mubr.bf16.mxu0 0
    %494 = vmatmul.mubr.bf16.gmra.mxu0 %v333
    %v495 = vpop.f32.mrf.mxu0
    %v496 = vadd.f32 %v448, %v495
    %v497 = vpop.f32.mrf.mxu0
    %v498 = vpop.f32.mrf.mxu0
    %v499 = vadd.f32 %v448, %v498
    %v500 = vpop.f32.mrf.mxu0
    %501 = vdwg.mxu0
    %v502 = vpack.c.bf16 %v370, %v370
    %v503 = vpack.c.bf16 %v373, %v373
    %v504 = vpack.c.bf16 %v433, %v433
    %v505 = vpack.c.bf16 %v436, %v436
    %v506 = vpack.c.bf16 %v496, %v496
    %v507 = vpack.c.bf16 %v499, %v499
    %v508 = vlaneseq
    %v509 = vshrl.u32 %v508, 7
    %v510 = vsub.s32 0, %v509
    %v511 = vrot.slane %v302, %v510
    %v512 = vlaneseq
    %v513 = vshrl.u32 %v512, 7
    %v514 = vsub.s32 0, %v513
    %v515 = vrot.slane %v309, %v514
    %vm518 = vcmask 130048
    %v520 = vsel %vm518, %v502, 0
    %v523 = vsel %vm518, %v504, 0
    %525 = vmatprep.subr.bf16.mxu0 0
    %526 = vmatpush1.bf16.xpose.msra.mxu0 0
    %527 = vmatprep.subr.bf16.mxu0 0
    %528 = vmatpush1.bf16.xpose.msra.mxu0 0
    %529 = vmatprep.subr.bf16.mxu0 0
    %530 = vmatpush1.bf16.xpose.msra.mxu0 0
    %531 = vmatprep.subr.bf16.mxu0 0
    %532 = vmatpush1.bf16.xpose.msra.mxu0 0
    %533 = vmatprep.subr.bf16.mxu0 0
    %534 = vmatpush1.bf16.xpose.msra.mxu0 0
    %535 = vmatprep.subr.bf16.mxu0 0
    %536 = vmatpush1.bf16.xpose.msra.mxu0 0
    %537 = vmatprep.subr.bf16.mxu0 0
    %538 = vmatpush1.bf16.xpose.msra.mxu0 0
    %539 = vmatprep.subr.bf16.mxu0 0
    %540 = vmatpush1.bf16.xpose.msra.mxu0 %v523
    %541 = vmatprep.subr.bf16.mxu0 0
    %542 = vmatpush2.bf16.xpose.msra.mxu0 0
    %543 = vmatprep.subr.bf16.mxu0 0
    %544 = vmatpush2.bf16.xpose.msra.mxu0 0
    %545 = vmatprep.subr.bf16.mxu0 0
    %546 = vmatpush2.bf16.xpose.msra.mxu0 0
    %547 = vmatprep.subr.bf16.mxu0 0
    %548 = vmatpush2.bf16.xpose.msra.mxu0 0
    %549 = vmatprep.subr.bf16.mxu0 0
    %550 = vmatpush2.bf16.xpose.msra.mxu0 0
    %551 = vmatprep.subr.bf16.mxu0 0
    %552 = vmatpush2.bf16.xpose.msra.mxu0 0
    %553 = vmatprep.subr.bf16.mxu0 0
    %554 = vmatpush2.bf16.xpose.msra.mxu0 0
    %555 = vmatprep.subr.bf16.mxu0 0
    %556 = vmatpush2.bf16.xpose.msra.mxu0 0
    %557 = vmatprep.mubr.bf16.mxu0 0
    %558 = vmatmul.mubr.bf16.gmra.mxu0 %v520
    %v559 = vpop.f32.mrf.mxu0
    %v560 = vadd.f32 %v511, %v559
    %v561 = vpop.f32.mrf.mxu0
    %v562 = vpop.f32.mrf.mxu0
    %v563 = vpop.f32.mrf.mxu0
    %564 = vdwg.mxu0
    %v566 = vsel %vm518, %v503, 0
    %v569 = vsel %vm518, %v505, 0
    %571 = vmatprep.subr.bf16.mxu0 0
    %572 = vmatpush1.bf16.xpose.msra.mxu0 0
    %573 = vmatprep.subr.bf16.mxu0 0
    %574 = vmatpush1.bf16.xpose.msra.mxu0 0
    %575 = vmatprep.subr.bf16.mxu0 0
    %576 = vmatpush1.bf16.xpose.msra.mxu0 0
    %577 = vmatprep.subr.bf16.mxu0 0
    %578 = vmatpush1.bf16.xpose.msra.mxu0 0
    %579 = vmatprep.subr.bf16.mxu0 0
    %580 = vmatpush1.bf16.xpose.msra.mxu0 0
    %581 = vmatprep.subr.bf16.mxu0 0
    %582 = vmatpush1.bf16.xpose.msra.mxu0 0
    %583 = vmatprep.subr.bf16.mxu0 0
    %584 = vmatpush1.bf16.xpose.msra.mxu0 0
    %585 = vmatprep.subr.bf16.mxu0 0
    %586 = vmatpush1.bf16.xpose.msra.mxu0 %v569
    %587 = vmatprep.subr.bf16.mxu0 0
    %588 = vmatpush2.bf16.xpose.msra.mxu0 0
    %589 = vmatprep.subr.bf16.mxu0 0
    %590 = vmatpush2.bf16.xpose.msra.mxu0 0
    %591 = vmatprep.subr.bf16.mxu0 0
    %592 = vmatpush2.bf16.xpose.msra.mxu0 0
    %593 = vmatprep.subr.bf16.mxu0 0
    %594 = vmatpush2.bf16.xpose.msra.mxu0 0
    %595 = vmatprep.subr.bf16.mxu0 0
    %596 = vmatpush2.bf16.xpose.msra.mxu0 0
    %597 = vmatprep.subr.bf16.mxu0 0
    %598 = vmatpush2.bf16.xpose.msra.mxu0 0
    %599 = vmatprep.subr.bf16.mxu0 0
    %600 = vmatpush2.bf16.xpose.msra.mxu0 0
    %601 = vmatprep.subr.bf16.mxu0 0
    %602 = vmatpush2.bf16.xpose.msra.mxu0 0
    %603 = vmatprep.mubr.bf16.mxu0 0
    %604 = vmatmul.mubr.bf16.gmra.mxu0 %v566
    %v605 = vpop.f32.mrf.mxu0
    %v606 = vadd.f32 %v515, %v605
    %v607 = vpop.f32.mrf.mxu0
    %v608 = vpop.f32.mrf.mxu0
    %v609 = vpop.f32.mrf.mxu0
    %610 = vdwg.mxu0
    %vm611 = vcmask 64512
    %v612 = vsel %vm611, %v560, -inf
    %613 = vmax.xlane.f32.xlu0 %v612
    %v614 = vpop.xlane.xlu0 %613
    %v615 = vsel %vm611, %v606, -inf
    %616 = vmax.xlane.f32.xlu0 %v615
    %v617 = vpop.xlane.xlu0 %616
    %v618 = vsub.f32 %v560, %v614
    %v619 = vsub.f32 %v606, %v617
    %v620 = vmul.f32 %v618, 1.442695
    %v621 = vpow.pop %v620
    %v622 = vmul.f32 %v619, 1.442695
    %v623 = vpow.pop %v622
    %v624 = vsel %vm611, %v621, 0.0
    %625 = vadd.xlane.f32.xlu0 %v624
    %v626 = vpop.xlane.xlu0 %625
    %v627 = vsel %vm611, %v623, 0.0
    %628 = vadd.xlane.f32.xlu0 %v627
    %v629 = vpop.xlane.xlu0 %628
    %v630 = vrcp.pop %v626
    %v631 = vrcp.pop %v629
    %v632 = vmul.f32 %v621, %v630
    %v633 = vmul.f32 %v623, %v631
    %v634 = vpack.c.bf16 %v632, %v632
    %v635 = vpack.c.bf16 %v633, %v633
    %v637 = vsel %vm611, %v634, 0
    %vm639 = vcmask 1043456
    %v641 = vsel %vm639, %v506, 0
    %643 = vmatprep.subr.bf16.mxu0 0
    %644 = vmatpush1.bf16.msra.mxu0 0
    %645 = vmatprep.subr.bf16.mxu0 0
    %646 = vmatpush1.bf16.msra.mxu0 0
    %647 = vmatprep.subr.bf16.mxu0 0
    %648 = vmatpush1.bf16.msra.mxu0 0
    %649 = vmatprep.subr.bf16.mxu0 0
    %650 = vmatpush1.bf16.msra.mxu0 0
    %651 = vmatprep.subr.bf16.mxu0 0
    %652 = vmatpush1.bf16.msra.mxu0 0
    %653 = vmatprep.subr.bf16.mxu0 0
    %654 = vmatpush1.bf16.msra.mxu0 0
    %655 = vmatprep.subr.bf16.mxu0 0
    %656 = vmatpush1.bf16.msra.mxu0 0
    %657 = vmatprep.subr.bf16.mxu0 0
    %658 = vmatpush1.bf16.msra.mxu0 %v641
    %659 = vmatprep.subr.bf16.mxu0 0
    %660 = vmatpush2.bf16.msra.mxu0 0
    %661 = vmatprep.subr.bf16.mxu0 0
    %662 = vmatpush2.bf16.msra.mxu0 0
    %663 = vmatprep.subr.bf16.mxu0 0
    %664 = vmatpush2.bf16.msra.mxu0 0
    %665 = vmatprep.subr.bf16.mxu0 0
    %666 = vmatpush2.bf16.msra.mxu0 0
    %667 = vmatprep.subr.bf16.mxu0 0
    %668 = vmatpush2.bf16.msra.mxu0 0
    %669 = vmatprep.subr.bf16.mxu0 0
    %670 = vmatpush2.bf16.msra.mxu0 0
    %671 = vmatprep.subr.bf16.mxu0 0
    %672 = vmatpush2.bf16.msra.mxu0 0
    %673 = vmatprep.subr.bf16.mxu0 0
    %674 = vmatpush2.bf16.msra.mxu0 0
    %675 = vmatprep.mubr.bf16.mxu0 0
    %676 = vmatmul.mubr.bf16.gmra.mxu0 %v637
    %v677 = vpop.f32.mrf.mxu0
    %v678 = vadd.f32 0.0, %v677
    %v679 = vpop.f32.mrf.mxu0
    %v680 = vpop.f32.mrf.mxu0
    %v681 = vpop.f32.mrf.mxu0
    %682 = vdwg.mxu0
    %v684 = vsel %vm611, %v635, 0
    %v687 = vsel %vm639, %v507, 0
    %689 = vmatprep.subr.bf16.mxu0 0
    %690 = vmatpush1.bf16.msra.mxu0 0
    %691 = vmatprep.subr.bf16.mxu0 0
    %692 = vmatpush1.bf16.msra.mxu0 0
    %693 = vmatprep.subr.bf16.mxu0 0
    %694 = vmatpush1.bf16.msra.mxu0 0
    %695 = vmatprep.subr.bf16.mxu0 0
    %696 = vmatpush1.bf16.msra.mxu0 0
    %697 = vmatprep.subr.bf16.mxu0 0
    %698 = vmatpush1.bf16.msra.mxu0 0
    %699 = vmatprep.subr.bf16.mxu0 0
    %700 = vmatpush1.bf16.msra.mxu0 0
    %701 = vmatprep.subr.bf16.mxu0 0
    %702 = vmatpush1.bf16.msra.mxu0 0
    %703 = vmatprep.subr.bf16.mxu0 0
    %704 = vmatpush1.bf16.msra.mxu0 %v687
    %705 = vmatprep.subr.bf16.mxu0 0
    %706 = vmatpush2.bf16.msra.mxu0 0
    %707 = vmatprep.subr.bf16.mxu0 0
    %708 = vmatpush2.bf16.msra.mxu0 0
    %709 = vmatprep.subr.bf16.mxu0 0
    %710 = vmatpush2.bf16.msra.mxu0 0
    %711 = vmatprep.subr.bf16.mxu0 0
    %712 = vmatpush2.bf16.msra.mxu0 0
    %713 = vmatprep.subr.bf16.mxu0 0
    %714 = vmatpush2.bf16.msra.mxu0 0
    %715 = vmatprep.subr.bf16.mxu0 0
    %716 = vmatpush2.bf16.msra.mxu0 0
    %717 = vmatprep.subr.bf16.mxu0 0
    %718 = vmatpush2.bf16.msra.mxu0 0
    %719 = vmatprep.subr.bf16.mxu0 0
    %720 = vmatpush2.bf16.msra.mxu0 0
    %721 = vmatprep.mubr.bf16.mxu0 0
    %722 = vmatmul.mubr.bf16.gmra.mxu0 %v684
    %v723 = vpop.f32.mrf.mxu0
    %v724 = vadd.f32 0.0, %v723
    %v725 = vpop.f32.mrf.mxu0
    %v726 = vpop.f32.mrf.mxu0
    %v727 = vpop.f32.mrf.mxu0
    %728 = vdwg.mxu0
    %v729 = vpack.c.bf16 %v724, %v678
    %v730 = vld [vmem:[%s6] sm:$0xf]
    %v731 = vld [vmem:[%s6 + $0x4] sm:$0xf]
    %s732 = scalar_lea.vmem %s5, 16
    %v733 = vld [vmem:[%s732] sm:$0xf]
    %v734 = vld [vmem:[%s732 + $0x4] sm:$0xf]
    %v735 = vld [vmem:[%s732 + $0x8] sm:$0xf]
    %v736 = vld [vmem:[%s732 + $0xc] sm:$0xf]
    %v737 = vld [vmem:[%s4 + $0x3] sm:$0x1]
    %v738 = vlaneseq
    %v739 = vshrl.u32 %v738, 7
    %v740 = vsub.s32 0, %v739
    %v741 = vrot.slane %v737, %v740
    %v746 = vunpack.c.l.b16 %v733
    %v747 = vunpack.c.l.b16 %v734
    %v748 = vunpack.c.l.b16 %v735
    %v749 = vunpack.c.l.b16 %v736
    %v750 = vpack.c.b16 %v747, %v746
    %v751 = vpack.c.b16 %v749, %v748
    %754 = vmatprep.subr.bf16.mxu0 0
    %755 = vmatpush1.bf16.msra.mxu0 0
    %756 = vmatprep.subr.bf16.mxu0 0
    %757 = vmatpush1.bf16.msra.mxu0 0
    %758 = vmatprep.subr.bf16.mxu0 0
    %759 = vmatpush1.bf16.msra.mxu0 0
    %760 = vmatprep.subr.bf16.mxu0 0
    %761 = vmatpush1.bf16.msra.mxu0 0
    %762 = vmatprep.subr.bf16.mxu0 0
    %763 = vmatpush1.bf16.msra.mxu0 0
    %764 = vmatprep.subr.bf16.mxu0 0
    %765 = vmatpush1.bf16.msra.mxu0 0
    %766 = vmatprep.subr.bf16.mxu0 0
    %767 = vmatpush1.bf16.msra.mxu0 %v751
    %768 = vmatprep.subr.bf16.mxu0 0
    %769 = vmatpush1.bf16.msra.mxu0 %v750
    %770 = vmatprep.subr.bf16.mxu0 0
    %771 = vmatpush2.bf16.msra.mxu0 0
    %772 = vmatprep.subr.bf16.mxu0 0
    %773 = vmatpush2.bf16.msra.mxu0 0
    %774 = vmatprep.subr.bf16.mxu0 0
    %775 = vmatpush2.bf16.msra.mxu0 0
    %776 = vmatprep.subr.bf16.mxu0 0
    %777 = vmatpush2.bf16.msra.mxu0 0
    %778 = vmatprep.subr.bf16.mxu0 0
    %779 = vmatpush2.bf16.msra.mxu0 0
    %780 = vmatprep.subr.bf16.mxu0 0
    %781 = vmatpush2.bf16.msra.mxu0 0
    %782 = vmatprep.subr.bf16.mxu0 0
    %783 = vmatpush2.bf16.msra.mxu0 0
    %784 = vmatprep.subr.bf16.mxu0 0
    %785 = vmatpush2.bf16.msra.mxu0 0
    %786 = vmatprep.mubr.bf16.mxu0 0
    %787 = vmatmul.mubr.bf16.gmra.mxu0 %v333
    %v788 = vpop.f32.mrf.mxu0
    %v789 = vadd.f32 %v741, %v788
    %v790 = vpop.f32.mrf.mxu0
    %v791 = vpop.f32.mrf.mxu0
    %v792 = vadd.f32 %v741, %v791
    %v793 = vpop.f32.mrf.mxu0
    %794 = vdwg.mxu0
    %s795 = scalar_lea.vmem %s5, 48
    %v796 = vld [vmem:[%s795] sm:$0xf]
    %v797 = vld [vmem:[%s795 + $0x4] sm:$0xf]
    %v798 = vld [vmem:[%s795 + $0x8] sm:$0xf]
    %v799 = vld [vmem:[%s795 + $0xc] sm:$0xf]
    %v800 = vld [vmem:[%s4 + $0x5] sm:$0x1]
    %v801 = vlaneseq
    %v802 = vshrl.u32 %v801, 7
    %v803 = vsub.s32 0, %v802
    %v804 = vrot.slane %v800, %v803
    %v809 = vunpack.c.l.b16 %v796
    %v810 = vunpack.c.l.b16 %v797
    %v811 = vunpack.c.l.b16 %v798
    %v812 = vunpack.c.l.b16 %v799
    %v813 = vpack.c.b16 %v810, %v809
    %v814 = vpack.c.b16 %v812, %v811
    %817 = vmatprep.subr.bf16.mxu0 0
    %818 = vmatpush1.bf16.msra.mxu0 0
    %819 = vmatprep.subr.bf16.mxu0 0
    %820 = vmatpush1.bf16.msra.mxu0 0
    %821 = vmatprep.subr.bf16.mxu0 0
    %822 = vmatpush1.bf16.msra.mxu0 0
    %823 = vmatprep.subr.bf16.mxu0 0
    %824 = vmatpush1.bf16.msra.mxu0 0
    %825 = vmatprep.subr.bf16.mxu0 0
    %826 = vmatpush1.bf16.msra.mxu0 0
    %827 = vmatprep.subr.bf16.mxu0 0
    %828 = vmatpush1.bf16.msra.mxu0 0
    %829 = vmatprep.subr.bf16.mxu0 0
    %830 = vmatpush1.bf16.msra.mxu0 %v814
    %831 = vmatprep.subr.bf16.mxu0 0
    %832 = vmatpush1.bf16.msra.mxu0 %v813
    %833 = vmatprep.subr.bf16.mxu0 0
    %834 = vmatpush2.bf16.msra.mxu0 0
    %835 = vmatprep.subr.bf16.mxu0 0
    %836 = vmatpush2.bf16.msra.mxu0 0
    %837 = vmatprep.subr.bf16.mxu0 0
    %838 = vmatpush2.bf16.msra.mxu0 0
    %839 = vmatprep.subr.bf16.mxu0 0
    %840 = vmatpush2.bf16.msra.mxu0 0
    %841 = vmatprep.subr.bf16.mxu0 0
    %842 = vmatpush2.bf16.msra.mxu0 0
    %843 = vmatprep.subr.bf16.mxu0 0
    %844 = vmatpush2.bf16.msra.mxu0 0
    %845 = vmatprep.subr.bf16.mxu0 0
    %846 = vmatpush2.bf16.msra.mxu0 0
    %847 = vmatprep.subr.bf16.mxu0 0
    %848 = vmatpush2.bf16.msra.mxu0 0
    %849 = vmatprep.mubr.bf16.mxu0 0
    %850 = vmatmul.mubr.bf16.gmra.mxu0 %v333
    %v851 = vpop.f32.mrf.mxu0
    %v852 = vadd.f32 %v804, %v851
    %v853 = vpop.f32.mrf.mxu0
    %v854 = vpop.f32.mrf.mxu0
    %v855 = vadd.f32 %v804, %v854
    %v856 = vpop.f32.mrf.mxu0
    %857 = vdwg.mxu0
    %s858 = scalar_lea.vmem %s5, 80
    %v859 = vld [vmem:[%s858] sm:$0xf]
    %v860 = vld [vmem:[%s858 + $0x4] sm:$0xf]
    %v861 = vld [vmem:[%s858 + $0x8] sm:$0xf]
    %v862 = vld [vmem:[%s858 + $0xc] sm:$0xf]
    %v863 = vld [vmem:[%s4 + $0x7] sm:$0x1]
    %v864 = vlaneseq
    %v865 = vshrl.u32 %v864, 7
    %v866 = vsub.s32 0, %v865
    %v867 = vrot.slane %v863, %v866
    %v872 = vunpack.c.l.b16 %v859
    %v873 = vunpack.c.l.b16 %v860
    %v874 = vunpack.c.l.b16 %v861
    %v875 = vunpack.c.l.b16 %v862
    %v876 = vpack.c.b16 %v873, %v872
    %v877 = vpack.c.b16 %v875, %v874
    %880 = vmatprep.subr.bf16.mxu0 0
    %881 = vmatpush1.bf16.msra.mxu0 0
    %882 = vmatprep.subr.bf16.mxu0 0
    %883 = vmatpush1.bf16.msra.mxu0 0
    %884 = vmatprep.subr.bf16.mxu0 0
    %885 = vmatpush1.bf16.msra.mxu0 0
    %886 = vmatprep.subr.bf16.mxu0 0
    %887 = vmatpush1.bf16.msra.mxu0 0
    %888 = vmatprep.subr.bf16.mxu0 0
    %889 = vmatpush1.bf16.msra.mxu0 0
    %890 = vmatprep.subr.bf16.mxu0 0
    %891 = vmatpush1.bf16.msra.mxu0 0
    %892 = vmatprep.subr.bf16.mxu0 0
    %893 = vmatpush1.bf16.msra.mxu0 %v877
    %894 = vmatprep.subr.bf16.mxu0 0
    %895 = vmatpush1.bf16.msra.mxu0 %v876
    %896 = vmatprep.subr.bf16.mxu0 0
    %897 = vmatpush2.bf16.msra.mxu0 0
    %898 = vmatprep.subr.bf16.mxu0 0
    %899 = vmatpush2.bf16.msra.mxu0 0
    %900 = vmatprep.subr.bf16.mxu0 0
    %901 = vmatpush2.bf16.msra.mxu0 0
    %902 = vmatprep.subr.bf16.mxu0 0
    %903 = vmatpush2.bf16.msra.mxu0 0
    %904 = vmatprep.subr.bf16.mxu0 0
    %905 = vmatpush2.bf16.msra.mxu0 0
    %906 = vmatprep.subr.bf16.mxu0 0
    %907 = vmatpush2.bf16.msra.mxu0 0
    %908 = vmatprep.subr.bf16.mxu0 0
    %909 = vmatpush2.bf16.msra.mxu0 0
    %910 = vmatprep.subr.bf16.mxu0 0
    %911 = vmatpush2.bf16.msra.mxu0 0
    %912 = vmatprep.mubr.bf16.mxu0 0
    %913 = vmatmul.mubr.bf16.gmra.mxu0 %v333
    %v914 = vpop.f32.mrf.mxu0
    %v915 = vadd.f32 %v867, %v914
    %v916 = vpop.f32.mrf.mxu0
    %v917 = vpop.f32.mrf.mxu0
    %v918 = vadd.f32 %v867, %v917
    %v919 = vpop.f32.mrf.mxu0
    %920 = vdwg.mxu0
    %v921 = vpack.c.bf16 %v789, %v789
    %v922 = vpack.c.bf16 %v792, %v792
    %v923 = vpack.c.bf16 %v852, %v852
    %v924 = vpack.c.bf16 %v855, %v855
    %v925 = vpack.c.bf16 %v915, %v915
    %v926 = vpack.c.bf16 %v918, %v918
    %v928 = vsel %vm518, %v921, 0
    %v931 = vsel %vm518, %v923, 0
    %933 = vmatprep.subr.bf16.mxu0 0
    %934 = vmatpush1.bf16.xpose.msra.mxu0 0
    %935 = vmatprep.subr.bf16.mxu0 0
    %936 = vmatpush1.bf16.xpose.msra.mxu0 0
    %937 = vmatprep.subr.bf16.mxu0 0
    %938 = vmatpush1.bf16.xpose.msra.mxu0 0
    %939 = vmatprep.subr.bf16.mxu0 0
    %940 = vmatpush1.bf16.xpose.msra.mxu0 0
    %941 = vmatprep.subr.bf16.mxu0 0
    %942 = vmatpush1.bf16.xpose.msra.mxu0 0
    %943 = vmatprep.subr.bf16.mxu0 0
    %944 = vmatpush1.bf16.xpose.msra.mxu0 0
    %945 = vmatprep.subr.bf16.mxu0 0
    %946 = vmatpush1.bf16.xpose.msra.mxu0 0
    %947 = vmatprep.subr.bf16.mxu0 0
    %948 = vmatpush1.bf16.xpose.msra.mxu0 %v931
    %949 = vmatprep.subr.bf16.mxu0 0
    %950 = vmatpush2.bf16.xpose.msra.mxu0 0
    %951 = vmatprep.subr.bf16.mxu0 0
    %952 = vmatpush2.bf16.xpose.msra.mxu0 0
    %953 = vmatprep.subr.bf16.mxu0 0
    %954 = vmatpush2.bf16.xpose.msra.mxu0 0
    %955 = vmatprep.subr.bf16.mxu0 0
    %956 = vmatpush2.bf16.xpose.msra.mxu0 0
    %957 = vmatprep.subr.bf16.mxu0 0
    %958 = vmatpush2.bf16.xpose.msra.mxu0 0
    %959 = vmatprep.subr.bf16.mxu0 0
    %960 = vmatpush2.bf16.xpose.msra.mxu0 0
    %961 = vmatprep.subr.bf16.mxu0 0
    %962 = vmatpush2.bf16.xpose.msra.mxu0 0
    %963 = vmatprep.subr.bf16.mxu0 0
    %964 = vmatpush2.bf16.xpose.msra.mxu0 0
    %965 = vmatprep.mubr.bf16.mxu0 0
    %966 = vmatmul.mubr.bf16.gmra.mxu0 %v928
    %v967 = vpop.f32.mrf.mxu0
    %v968 = vadd.f32 %v511, %v967
    %v969 = vpop.f32.mrf.mxu0
    %v970 = vpop.f32.mrf.mxu0
    %v971 = vpop.f32.mrf.mxu0
    %972 = vdwg.mxu0
    %v974 = vsel %vm518, %v922, 0
    %v977 = vsel %vm518, %v924, 0
    %979 = vmatprep.subr.bf16.mxu0 0
    %980 = vmatpush1.bf16.xpose.msra.mxu0 0
    %981 = vmatprep.subr.bf16.mxu0 0
    %982 = vmatpush1.bf16.xpose.msra.mxu0 0
    %983 = vmatprep.subr.bf16.mxu0 0
    %984 = vmatpush1.bf16.xpose.msra.mxu0 0
    %985 = vmatprep.subr.bf16.mxu0 0
    %986 = vmatpush1.bf16.xpose.msra.mxu0 0
    %987 = vmatprep.subr.bf16.mxu0 0
    %988 = vmatpush1.bf16.xpose.msra.mxu0 0
    %989 = vmatprep.subr.bf16.mxu0 0
    %990 = vmatpush1.bf16.xpose.msra.mxu0 0
    %991 = vmatprep.subr.bf16.mxu0 0
    %992 = vmatpush1.bf16.xpose.msra.mxu0 0
    %993 = vmatprep.subr.bf16.mxu0 0
    %994 = vmatpush1.bf16.xpose.msra.mxu0 %v977
    %995 = vmatprep.subr.bf16.mxu0 0
    %996 = vmatpush2.bf16.xpose.msra.mxu0 0
    %997 = vmatprep.subr.bf16.mxu0 0
    %998 = vmatpush2.bf16.xpose.msra.mxu0 0
    %999 = vmatprep.subr.bf16.mxu0 0
    %1000 = vmatpush2.bf16.xpose.msra.mxu0 0
    %1001 = vmatprep.subr.bf16.mxu0 0
    %1002 = vmatpush2.bf16.xpose.msra.mxu0 0
    %1003 = vmatprep.subr.bf16.mxu0 0
    %1004 = vmatpush2.bf16.xpose.msra.mxu0 0
    %1005 = vmatprep.subr.bf16.mxu0 0
    %1006 = vmatpush2.bf16.xpose.msra.mxu0 0
    %1007 = vmatprep.subr.bf16.mxu0 0
    %1008 = vmatpush2.bf16.xpose.msra.mxu0 0
    %1009 = vmatprep.subr.bf16.mxu0 0
    %1010 = vmatpush2.bf16.xpose.msra.mxu0 0
    %1011 = vmatprep.mubr.bf16.mxu0 0
    %1012 = vmatmul.mubr.bf16.gmra.mxu0 %v974
    %v1013 = vpop.f32.mrf.mxu0
    %v1014 = vadd.f32 %v515, %v1013
    %v1015 = vpop.f32.mrf.mxu0
    %v1016 = vpop.f32.mrf.mxu0
    %v1017 = vpop.f32.mrf.mxu0
    %1018 = vdwg.mxu0
    %v1019 = vsel %vm611, %v968, -inf
    %1020 = vmax.xlane.f32.xlu0 %v1019
    %v1021 = vpop.xlane.xlu0 %1020
    %v1022 = vsel %vm611, %v1014, -inf
    %1023 = vmax.xlane.f32.xlu0 %v1022
    %v1024 = vpop.xlane.xlu0 %1023
    %v1025 = vsub.f32 %v968, %v1021
    %v1026 = vsub.f32 %v1014, %v1024
    %v1027 = vmul.f32 %v1025, 1.442695
    %v1028 = vpow.pop %v1027
    %v1029 = vmul.f32 %v1026, 1.442695
    %v1030 = vpow.pop %v1029
    %v1031 = vsel %vm611, %v1028, 0.0
    %1032 = vadd.xlane.f32.xlu0 %v1031
    %v1033 = vpop.xlane.xlu0 %1032
    %v1034 = vsel %vm611, %v1030, 0.0
    %1035 = vadd.xlane.f32.xlu0 %v1034
    %v1036 = vpop.xlane.xlu0 %1035
    %v1037 = vrcp.pop %v1033
    %v1038 = vrcp.pop %v1036
    %v1039 = vmul.f32 %v1028, %v1037
    %v1040 = vmul.f32 %v1030, %v1038
    %v1041 = vpack.c.bf16 %v1039, %v1039
    %v1042 = vpack.c.bf16 %v1040, %v1040
    %v1044 = vsel %vm611, %v1041, 0
    %v1047 = vsel %vm639, %v925, 0
    %1049 = vmatprep.subr.bf16.mxu0 0
    %1050 = vmatpush1.bf16.msra.mxu0 0
    %1051 = vmatprep.subr.bf16.mxu0 0
    %1052 = vmatpush1.bf16.msra.mxu0 0
    %1053 = vmatprep.subr.bf16.mxu0 0
    %1054 = vmatpush1.bf16.msra.mxu0 0
    %1055 = vmatprep.subr.bf16.mxu0 0
    %1056 = vmatpush1.bf16.msra.mxu0 0
    %1057 = vmatprep.subr.bf16.mxu0 0
    %1058 = vmatpush1.bf16.msra.mxu0 0
    %1059 = vmatprep.subr.bf16.mxu0 0
    %1060 = vmatpush1.bf16.msra.mxu0 0
    %1061 = vmatprep.subr.bf16.mxu0 0
    %1062 = vmatpush1.bf16.msra.mxu0 0
    %1063 = vmatprep.subr.bf16.mxu0 0
    %1064 = vmatpush1.bf16.msra.mxu0 %v1047
    %1065 = vmatprep.subr.bf16.mxu0 0
    %1066 = vmatpush2.bf16.msra.mxu0 0
    %1067 = vmatprep.subr.bf16.mxu0 0
    %1068 = vmatpush2.bf16.msra.mxu0 0
    %1069 = vmatprep.subr.bf16.mxu0 0
    %1070 = vmatpush2.bf16.msra.mxu0 0
    %1071 = vmatprep.subr.bf16.mxu0 0
    %1072 = vmatpush2.bf16.msra.mxu0 0
    %1073 = vmatprep.subr.bf16.mxu0 0
    %1074 = vmatpush2.bf16.msra.mxu0 0
    %1075 = vmatprep.subr.bf16.mxu0 0
    %1076 = vmatpush2.bf16.msra.mxu0 0
    %1077 = vmatprep.subr.bf16.mxu0 0
    %1078 = vmatpush2.bf16.msra.mxu0 0
    %1079 = vmatprep.subr.bf16.mxu0 0
    %1080 = vmatpush2.bf16.msra.mxu0 0
    %1081 = vmatprep.mubr.bf16.mxu0 0
    %1082 = vmatmul.mubr.bf16.gmra.mxu0 %v1044
    %v1083 = vpop.f32.mrf.mxu0
    %v1084 = vadd.f32 0.0, %v1083
    %v1085 = vpop.f32.mrf.mxu0
    %v1086 = vpop.f32.mrf.mxu0
    %v1087 = vpop.f32.mrf.mxu0
    %1088 = vdwg.mxu0
    %v1090 = vsel %vm611, %v1042, 0
    %v1093 = vsel %vm639, %v926, 0
    %1095 = vmatprep.subr.bf16.mxu0 0
    %1096 = vmatpush1.bf16.msra.mxu0 0
    %1097 = vmatprep.subr.bf16.mxu0 0
    %1098 = vmatpush1.bf16.msra.mxu0 0
    %1099 = vmatprep.subr.bf16.mxu0 0
    %1100 = vmatpush1.bf16.msra.mxu0 0
    %1101 = vmatprep.subr.bf16.mxu0 0
    %1102 = vmatpush1.bf16.msra.mxu0 0
    %1103 = vmatprep.subr.bf16.mxu0 0
    %1104 = vmatpush1.bf16.msra.mxu0 0
    %1105 = vmatprep.subr.bf16.mxu0 0
    %1106 = vmatpush1.bf16.msra.mxu0 0
    %1107 = vmatprep.subr.bf16.mxu0 0
    %1108 = vmatpush1.bf16.msra.mxu0 0
    %1109 = vmatprep.subr.bf16.mxu0 0
    %1110 = vmatpush1.bf16.msra.mxu0 %v1093
    %1111 = vmatprep.subr.bf16.mxu0 0
    %1112 = vmatpush2.bf16.msra.mxu0 0
    %1113 = vmatprep.subr.bf16.mxu0 0
    %1114 = vmatpush2.bf16.msra.mxu0 0
    %1115 = vmatprep.subr.bf16.mxu0 0
    %1116 = vmatpush2.bf16.msra.mxu0 0
    %1117 = vmatprep.subr.bf16.mxu0 0
    %1118 = vmatpush2.bf16.msra.mxu0 0
    %1119 = vmatprep.subr.bf16.mxu0 0
    %1120 = vmatpush2.bf16.msra.mxu0 0
    %1121 = vmatprep.subr.bf16.mxu0 0
    %1122 = vmatpush2.bf16.msra.mxu0 0
    %1123 = vmatprep.subr.bf16.mxu0 0
    %1124 = vmatpush2.bf16.msra.mxu0 0
    %1125 = vmatprep.subr.bf16.mxu0 0
    %1126 = vmatpush2.bf16.msra.mxu0 0
    %1127 = vmatprep.mubr.bf16.mxu0 0
    %1128 = vmatmul.mubr.bf16.gmra.mxu0 %v1090
    %v1129 = vpop.f32.mrf.mxu0
    %v1130 = vadd.f32 0.0, %v1129
    %v1131 = vpop.f32.mrf.mxu0
    %v1132 = vpop.f32.mrf.mxu0
    %v1133 = vpop.f32.mrf.mxu0
    %1134 = vdwg.mxu0
    %v1135 = vpack.c.bf16 %v1130, %v1084
    %s1136 = scalar_lea.vmem %s6, 8
    %v1137 = vld [vmem:[%s1136] sm:$0xf]
    %v1138 = vld [vmem:[%s1136 + $0x4] sm:$0xf]
    %v1141 = vunpack.c.l.b16 %v1137
    %v1142 = vunpack.c.l.b16 %v1138
    %v1143 = vpack.c.b16 %v1142, %v1141
    %v1146 = vsel %vm518, %v1135, 0
    %1148 = vmatprep.subr.bf16.mxu0 0
    %1149 = vmatpush1.bf16.msra.mxu0 0
    %1150 = vmatprep.subr.bf16.mxu0 0
    %1151 = vmatpush1.bf16.msra.mxu0 0
    %1152 = vmatprep.subr.bf16.mxu0 0
    %1153 = vmatpush1.bf16.msra.mxu0 0
    %1154 = vmatprep.subr.bf16.mxu0 0
    %1155 = vmatpush1.bf16.msra.mxu0 0
    %1156 = vmatprep.subr.bf16.mxu0 0
    %1157 = vmatpush1.bf16.msra.mxu0 0
    %1158 = vmatprep.subr.bf16.mxu0 0
    %1159 = vmatpush1.bf16.msra.mxu0 0
    %1160 = vmatprep.subr.bf16.mxu0 0
    %1161 = vmatpush1.bf16.msra.mxu0 0
    %1162 = vmatprep.subr.bf16.mxu0 0
    %1163 = vmatpush1.bf16.msra.mxu0 %v1143
    %1164 = vmatprep.subr.bf16.mxu0 0
    %1165 = vmatpush2.bf16.msra.mxu0 0
    %1166 = vmatprep.subr.bf16.mxu0 0
    %1167 = vmatpush2.bf16.msra.mxu0 0
    %1168 = vmatprep.subr.bf16.mxu0 0
    %1169 = vmatpush2.bf16.msra.mxu0 0
    %1170 = vmatprep.subr.bf16.mxu0 0
    %1171 = vmatpush2.bf16.msra.mxu0 0
    %1172 = vmatprep.subr.bf16.mxu0 0
    %1173 = vmatpush2.bf16.msra.mxu0 0
    %1174 = vmatprep.subr.bf16.mxu0 0
    %1175 = vmatpush2.bf16.msra.mxu0 0
    %1176 = vmatprep.subr.bf16.mxu0 0
    %1177 = vmatpush2.bf16.msra.mxu0 0
    %1178 = vmatprep.subr.bf16.mxu0 0
    %1179 = vmatpush2.bf16.msra.mxu0 0
    %1180 = vmatprep.mubr.bf16.mxu0 0
    %1181 = vmatmul.mubr.bf16.gmra.mxu0 %v1146
    %v1182 = vpop.f32.mrf.mxu0
    %v1183 = vadd.f32 0.0, %v1182
    %v1184 = vpop.f32.mrf.mxu0
    %v1185 = vpop.f32.mrf.mxu0
    %v1186 = vadd.f32 0.0, %v1185
    %v1187 = vpop.f32.mrf.mxu0
    %1188 = vdwg.mxu0
    %v1191 = vunpack.c.l.b16 %v730
    %v1192 = vunpack.c.l.b16 %v731
    %v1193 = vpack.c.b16 %v1192, %v1191
    %v1196 = vsel %vm518, %v729, 0
    %1198 = vmatprep.subr.bf16.mxu0 0
    %1199 = vmatpush1.bf16.msra.mxu0 0
    %1200 = vmatprep.subr.bf16.mxu0 0
    %1201 = vmatpush1.bf16.msra.mxu0 0
    %1202 = vmatprep.subr.bf16.mxu0 0
    %1203 = vmatpush1.bf16.msra.mxu0 0
    %1204 = vmatprep.subr.bf16.mxu0 0
    %1205 = vmatpush1.bf16.msra.mxu0 0
    %1206 = vmatprep.subr.bf16.mxu0 0
    %1207 = vmatpush1.bf16.msra.mxu0 0
    %1208 = vmatprep.subr.bf16.mxu0 0
    %1209 = vmatpush1.bf16.msra.mxu0 0
    %1210 = vmatprep.subr.bf16.mxu0 0
    %1211 = vmatpush1.bf16.msra.mxu0 0
    %1212 = vmatprep.subr.bf16.mxu0 0
    %1213 = vmatpush1.bf16.msra.mxu0 %v1193
    %1214 = vmatprep.subr.bf16.mxu0 0
    %1215 = vmatpush2.bf16.msra.mxu0 0
    %1216 = vmatprep.subr.bf16.mxu0 0
    %1217 = vmatpush2.bf16.msra.mxu0 0
    %1218 = vmatprep.subr.bf16.mxu0 0
    %1219 = vmatpush2.bf16.msra.mxu0 0
    %1220 = vmatprep.subr.bf16.mxu0 0
    %1221 = vmatpush2.bf16.msra.mxu0 0
    %1222 = vmatprep.subr.bf16.mxu0 0
    %1223 = vmatpush2.bf16.msra.mxu0 0
    %1224 = vmatprep.subr.bf16.mxu0 0
    %1225 = vmatpush2.bf16.msra.mxu0 0
    %1226 = vmatprep.subr.bf16.mxu0 0
    %1227 = vmatpush2.bf16.msra.mxu0 0
    %1228 = vmatprep.subr.bf16.mxu0 0
    %1229 = vmatpush2.bf16.msra.mxu0 0
    %1230 = vmatprep.mubr.bf16.mxu0 0
    %1231 = vmatmul.mubr.bf16.gmra.mxu0 %v1196
    %v1232 = vpop.f32.mrf.mxu0
    %v1233 = vadd.f32 %v1183, %v1232
    %v1234 = vpop.f32.mrf.mxu0
    %v1235 = vpop.f32.mrf.mxu0
    %v1236 = vadd.f32 %v1186, %v1235
    %v1237 = vpop.f32.mrf.mxu0
    %1238 = vdwg.mxu0
    %v1239 = vld [vmem:[%s4 + $0x8] sm:$0x1]
    %v1240 = vlaneseq
    %v1241 = vshrl.u32 %v1240, 7
    %v1242 = vsub.s32 0, %v1241
    %v1243 = vrot.slane %v1239, %v1242
    %v1244 = vadd.f32 %v1233, %v1243
    %v1245 = vadd.f32 %v1236, %v1243
    %v1246 = vadd.f32 %v1244, %v281
    %v1247 = vadd.f32 %v1245, %v282
    %v1248 = vld [vmem:[%s4 + $0x9] sm:$0x1]
    %v1249 = vld [vmem:[%s4 + $0xa] sm:$0x1]
    %v1250 = vsel %vm243, %v1246, 0.0
    %1251 = vadd.xlane.f32.xlu0 %v1250
    %v1252 = vpop.xlane.xlu0 %1251
    %v1253 = vsel %vm243, %v1247, 0.0
    %1254 = vadd.xlane.f32.xlu0 %v1253
    %v1255 = vpop.xlane.xlu0 %1254
    %v1256 = vmul.f32 %v1252, %v250
    %v1257 = vmul.f32 %v1255, %v250
    %v1258 = vsub.f32 %v1246, %v1256
    %v1259 = vsub.f32 %v1247, %v1257
    %v1260 = vmul.f32 %v1258, %v1258
    %v1261 = vmul.f32 %v1259, %v1259
    %v1262 = vsel %vm243, %v1260, 0.0
    %1263 = vadd.xlane.f32.xlu0 %v1262
    %v1264 = vpop.xlane.xlu0 %1263
    %v1265 = vsel %vm243, %v1261, 0.0
    %1266 = vadd.xlane.f32.xlu0 %v1265
    %v1267 = vpop.xlane.xlu0 %1266
    %v1268 = vmul.f32 %v1264, %v250
    %v1269 = vmul.f32 %v1267, %v250
    %v1270 = vadd.f32 %v1268, 1e-12
    %v1271 = vadd.f32 %v1269, 1e-12
    %v1272 = vrsqrt.pop %v1270
    %v1273 = vrsqrt.pop %v1271
    %v1274 = vmul.f32 %v1258, %v1272
    %v1275 = vmul.f32 %v1259, %v1273
    %v1276 = vlaneseq
    %v1277 = vshrl.u32 %v1276, 7
    %v1278 = vsub.s32 0, %v1277
    %v1279 = vrot.slane %v1248, %v1278
    %v1280 = vmul.f32 %v1274, %v1279
    %v1281 = vmul.f32 %v1275, %v1279
    %v1282 = vlaneseq
    %v1283 = vshrl.u32 %v1282, 7
    %v1284 = vsub.s32 0, %v1283
    %v1285 = vrot.slane %v1249, %v1284
    %v1286 = vadd.f32 %v1280, %v1285
    %v1287 = vadd.f32 %v1281, %v1285
    %v1288 = vpack.c.bf16 %v1287, %v1286
    %v1289 = vld [vmem:[%s7] sm:$0xf]
    %v1290 = vld [vmem:[%s7 + $0x4] sm:$0xf]
    %v1291 = vld [vmem:[%s7 + $0x8] sm:$0xf]
    %v1292 = vld [vmem:[%s7 + $0xc] sm:$0xf]
    %v1293 = vld [vmem:[%s4 + $0xb] sm:$0x1]
    %v1294 = vlaneseq
    %v1295 = vshrl.u32 %v1294, 7
    %v1296 = vsub.s32 0, %v1295
    %v1297 = vrot.slane %v1293, %v1296
    %v1302 = vunpack.c.l.b16 %v1289
    %v1303 = vunpack.c.l.b16 %v1290
    %v1304 = vunpack.c.l.b16 %v1291
    %v1305 = vunpack.c.l.b16 %v1292
    %v1306 = vpack.c.b16 %v1303, %v1302
    %v1307 = vpack.c.b16 %v1305, %v1304
    %v1311 = vsel %vm243, %v1288, 0
    %1313 = vmatprep.subr.bf16.mxu0 0
    %1314 = vmatpush1.bf16.msra.mxu0 0
    %1315 = vmatprep.subr.bf16.mxu0 0
    %1316 = vmatpush1.bf16.msra.mxu0 0
    %1317 = vmatprep.subr.bf16.mxu0 0
    %1318 = vmatpush1.bf16.msra.mxu0 0
    %1319 = vmatprep.subr.bf16.mxu0 0
    %1320 = vmatpush1.bf16.msra.mxu0 0
    %1321 = vmatprep.subr.bf16.mxu0 0
    %1322 = vmatpush1.bf16.msra.mxu0 0
    %1323 = vmatprep.subr.bf16.mxu0 0
    %1324 = vmatpush1.bf16.msra.mxu0 0
    %1325 = vmatprep.subr.bf16.mxu0 0
    %1326 = vmatpush1.bf16.msra.mxu0 %v1307
    %1327 = vmatprep.subr.bf16.mxu0 0
    %1328 = vmatpush1.bf16.msra.mxu0 %v1306
    %1329 = vmatprep.subr.bf16.mxu0 0
    %1330 = vmatpush2.bf16.msra.mxu0 0
    %1331 = vmatprep.subr.bf16.mxu0 0
    %1332 = vmatpush2.bf16.msra.mxu0 0
    %1333 = vmatprep.subr.bf16.mxu0 0
    %1334 = vmatpush2.bf16.msra.mxu0 0
    %1335 = vmatprep.subr.bf16.mxu0 0
    %1336 = vmatpush2.bf16.msra.mxu0 0
    %1337 = vmatprep.subr.bf16.mxu0 0
    %1338 = vmatpush2.bf16.msra.mxu0 0
    %1339 = vmatprep.subr.bf16.mxu0 0
    %1340 = vmatpush2.bf16.msra.mxu0 0
    %1341 = vmatprep.subr.bf16.mxu0 0
    %1342 = vmatpush2.bf16.msra.mxu0 0
    %1343 = vmatprep.subr.bf16.mxu0 0
    %1344 = vmatpush2.bf16.msra.mxu0 0
    %1345 = vmatprep.mubr.bf16.mxu0 0
    %1346 = vmatmul.mubr.bf16.gmra.mxu0 %v1311
    %v1347 = vpop.f32.mrf.mxu0
    %v1348 = vadd.f32 %v1297, %v1347
    %v1349 = vpop.f32.mrf.mxu0
    %v1350 = vpop.f32.mrf.mxu0
    %v1351 = vadd.f32 %v1297, %v1350
    %v1352 = vpop.f32.mrf.mxu0
    %1353 = vdwg.mxu0
    %v1354 = vmul.f32 %v1348, 0.5
    %v1355 = vmul.f32 %v1351, 0.5
    %v1356 = vmul.f32 %v1348, 0.044715
    %v1357 = vmul.f32 %v1351, 0.044715
    %v1358 = vmul.f32 %v1356, %v1348
    %v1359 = vmul.f32 %v1357, %v1351
    %v1360 = vmul.f32 %v1358, %v1348
    %v1361 = vmul.f32 %v1359, %v1351
    %v1362 = vadd.f32 %v1348, %v1360
    %v1363 = vadd.f32 %v1351, %v1361
    %v1364 = vmul.f32 %v1362, 0.7978846
    %v1365 = vmul.f32 %v1363, 0.7978846
    %v1366 = vtanh.pop %v1364
    %v1367 = vtanh.pop %v1365
    %v1368 = vadd.f32 %v1366, 1.0
    %v1369 = vadd.f32 %v1367, 1.0
    %v1370 = vmul.f32 %v1354, %v1368
    %v1371 = vmul.f32 %v1355, %v1369
    %v1372 = vpack.c.bf16 %v1371, %v1370
    %v1373 = vld [vmem:[%s8] sm:$0xf]
    %v1374 = vld [vmem:[%s8 + $0x4] sm:$0xf]
    %v1375 = vld [vmem:[%s8 + $0x8] sm:$0xf]
    %v1376 = vld [vmem:[%s8 + $0xc] sm:$0xf]
    %v1377 = vld [vmem:[%s8 + $0x10] sm:$0xf]
    %v1378 = vld [vmem:[%s8 + $0x14] sm:$0xf]
    %v1379 = vld [vmem:[%s8 + $0x18] sm:$0xf]
    %v1380 = vld [vmem:[%s8 + $0x1c] sm:$0xf]
    %v1381 = vld [vmem:[%s4 + $0xc] sm:$0x1]
    %v1382 = vlaneseq
    %v1383 = vshrl.u32 %v1382, 7
    %v1384 = vsub.s32 0, %v1383
    %v1385 = vrot.slane %v1381, %v1384
    %v1394 = vunpack.c.l.b16 %v1373
    %v1395 = vunpack.c.l.b16 %v1374
    %v1396 = vunpack.c.l.b16 %v1375
    %v1397 = vunpack.c.l.b16 %v1376
    %v1398 = vunpack.c.l.b16 %v1377
    %v1399 = vunpack.c.l.b16 %v1378
    %v1400 = vunpack.c.l.b16 %v1379
    %v1401 = vunpack.c.l.b16 %v1380
    %v1402 = vpack.c.b16 %v1395, %v1394
    %v1403 = vpack.c.b16 %v1397, %v1396
    %v1404 = vpack.c.b16 %v1399, %v1398
    %v1405 = vpack.c.b16 %v1401, %v1400
    %vm1410 = vcmask 523264
    %v1412 = vsel %vm1410, %v1372, 0
    %1414 = vmatprep.subr.bf16.mxu0 0
    %1415 = vmatpush1.bf16.msra.mxu0 0
    %1416 = vmatprep.subr.bf16.mxu0 0
    %1417 = vmatpush1.bf16.msra.mxu0 0
    %1418 = vmatprep.subr.bf16.mxu0 0
    %1419 = vmatpush1.bf16.msra.mxu0 0
    %1420 = vmatprep.subr.bf16.mxu0 0
    %1421 = vmatpush1.bf16.msra.mxu0 0
    %1422 = vmatprep.subr.bf16.mxu0 0
    %1423 = vmatpush1.bf16.msra.mxu0 %v1405
    %1424 = vmatprep.subr.bf16.mxu0 0
    %1425 = vmatpush1.bf16.msra.mxu0 %v1404
    %1426 = vmatprep.subr.bf16.mxu0 0
    %1427 = vmatpush1.bf16.msra.mxu0 %v1403
    %1428 = vmatprep.subr.bf16.mxu0 0
    %1429 = vmatpush1.bf16.msra.mxu0 %v1402
    %1430 = vmatprep.subr.bf16.mxu0 0
    %1431 = vmatpush2.bf16.msra.mxu0 0
    %1432 = vmatprep.subr.bf16.mxu0 0
    %1433 = vmatpush2.bf16.msra.mxu0 0
    %1434 = vmatprep.subr.bf16.mxu0 0
    %1435 = vmatpush2.bf16.msra.mxu0 0
    %1436 = vmatprep.subr.bf16.mxu0 0
    %1437 = vmatpush2.bf16.msra.mxu0 0
    %1438 = vmatprep.subr.bf16.mxu0 0
    %1439 = vmatpush2.bf16.msra.mxu0 0
    %1440 = vmatprep.subr.bf16.mxu0 0
    %1441 = vmatpush2.bf16.msra.mxu0 0
    %1442 = vmatprep.subr.bf16.mxu0 0
    %1443 = vmatpush2.bf16.msra.mxu0 0
    %1444 = vmatprep.subr.bf16.mxu0 0
    %1445 = vmatpush2.bf16.msra.mxu0 0
    %1446 = vmatprep.mubr.bf16.mxu0 0
    %1447 = vmatmul.mubr.bf16.gmra.mxu0 %v1412
    %v1448 = vpop.f32.mrf.mxu0
    %v1449 = vadd.f32 %v1385, %v1448
    %v1450 = vpop.f32.mrf.mxu0
    %v1451 = vpop.f32.mrf.mxu0
    %v1452 = vadd.f32 %v1385, %v1451
    %v1453 = vpop.f32.mrf.mxu0
    %1454 = vdwg.mxu0
    %v1455 = vadd.f32 %v1449, %v1286
    %v1456 = vadd.f32 %v1452, %v1287
    %v1457 = vld [vmem:[%s4 + $0xd] sm:$0x1]
    %v1458 = vld [vmem:[%s4 + $0xe] sm:$0x1]
    %v1459 = vsel %vm243, %v1455, 0.0
    %1460 = vadd.xlane.f32.xlu0 %v1459
    %v1461 = vpop.xlane.xlu0 %1460
    %v1462 = vsel %vm243, %v1456, 0.0
    %1463 = vadd.xlane.f32.xlu0 %v1462
    %v1464 = vpop.xlane.xlu0 %1463
    %v1465 = vmul.f32 %v1461, %v250
    %v1466 = vmul.f32 %v1464, %v250
    %v1467 = vsub.f32 %v1455, %v1465
    %v1468 = vsub.f32 %v1456, %v1466
    %v1469 = vmul.f32 %v1467, %v1467
    %v1470 = vmul.f32 %v1468, %v1468
    %v1471 = vsel %vm243, %v1469, 0.0
    %1472 = vadd.xlane.f32.xlu0 %v1471
    %v1473 = vpop.xlane.xlu0 %1472
    %v1474 = vsel %vm243, %v1470, 0.0
    %1475 = vadd.xlane.f32.xlu0 %v1474
    %v1476 = vpop.xlane.xlu0 %1475
    %v1477 = vmul.f32 %v1473, %v250
    %v1478 = vmul.f32 %v1476, %v250
    %v1479 = vadd.f32 %v1477, 1e-12
    %v1480 = vadd.f32 %v1478, 1e-12
    %v1481 = vrsqrt.pop %v1479
    %v1482 = vrsqrt.pop %v1480
    %v1483 = vmul.f32 %v1467, %v1481
    %v1484 = vmul.f32 %v1468, %v1482
    %v1485 = vlaneseq
    %v1486 = vshrl.u32 %v1485, 7
    %v1487 = vsub.s32 0, %v1486
    %v1488 = vrot.slane %v1457, %v1487
    %v1489 = vmul.f32 %v1483, %v1488
    %v1490 = vmul.f32 %v1484, %v1488
    %v1491 = vlaneseq
    %v1492 = vshrl.u32 %v1491, 7
    %v1493 = vsub.s32 0, %v1492
    %v1494 = vrot.slane %v1458, %v1493
    %v1495 = vadd.f32 %v1489, %v1494
    %v1496 = vadd.f32 %v1490, %v1494
    %v1497 = vpack.c.bf16 %v1496, %v1495
    %s1498 = scalar_lea.vmem %s5, 96
    %v1499 = vld [vmem:[%s1498] sm:$0xf]
    %v1500 = vld [vmem:[%s1498 + $0x4] sm:$0xf]
    %v1501 = vld [vmem:[%s1498 + $0x8] sm:$0xf]
    %v1502 = vld [vmem:[%s1498 + $0xc] sm:$0xf]
    %v1503 = vld [vmem:[%s4 + $0xf] sm:$0x1]
    %v1504 = vlaneseq
    %v1505 = vshrl.u32 %v1504, 7
    %v1506 = vsub.s32 0, %v1505
    %v1507 = vrot.slane %v1503, %v1506
    %v1512 = vunpack.c.l.b16 %v1499
    %v1513 = vunpack.c.l.b16 %v1500
    %v1514 = vunpack.c.l.b16 %v1501
    %v1515 = vunpack.c.l.b16 %v1502
    %v1516 = vpack.c.b16 %v1513, %v1512
    %v1517 = vpack.c.b16 %v1515, %v1514
    %v1521 = vsel %vm243, %v1497, 0
    %1523 = vmatprep.subr.bf16.mxu0 0
    %1524 = vmatpush1.bf16.msra.mxu0 0
    %1525 = vmatprep.subr.bf16.mxu0 0
    %1526 = vmatpush1.bf16.msra.mxu0 0
    %1527 = vmatprep.subr.bf16.mxu0 0
    %1528 = vmatpush1.bf16.msra.mxu0 0
    %1529 = vmatprep.subr.bf16.mxu0 0
    %1530 = vmatpush1.bf16.msra.mxu0 0
    %1531 = vmatprep.subr.bf16.mxu0 0
    %1532 = vmatpush1.bf16.msra.mxu0 0
    %1533 = vmatprep.subr.bf16.mxu0 0
    %1534 = vmatpush1.bf16.msra.mxu0 0
    %1535 = vmatprep.subr.bf16.mxu0 0
    %1536 = vmatpush1.bf16.msra.mxu0 %v1517
    %1537 = vmatprep.subr.bf16.mxu0 0
    %1538 = vmatpush1.bf16.msra.mxu0 %v1516
    %1539 = vmatprep.subr.bf16.mxu0 0
    %1540 = vmatpush2.bf16.msra.mxu0 0
    %1541 = vmatprep.subr.bf16.mxu0 0
    %1542 = vmatpush2.bf16.msra.mxu0 0
    %1543 = vmatprep.subr.bf16.mxu0 0
    %1544 = vmatpush2.bf16.msra.mxu0 0
    %1545 = vmatprep.subr.bf16.mxu0 0
    %1546 = vmatpush2.bf16.msra.mxu0 0
    %1547 = vmatprep.subr.bf16.mxu0 0
    %1548 = vmatpush2.bf16.msra.mxu0 0
    %1549 = vmatprep.subr.bf16.mxu0 0
    %1550 = vmatpush2.bf16.msra.mxu0 0
    %1551 = vmatprep.subr.bf16.mxu0 0
    %1552 = vmatpush2.bf16.msra.mxu0 0
    %1553 = vmatprep.subr.bf16.mxu0 0
    %1554 = vmatpush2.bf16.msra.mxu0 0
    %1555 = vmatprep.mubr.bf16.mxu0 0
    %1556 = vmatmul.mubr.bf16.gmra.mxu0 %v1521
    %v1557 = vpop.f32.mrf.mxu0
    %v1558 = vadd.f32 %v1507, %v1557
    %v1559 = vpop.f32.mrf.mxu0
    %v1560 = vpop.f32.mrf.mxu0
    %v1561 = vadd.f32 %v1507, %v1560
    %v1562 = vpop.f32.mrf.mxu0
    %1563 = vdwg.mxu0
    %s1564 = scalar_lea.vmem %s5, 128
    %v1565 = vld [vmem:[%s1564] sm:$0xf]
    %v1566 = vld [vmem:[%s1564 + $0x4] sm:$0xf]
    %v1567 = vld [vmem:[%s1564 + $0x8] sm:$0xf]
    %v1568 = vld [vmem:[%s1564 + $0xc] sm:$0xf]
    %v1569 = vld [vmem:[%s4 + $0x11] sm:$0x1]
    %v1570 = vlaneseq
    %v1571 = vshrl.u32 %v1570, 7
    %v1572 = vsub.s32 0, %v1571
    %v1573 = vrot.slane %v1569, %v1572
    %v1578 = vunpack.c.l.b16 %v1565
    %v1579 = vunpack.c.l.b16 %v1566
    %v1580 = vunpack.c.l.b16 %v1567
    %v1581 = vunpack.c.l.b16 %v1568
    %v1582 = vpack.c.b16 %v1579, %v1578
    %v1583 = vpack.c.b16 %v1581, %v1580
    %1586 = vmatprep.subr.bf16.mxu0 0
    %1587 = vmatpush1.bf16.msra.mxu0 0
    %1588 = vmatprep.subr.bf16.mxu0 0
    %1589 = vmatpush1.bf16.msra.mxu0 0
    %1590 = vmatprep.subr.bf16.mxu0 0
    %1591 = vmatpush1.bf16.msra.mxu0 0
    %1592 = vmatprep.subr.bf16.mxu0 0
    %1593 = vmatpush1.bf16.msra.mxu0 0
    %1594 = vmatprep.subr.bf16.mxu0 0
    %1595 = vmatpush1.bf16.msra.mxu0 0
    %1596 = vmatprep.subr.bf16.mxu0 0
    %1597 = vmatpush1.bf16.msra.mxu0 0
    %1598 = vmatprep.subr.bf16.mxu0 0
    %1599 = vmatpush1.bf16.msra.mxu0 %v1583
    %1600 = vmatprep.subr.bf16.mxu0 0
    %1601 = vmatpush1.bf16.msra.mxu0 %v1582
    %1602 = vmatprep.subr.bf16.mxu0 0
    %1603 = vmatpush2.bf16.msra.mxu0 0
    %1604 = vmatprep.subr.bf16.mxu0 0
    %1605 = vmatpush2.bf16.msra.mxu0 0
    %1606 = vmatprep.subr.bf16.mxu0 0
    %1607 = vmatpush2.bf16.msra.mxu0 0
    %1608 = vmatprep.subr.bf16.mxu0 0
    %1609 = vmatpush2.bf16.msra.mxu0 0
    %1610 = vmatprep.subr.bf16.mxu0 0
    %1611 = vmatpush2.bf16.msra.mxu0 0
    %1612 = vmatprep.subr.bf16.mxu0 0
    %1613 = vmatpush2.bf16.msra.mxu0 0
    %1614 = vmatprep.subr.bf16.mxu0 0
    %1615 = vmatpush2.bf16.msra.mxu0 0
    %1616 = vmatprep.subr.bf16.mxu0 0
    %1617 = vmatpush2.bf16.msra.mxu0 0
    %1618 = vmatprep.mubr.bf16.mxu0 0
    %1619 = vmatmul.mubr.bf16.gmra.mxu0 %v1521
    %v1620 = vpop.f32.mrf.mxu0
    %v1621 = vadd.f32 %v1573, %v1620
    %v1622 = vpop.f32.mrf.mxu0
    %v1623 = vpop.f32.mrf.mxu0
    %v1624 = vadd.f32 %v1573, %v1623
    %v1625 = vpop.f32.mrf.mxu0
    %1626 = vdwg.mxu0
    %s1627 = scalar_lea.vmem %s5, 160
    %v1628 = vld [vmem:[%s1627] sm:$0xf]
    %v1629 = vld [vmem:[%s1627 + $0x4] sm:$0xf]
    %v1630 = vld [vmem:[%s1627 + $0x8] sm:$0xf]
    %v1631 = vld [vmem:[%s1627 + $0xc] sm:$0xf]
    %v1632 = vld [vmem:[%s4 + $0x13] sm:$0x1]
    %v1633 = vlaneseq
    %v1634 = vshrl.u32 %v1633, 7
    %v1635 = vsub.s32 0, %v1634
    %v1636 = vrot.slane %v1632, %v1635
    %v1641 = vunpack.c.l.b16 %v1628
    %v1642 = vunpack.c.l.b16 %v1629
    %v1643 = vunpack.c.l.b16 %v1630
    %v1644 = vunpack.c.l.b16 %v1631
    %v1645 = vpack.c.b16 %v1642, %v1641
    %v1646 = vpack.c.b16 %v1644, %v1643
    %1649 = vmatprep.subr.bf16.mxu0 0
    %1650 = vmatpush1.bf16.msra.mxu0 0
    %1651 = vmatprep.subr.bf16.mxu0 0
    %1652 = vmatpush1.bf16.msra.mxu0 0
    %1653 = vmatprep.subr.bf16.mxu0 0
    %1654 = vmatpush1.bf16.msra.mxu0 0
    %1655 = vmatprep.subr.bf16.mxu0 0
    %1656 = vmatpush1.bf16.msra.mxu0 0
    %1657 = vmatprep.subr.bf16.mxu0 0
    %1658 = vmatpush1.bf16.msra.mxu0 0
    %1659 = vmatprep.subr.bf16.mxu0 0
    %1660 = vmatpush1.bf16.msra.mxu0 0
    %1661 = vmatprep.subr.bf16.mxu0 0
    %1662 = vmatpush1.bf16.msra.mxu0 %v1646
    %1663 = vmatprep.subr.bf16.mxu0 0
    %1664 = vmatpush1.bf16.msra.mxu0 %v1645
    %1665 = vmatprep.subr.bf16.mxu0 0
    %1666 = vmatpush2.bf16.msra.mxu0 0
    %1667 = vmatprep.subr.bf16.mxu0 0
    %1668 = vmatpush2.bf16.msra.mxu0 0
    %1669 = vmatprep.subr.bf16.mxu0 0
    %1670 = vmatpush2.bf16.msra.mxu0 0
    %1671 = vmatprep.subr.bf16.mxu0 0
    %1672 = vmatpush2.bf16.msra.mxu0 0
    %1673 = vmatprep.subr.bf16.mxu0 0
    %1674 = vmatpush2.bf16.msra.mxu0 0
    %1675 = vmatprep.subr.bf16.mxu0 0
    %1676 = vmatpush2.bf16.msra.mxu0 0
    %1677 = vmatprep.subr.bf16.mxu0 0
    %1678 = vmatpush2.bf16.msra.mxu0 0
    %1679 = vmatprep.subr.bf16.mxu0 0
    %1680 = vmatpush2.bf16.msra.mxu0 0
    %1681 = vmatprep.mubr.bf16.mxu0 0
    %1682 = vmatmul.mubr.bf16.gmra.mxu0 %v1521
    %v1683 = vpop.f32.mrf.mxu0
    %v1684 = vadd.f32 %v1636, %v1683
    %v1685 = vpop.f32.mrf.mxu0
    %v1686 = vpop.f32.mrf.mxu0
    %v1687 = vadd.f32 %v1636, %v1686
    %v1688 = vpop.f32.mrf.mxu0
    %1689 = vdwg.mxu0
    %v1690 = vpack.c.bf16 %v1558, %v1558
    %v1691 = vpack.c.bf16 %v1561, %v1561
    %v1692 = vpack.c.bf16 %v1621, %v1621
    %v1693 = vpack.c.bf16 %v1624, %v1624
    %v1694 = vpack.c.bf16 %v1684, %v1684
    %v1695 = vpack.c.bf16 %v1687, %v1687
    %v1697 = vsel %vm518, %v1690, 0
    %v1700 = vsel %vm518, %v1692, 0
    %1702 = vmatprep.subr.bf16.mxu0 0
    %1703 = vmatpush1.bf16.xpose.msra.mxu0 0
    %1704 = vmatprep.subr.bf16.mxu0 0
    %1705 = vmatpush1.bf16.xpose.msra.mxu0 0
    %1706 = vmatprep.subr.bf16.mxu0 0
    %1707 = vmatpush1.bf16.xpose.msra.mxu0 0
    %1708 = vmatprep.subr.bf16.mxu0 0
    %1709 = vmatpush1.bf16.xpose.msra.mxu0 0
    %1710 = vmatprep.subr.bf16.mxu0 0
    %1711 = vmatpush1.bf16.xpose.msra.mxu0 0
    %1712 = vmatprep.subr.bf16.mxu0 0
    %1713 = vmatpush1.bf16.xpose.msra.mxu0 0
    %1714 = vmatprep.subr.bf16.mxu0 0
    %1715 = vmatpush1.bf16.xpose.msra.mxu0 0
    %1716 = vmatprep.subr.bf16.mxu0 0
    %1717 = vmatpush1.bf16.xpose.msra.mxu0 %v1700
    %1718 = vmatprep.subr.bf16.mxu0 0
    %1719 = vmatpush2.bf16.xpose.msra.mxu0 0
    %1720 = vmatprep.subr.bf16.mxu0 0
    %1721 = vmatpush2.bf16.xpose.msra.mxu0 0
    %1722 = vmatprep.subr.bf16.mxu0 0
    %1723 = vmatpush2.bf16.xpose.msra.mxu0 0
    %1724 = vmatprep.subr.bf16.mxu0 0
    %1725 = vmatpush2.bf16.xpose.msra.mxu0 0
    %1726 = vmatprep.subr.bf16.mxu0 0
    %1727 = vmatpush2.bf16.xpose.msra.mxu0 0
    %1728 = vmatprep.subr.bf16.mxu0 0
    %1729 = vmatpush2.bf16.xpose.msra.mxu0 0
    %1730 = vmatprep.subr.bf16.mxu0 0
    %1731 = vmatpush2.bf16.xpose.msra.mxu0 0
    %1732 = vmatprep.subr.bf16.mxu0 0
    %1733 = vmatpush2.bf16.xpose.msra.mxu0 0
    %1734 = vmatprep.mubr.bf16.mxu0 0
    %1735 = vmatmul.mubr.bf16.gmra.mxu0 %v1697
    %v1736 = vpop.f32.mrf.mxu0
    %v1737 = vadd.f32 %v511, %v1736
    %v1738 = vpop.f32.mrf.mxu0
    %v1739 = vpop.f32.mrf.mxu0
    %v1740 = vpop.f32.mrf.mxu0
    %1741 = vdwg.mxu0
    %v1743 = vsel %vm518, %v1691, 0
    %v1746 = vsel %vm518, %v1693, 0
    %1748 = vmatprep.subr.bf16.mxu0 0
    %1749 = vmatpush1.bf16.xpose.msra.mxu0 0
    %1750 = vmatprep.subr.bf16.mxu0 0
    %1751 = vmatpush1.bf16.xpose.msra.mxu0 0
    %1752 = vmatprep.subr.bf16.mxu0 0
    %1753 = vmatpush1.bf16.xpose.msra.mxu0 0
    %1754 = vmatprep.subr.bf16.mxu0 0
    %1755 = vmatpush1.bf16.xpose.msra.mxu0 0
    %1756 = vmatprep.subr.bf16.mxu0 0
    %1757 = vmatpush1.bf16.xpose.msra.mxu0 0
    %1758 = vmatprep.subr.bf16.mxu0 0
    %1759 = vmatpush1.bf16.xpose.msra.mxu0 0
    %1760 = vmatprep.subr.bf16.mxu0 0
    %1761 = vmatpush1.bf16.xpose.msra.mxu0 0
    %1762 = vmatprep.subr.bf16.mxu0 0
    %1763 = vmatpush1.bf16.xpose.msra.mxu0 %v1746
    %1764 = vmatprep.subr.bf16.mxu0 0
    %1765 = vmatpush2.bf16.xpose.msra.mxu0 0
    %1766 = vmatprep.subr.bf16.mxu0 0
    %1767 = vmatpush2.bf16.xpose.msra.mxu0 0
    %1768 = vmatprep.subr.bf16.mxu0 0
    %1769 = vmatpush2.bf16.xpose.msra.mxu0 0
    %1770 = vmatprep.subr.bf16.mxu0 0
    %1771 = vmatpush2.bf16.xpose.msra.mxu0 0
    %1772 = vmatprep.subr.bf16.mxu0 0
    %1773 = vmatpush2.bf16.xpose.msra.mxu0 0
    %1774 = vmatprep.subr.bf16.mxu0 0
    %1775 = vmatpush2.bf16.xpose.msra.mxu0 0
    %1776 = vmatprep.subr.bf16.mxu0 0
    %1777 = vmatpush2.bf16.xpose.msra.mxu0 0
    %1778 = vmatprep.subr.bf16.mxu0 0
    %1779 = vmatpush2.bf16.xpose.msra.mxu0 0
    %1780 = vmatprep.mubr.bf16.mxu0 0
    %1781 = vmatmul.mubr.bf16.gmra.mxu0 %v1743
    %v1782 = vpop.f32.mrf.mxu0
    %v1783 = vadd.f32 %v515, %v1782
    %v1784 = vpop.f32.mrf.mxu0
    %v1785 = vpop.f32.mrf.mxu0
    %v1786 = vpop.f32.mrf.mxu0
    %1787 = vdwg.mxu0
    %v1788 = vsel %vm611, %v1737, -inf
    %1789 = vmax.xlane.f32.xlu0 %v1788
    %v1790 = vpop.xlane.xlu0 %1789
    %v1791 = vsel %vm611, %v1783, -inf
    %1792 = vmax.xlane.f32.xlu0 %v1791
    %v1793 = vpop.xlane.xlu0 %1792
    %v1794 = vsub.f32 %v1737, %v1790
    %v1795 = vsub.f32 %v1783, %v1793
    %v1796 = vmul.f32 %v1794, 1.442695
    %v1797 = vpow.pop %v1796
    %v1798 = vmul.f32 %v1795, 1.442695
    %v1799 = vpow.pop %v1798
    %v1800 = vsel %vm611, %v1797, 0.0
    %1801 = vadd.xlane.f32.xlu0 %v1800
    %v1802 = vpop.xlane.xlu0 %1801
    %v1803 = vsel %vm611, %v1799, 0.0
    %1804 = vadd.xlane.f32.xlu0 %v1803
    %v1805 = vpop.xlane.xlu0 %1804
    %v1806 = vrcp.pop %v1802
    %v1807 = vrcp.pop %v1805
    %v1808 = vmul.f32 %v1797, %v1806
    %v1809 = vmul.f32 %v1799, %v1807
    %v1810 = vpack.c.bf16 %v1808, %v1808
    %v1811 = vpack.c.bf16 %v1809, %v1809
    %v1813 = vsel %vm611, %v1810, 0
    %v1816 = vsel %vm639, %v1694, 0
    %1818 = vmatprep.subr.bf16.mxu0 0
    %1819 = vmatpush1.bf16.msra.mxu0 0
    %1820 = vmatprep.subr.bf16.mxu0 0
    %1821 = vmatpush1.bf16.msra.mxu0 0
    %1822 = vmatprep.subr.bf16.mxu0 0
    %1823 = vmatpush1.bf16.msra.mxu0 0
    %1824 = vmatprep.subr.bf16.mxu0 0
    %1825 = vmatpush1.bf16.msra.mxu0 0
    %1826 = vmatprep.subr.bf16.mxu0 0
    %1827 = vmatpush1.bf16.msra.mxu0 0
    %1828 = vmatprep.subr.bf16.mxu0 0
    %1829 = vmatpush1.bf16.msra.mxu0 0
    %1830 = vmatprep.subr.bf16.mxu0 0
    %1831 = vmatpush1.bf16.msra.mxu0 0
    %1832 = vmatprep.subr.bf16.mxu0 0
    %1833 = vmatpush1.bf16.msra.mxu0 %v1816
    %1834 = vmatprep.subr.bf16.mxu0 0
    %1835 = vmatpush2.bf16.msra.mxu0 0
    %1836 = vmatprep.subr.bf16.mxu0 0
    %1837 = vmatpush2.bf16.msra.mxu0 0
    %1838 = vmatprep.subr.bf16.mxu0 0
    %1839 = vmatpush2.bf16.msra.mxu0 0
    %1840 = vmatprep.subr.bf16.mxu0 0
    %1841 = vmatpush2.bf16.msra.mxu0 0
    %1842 = vmatprep.subr.bf16.mxu0 0
    %1843 = vmatpush2.bf16.msra.mxu0 0
    %1844 = vmatprep.subr.bf16.mxu0 0
    %1845 = vmatpush2.bf16.msra.mxu0 0
    %1846 = vmatprep.subr.bf16.mxu0 0
    %1847 = vmatpush2.bf16.msra.mxu0 0
    %1848 = vmatprep.subr.bf16.mxu0 0
    %1849 = vmatpush2.bf16.msra.mxu0 0
    %1850 = vmatprep.mubr.bf16.mxu0 0
    %1851 = vmatmul.mubr.bf16.gmra.mxu0 %v1813
    %v1852 = vpop.f32.mrf.mxu0
    %v1853 = vadd.f32 0.0, %v1852
    %v1854 = vpop.f32.mrf.mxu0
    %v1855 = vpop.f32.mrf.mxu0
    %v1856 = vpop.f32.mrf.mxu0
    %1857 = vdwg.mxu0
    %v1859 = vsel %vm611, %v1811, 0
    %v1862 = vsel %vm639, %v1695, 0
    %1864 = vmatprep.subr.bf16.mxu0 0
    %1865 = vmatpush1.bf16.msra.mxu0 0
    %1866 = vmatprep.subr.bf16.mxu0 0
    %1867 = vmatpush1.bf16.msra.mxu0 0
    %1868 = vmatprep.subr.bf16.mxu0 0
    %1869 = vmatpush1.bf16.msra.mxu0 0
    %1870 = vmatprep.subr.bf16.mxu0 0
    %1871 = vmatpush1.bf16.msra.mxu0 0
    %1872 = vmatprep.subr.bf16.mxu0 0
    %1873 = vmatpush1.bf16.msra.mxu0 0
    %1874 = vmatprep.subr.bf16.mxu0 0
    %1875 = vmatpush1.bf16.msra.mxu0 0
    %1876 = vmatprep.subr.bf16.mxu0 0
    %1877 = vmatpush1.bf16.msra.mxu0 0
    %1878 = vmatprep.subr.bf16.mxu0 0
    %1879 = vmatpush1.bf16.msra.mxu0 %v1862
    %1880 = vmatprep.subr.bf16.mxu0 0
    %1881 = vmatpush2.bf16.msra.mxu0 0
    %1882 = vmatprep.subr.bf16.mxu0 0
    %1883 = vmatpush2.bf16.msra.mxu0 0
    %1884 = vmatprep.subr.bf16.mxu0 0
    %1885 = vmatpush2.bf16.msra.mxu0 0
    %1886 = vmatprep.subr.bf16.mxu0 0
    %1887 = vmatpush2.bf16.msra.mxu0 0
    %1888 = vmatprep.subr.bf16.mxu0 0
    %1889 = vmatpush2.bf16.msra.mxu0 0
    %1890 = vmatprep.subr.bf16.mxu0 0
    %1891 = vmatpush2.bf16.msra.mxu0 0
    %1892 = vmatprep.subr.bf16.mxu0 0
    %1893 = vmatpush2.bf16.msra.mxu0 0
    %1894 = vmatprep.subr.bf16.mxu0 0
    %1895 = vmatpush2.bf16.msra.mxu0 0
    %1896 = vmatprep.mubr.bf16.mxu0 0
    %1897 = vmatmul.mubr.bf16.gmra.mxu0 %v1859
    %v1898 = vpop.f32.mrf.mxu0
    %v1899 = vadd.f32 0.0, %v1898
    %v1900 = vpop.f32.mrf.mxu0
    %v1901 = vpop.f32.mrf.mxu0
    %v1902 = vpop.f32.mrf.mxu0
    %1903 = vdwg.mxu0
    %v1904 = vpack.c.bf16 %v1899, %v1853
    %s1905 = scalar_lea.vmem %s6, 16
    %v1906 = vld [vmem:[%s1905] sm:$0xf]
    %v1907 = vld [vmem:[%s1905 + $0x4] sm:$0xf]
    %s1908 = scalar_lea.vmem %s5, 112
    %v1909 = vld [vmem:[%s1908] sm:$0xf]
    %v1910 = vld [vmem:[%s1908 + $0x4] sm:$0xf]
    %v1911 = vld [vmem:[%s1908 + $0x8] sm:$0xf]
    %v1912 = vld [vmem:[%s1908 + $0xc] sm:$0xf]
    %v1913 = vld [vmem:[%s4 + $0x10] sm:$0x1]
    %v1914 = vlaneseq
    %v1915 = vshrl.u32 %v1914, 7
    %v1916 = vsub.s32 0, %v1915
    %v1917 = vrot.slane %v1913, %v1916
    %v1922 = vunpack.c.l.b16 %v1909
    %v1923 = vunpack.c.l.b16 %v1910
    %v1924 = vunpack.c.l.b16 %v1911
    %v1925 = vunpack.c.l.b16 %v1912
    %v1926 = vpack.c.b16 %v1923, %v1922
    %v1927 = vpack.c.b16 %v1925, %v1924
    %1930 = vmatprep.subr.bf16.mxu0 0
    %1931 = vmatpush1.bf16.msra.mxu0 0
    %1932 = vmatprep.subr.bf16.mxu0 0
    %1933 = vmatpush1.bf16.msra.mxu0 0
    %1934 = vmatprep.subr.bf16.mxu0 0
    %1935 = vmatpush1.bf16.msra.mxu0 0
    %1936 = vmatprep.subr.bf16.mxu0 0
    %1937 = vmatpush1.bf16.msra.mxu0 0
    %1938 = vmatprep.subr.bf16.mxu0 0
    %1939 = vmatpush1.bf16.msra.mxu0 0
    %1940 = vmatprep.subr.bf16.mxu0 0
    %1941 = vmatpush1.bf16.msra.mxu0 0
    %1942 = vmatprep.subr.bf16.mxu0 0
    %1943 = vmatpush1.bf16.msra.mxu0 %v1927
    %1944 = vmatprep.subr.bf16.mxu0 0
    %1945 = vmatpush1.bf16.msra.mxu0 %v1926
    %1946 = vmatprep.subr.bf16.mxu0 0
    %1947 = vmatpush2.bf16.msra.mxu0 0
    %1948 = vmatprep.subr.bf16.mxu0 0
    %1949 = vmatpush2.bf16.msra.mxu0 0
    %1950 = vmatprep.subr.bf16.mxu0 0
    %1951 = vmatpush2.bf16.msra.mxu0 0
    %1952 = vmatprep.subr.bf16.mxu0 0
    %1953 = vmatpush2.bf16.msra.mxu0 0
    %1954 = vmatprep.subr.bf16.mxu0 0
    %1955 = vmatpush2.bf16.msra.mxu0 0
    %1956 = vmatprep.subr.bf16.mxu0 0
    %1957 = vmatpush2.bf16.msra.mxu0 0
    %1958 = vmatprep.subr.bf16.mxu0 0
    %1959 = vmatpush2.bf16.msra.mxu0 0
    %1960 = vmatprep.subr.bf16.mxu0 0
    %1961 = vmatpush2.bf16.msra.mxu0 0
    %1962 = vmatprep.mubr.bf16.mxu0 0
    %1963 = vmatmul.mubr.bf16.gmra.mxu0 %v1521
    %v1964 = vpop.f32.mrf.mxu0
    %v1965 = vadd.f32 %v1917, %v1964
    %v1966 = vpop.f32.mrf.mxu0
    %v1967 = vpop.f32.mrf.mxu0
    %v1968 = vadd.f32 %v1917, %v1967
    %v1969 = vpop.f32.mrf.mxu0
    %1970 = vdwg.mxu0
    %s1971 = scalar_lea.vmem %s5, 144
    %v1972 = vld [vmem:[%s1971] sm:$0xf]
    %v1973 = vld [vmem:[%s1971 + $0x4] sm:$0xf]
    %v1974 = vld [vmem:[%s1971 + $0x8] sm:$0xf]
    %v1975 = vld [vmem:[%s1971 + $0xc] sm:$0xf]
    %v1976 = vld [vmem:[%s4 + $0x12] sm:$0x1]
    %v1977 = vlaneseq
    %v1978 = vshrl.u32 %v1977, 7
    %v1979 = vsub.s32 0, %v1978
    %v1980 = vrot.slane %v1976, %v1979
    %v1985 = vunpack.c.l.b16 %v1972
    %v1986 = vunpack.c.l.b16 %v1973
    %v1987 = vunpack.c.l.b16 %v1974
    %v1988 = vunpack.c.l.b16 %v1975
    %v1989 = vpack.c.b16 %v1986, %v1985
    %v1990 = vpack.c.b16 %v1988, %v1987
    %1993 = vmatprep.subr.bf16.mxu0 0
    %1994 = vmatpush1.bf16.msra.mxu0 0
    %1995 = vmatprep.subr.bf16.mxu0 0
    %1996 = vmatpush1.bf16.msra.mxu0 0
    %1997 = vmatprep.subr.bf16.mxu0 0
    %1998 = vmatpush1.bf16.msra.mxu0 0
    %1999 = vmatprep.subr.bf16.mxu0 0
    %2000 = vmatpush1.bf16.msra.mxu0 0
    %2001 = vmatprep.subr.bf16.mxu0 0
    %2002 = vmatpush1.bf16.msra.mxu0 0
    %2003 = vmatprep.subr.bf16.mxu0 0
    %2004 = vmatpush1.bf16.msra.mxu0 0
    %2005 = vmatprep.subr.bf16.mxu0 0
    %2006 = vmatpush1.bf16.msra.mxu0 %v1990
    %2007 = vmatprep.subr.bf16.mxu0 0
    %2008 = vmatpush1.bf16.msra.mxu0 %v1989
    %2009 = vmatprep.subr.bf16.mxu0 0
    %2010 = vmatpush2.bf16.msra.mxu0 0
    %2011 = vmatprep.subr.bf16.mxu0 0
    %2012 = vmatpush2.bf16.msra.mxu0 0
    %2013 = vmatprep.subr.bf16.mxu0 0
    %2014 = vmatpush2.bf16.msra.mxu0 0
    %2015 = vmatprep.subr.bf16.mxu0 0
    %2016 = vmatpush2.bf16.msra.mxu0 0
    %2017 = vmatprep.subr.bf16.mxu0 0
    %2018 = vmatpush2.bf16.msra.mxu0 0
    %2019 = vmatprep.subr.bf16.mxu0 0
    %2020 = vmatpush2.bf16.msra.mxu0 0
    %2021 = vmatprep.subr.bf16.mxu0 0
    %2022 = vmatpush2.bf16.msra.mxu0 0
    %2023 = vmatprep.subr.bf16.mxu0 0
    %2024 = vmatpush2.bf16.msra.mxu0 0
    %2025 = vmatprep.mubr.bf16.mxu0 0
    %2026 = vmatmul.mubr.bf16.gmra.mxu0 %v1521
    %v2027 = vpop.f32.mrf.mxu0
    %v2028 = vadd.f32 %v1980, %v2027
    %v2029 = vpop.f32.mrf.mxu0
    %v2030 = vpop.f32.mrf.mxu0
    %v2031 = vadd.f32 %v1980, %v2030
    %v2032 = vpop.f32.mrf.mxu0
    %2033 = vdwg.mxu0
    %s2034 = scalar_lea.vmem %s5, 176
    %v2035 = vld [vmem:[%s2034] sm:$0xf]
    %v2036 = vld [vmem:[%s2034 + $0x4] sm:$0xf]
    %v2037 = vld [vmem:[%s2034 + $0x8] sm:$0xf]
    %v2038 = vld [vmem:[%s2034 + $0xc] sm:$0xf]
    %v2039 = vld [vmem:[%s4 + $0x14] sm:$0x1]
    %v2040 = vlaneseq
    %v2041 = vshrl.u32 %v2040, 7
    %v2042 = vsub.s32 0, %v2041
    %v2043 = vrot.slane %v2039, %v2042
    %v2048 = vunpack.c.l.b16 %v2035
    %v2049 = vunpack.c.l.b16 %v2036
    %v2050 = vunpack.c.l.b16 %v2037
    %v2051 = vunpack.c.l.b16 %v2038
    %v2052 = vpack.c.b16 %v2049, %v2048
    %v2053 = vpack.c.b16 %v2051, %v2050
    %2056 = vmatprep.subr.bf16.mxu0 0
    %2057 = vmatpush1.bf16.msra.mxu0 0
    %2058 = vmatprep.subr.bf16.mxu0 0
    %2059 = vmatpush1.bf16.msra.mxu0 0
    %2060 = vmatprep.subr.bf16.mxu0 0
    %2061 = vmatpush1.bf16.msra.mxu0 0
    %2062 = vmatprep.subr.bf16.mxu0 0
    %2063 = vmatpush1.bf16.msra.mxu0 0
    %2064 = vmatprep.subr.bf16.mxu0 0
    %2065 = vmatpush1.bf16.msra.mxu0 0
    %2066 = vmatprep.subr.bf16.mxu0 0
    %2067 = vmatpush1.bf16.msra.mxu0 0
    %2068 = vmatprep.subr.bf16.mxu0 0
    %2069 = vmatpush1.bf16.msra.mxu0 %v2053
    %2070 = vmatprep.subr.bf16.mxu0 0
    %2071 = vmatpush1.bf16.msra.mxu0 %v2052
    %2072 = vmatprep.subr.bf16.mxu0 0
    %2073 = vmatpush2.bf16.msra.mxu0 0
    %2074 = vmatprep.subr.bf16.mxu0 0
    %2075 = vmatpush2.bf16.msra.mxu0 0
    %2076 = vmatprep.subr.bf16.mxu0 0
    %2077 = vmatpush2.bf16.msra.mxu0 0
    %2078 = vmatprep.subr.bf16.mxu0 0
    %2079 = vmatpush2.bf16.msra.mxu0 0
    %2080 = vmatprep.subr.bf16.mxu0 0
    %2081 = vmatpush2.bf16.msra.mxu0 0
    %2082 = vmatprep.subr.bf16.mxu0 0
    %2083 = vmatpush2.bf16.msra.mxu0 0
    %2084 = vmatprep.subr.bf16.mxu0 0
    %2085 = vmatpush2.bf16.msra.mxu0 0
    %2086 = vmatprep.subr.bf16.mxu0 0
    %2087 = vmatpush2.bf16.msra.mxu0 0
    %2088 = vmatprep.mubr.bf16.mxu0 0
    %2089 = vmatmul.mubr.bf16.gmra.mxu0 %v1521
    %v2090 = vpop.f32.mrf.mxu0
    %v2091 = vadd.f32 %v2043, %v2090
    %v2092 = vpop.f32.mrf.mxu0
    %v2093 = vpop.f32.mrf.mxu0
    %v2094 = vadd.f32 %v2043, %v2093
    %v2095 = vpop.f32.mrf.mxu0
    %2096 = vdwg.mxu0
    %v2097 = vpack.c.bf16 %v1965, %v1965
    %v2098 = vpack.c.bf16 %v1968, %v1968
    %v2099 = vpack.c.bf16 %v2028, %v2028
    %v2100 = vpack.c.bf16 %v2031, %v2031
    %v2101 = vpack.c.bf16 %v2091, %v2091
    %v2102 = vpack.c.bf16 %v2094, %v2094
    %v2104 = vsel %vm518, %v2097, 0
    %v2107 = vsel %vm518, %v2099, 0
    %2109 = vmatprep.subr.bf16.mxu0 0
    %2110 = vmatpush1.bf16.xpose.msra.mxu0 0
    %2111 = vmatprep.subr.bf16.mxu0 0
    %2112 = vmatpush1.bf16.xpose.msra.mxu0 0
    %2113 = vmatprep.subr.bf16.mxu0 0
    %2114 = vmatpush1.bf16.xpose.msra.mxu0 0
    %2115 = vmatprep.subr.bf16.mxu0 0
    %2116 = vmatpush1.bf16.xpose.msra.mxu0 0
    %2117 = vmatprep.subr.bf16.mxu0 0
    %2118 = vmatpush1.bf16.xpose.msra.mxu0 0
    %2119 = vmatprep.subr.bf16.mxu0 0
    %2120 = vmatpush1.bf16.xpose.msra.mxu0 0
    %2121 = vmatprep.subr.bf16.mxu0 0
    %2122 = vmatpush1.bf16.xpose.msra.mxu0 0
    %2123 = vmatprep.subr.bf16.mxu0 0
    %2124 = vmatpush1.bf16.xpose.msra.mxu0 %v2107
    %2125 = vmatprep.subr.bf16.mxu0 0
    %2126 = vmatpush2.bf16.xpose.msra.mxu0 0
    %2127 = vmatprep.subr.bf16.mxu0 0
    %2128 = vmatpush2.bf16.xpose.msra.mxu0 0
    %2129 = vmatprep.subr.bf16.mxu0 0
    %2130 = vmatpush2.bf16.xpose.msra.mxu0 0
    %2131 = vmatprep.subr.bf16.mxu0 0
    %2132 = vmatpush2.bf16.xpose.msra.mxu0 0
    %2133 = vmatprep.subr.bf16.mxu0 0
    %2134 = vmatpush2.bf16.xpose.msra.mxu0 0
    %2135 = vmatprep.subr.bf16.mxu0 0
    %2136 = vmatpush2.bf16.xpose.msra.mxu0 0
    %2137 = vmatprep.subr.bf16.mxu0 0
    %2138 = vmatpush2.bf16.xpose.msra.mxu0 0
    %2139 = vmatprep.subr.bf16.mxu0 0
    %2140 = vmatpush2.bf16.xpose.msra.mxu0 0
    %2141 = vmatprep.mubr.bf16.mxu0 0
    %2142 = vmatmul.mubr.bf16.gmra.mxu0 %v2104
    %v2143 = vpop.f32.mrf.mxu0
    %v2144 = vadd.f32 %v511, %v2143
    %v2145 = vpop.f32.mrf.mxu0
    %v2146 = vpop.f32.mrf.mxu0
    %v2147 = vpop.f32.mrf.mxu0
    %2148 = vdwg.mxu0
    %v2150 = vsel %vm518, %v2098, 0
    %v2153 = vsel %vm518, %v2100, 0
    %2155 = vmatprep.subr.bf16.mxu0 0
    %2156 = vmatpush1.bf16.xpose.msra.mxu0 0
    %2157 = vmatprep.subr.bf16.mxu0 0
    %2158 = vmatpush1.bf16.xpose.msra.mxu0 0
    %2159 = vmatprep.subr.bf16.mxu0 0
    %2160 = vmatpush1.bf16.xpose.msra.mxu0 0
    %2161 = vmatprep.subr.bf16.mxu0 0
    %2162 = vmatpush1.bf16.xpose.msra.mxu0 0
    %2163 = vmatprep.subr.bf16.mxu0 0
    %2164 = vmatpush1.bf16.xpose.msra.mxu0 0
    %2165 = vmatprep.subr.bf16.mxu0 0
    %2166 = vmatpush1.bf16.xpose.msra.mxu0 0
    %2167 = vmatprep.subr.bf16.mxu0 0
    %2168 = vmatpush1.bf16.xpose.msra.mxu0 0
    %2169 = vmatprep.subr.bf16.mxu0 0
    %2170 = vmatpush1.bf16.xpose.msra.mxu0 %v2153
    %2171 = vmatprep.subr.bf16.mxu0 0
    %2172 = vmatpush2.bf16.xpose.msra.mxu0 0
    %2173 = vmatprep.subr.bf16.mxu0 0
    %2174 = vmatpush2.bf16.xpose.msra.mxu0 0
    %2175 = vmatprep.subr.bf16.mxu0 0
    %2176 = vmatpush2.bf16.xpose.msra.mxu0 0
    %2177 = vmatprep.subr.bf16.mxu0 0
    %2178 = vmatpush2.bf16.xpose.msra.mxu0 0
    %2179 = vmatprep.subr.bf16.mxu0 0
    %2180 = vmatpush2.bf16.xpose.msra.mxu0 0
    %2181 = vmatprep.subr.bf16.mxu0 0
    %2182 = vmatpush2.bf16.xpose.msra.mxu0 0
    %2183 = vmatprep.subr.bf16.mxu0 0
    %2184 = vmatpush2.bf16.xpose.msra.mxu0 0
    %2185 = vmatprep.subr.bf16.mxu0 0
    %2186 = vmatpush2.bf16.xpose.msra.mxu0 0
    %2187 = vmatprep.mubr.bf16.mxu0 0
    %2188 = vmatmul.mubr.bf16.gmra.mxu0 %v2150
    %v2189 = vpop.f32.mrf.mxu0
    %v2190 = vadd.f32 %v515, %v2189
    %v2191 = vpop.f32.mrf.mxu0
    %v2192 = vpop.f32.mrf.mxu0
    %v2193 = vpop.f32.mrf.mxu0
    %2194 = vdwg.mxu0
    %v2195 = vsel %vm611, %v2144, -inf
    %2196 = vmax.xlane.f32.xlu0 %v2195
    %v2197 = vpop.xlane.xlu0 %2196
    %v2198 = vsel %vm611, %v2190, -inf
    %2199 = vmax.xlane.f32.xlu0 %v2198
    %v2200 = vpop.xlane.xlu0 %2199
    %v2201 = vsub.f32 %v2144, %v2197
    %v2202 = vsub.f32 %v2190, %v2200
    %v2203 = vmul.f32 %v2201, 1.442695
    %v2204 = vpow.pop %v2203
    %v2205 = vmul.f32 %v2202, 1.442695
    %v2206 = vpow.pop %v2205
    %v2207 = vsel %vm611, %v2204, 0.0
    %2208 = vadd.xlane.f32.xlu0 %v2207
    %v2209 = vpop.xlane.xlu0 %2208
    %v2210 = vsel %vm611, %v2206, 0.0
    %2211 = vadd.xlane.f32.xlu0 %v2210
    %v2212 = vpop.xlane.xlu0 %2211
    %v2213 = vrcp.pop %v2209
    %v2214 = vrcp.pop %v2212
    %v2215 = vmul.f32 %v2204, %v2213
    %v2216 = vmul.f32 %v2206, %v2214
    %v2217 = vpack.c.bf16 %v2215, %v2215
    %v2218 = vpack.c.bf16 %v2216, %v2216
    %v2220 = vsel %vm611, %v2217, 0
    %v2223 = vsel %vm639, %v2101, 0
    %2225 = vmatprep.subr.bf16.mxu0 0
    %2226 = vmatpush1.bf16.msra.mxu0 0
    %2227 = vmatprep.subr.bf16.mxu0 0
    %2228 = vmatpush1.bf16.msra.mxu0 0
    %2229 = vmatprep.subr.bf16.mxu0 0
    %2230 = vmatpush1.bf16.msra.mxu0 0
    %2231 = vmatprep.subr.bf16.mxu0 0
    %2232 = vmatpush1.bf16.msra.mxu0 0
    %2233 = vmatprep.subr.bf16.mxu0 0
    %2234 = vmatpush1.bf16.msra.mxu0 0
    %2235 = vmatprep.subr.bf16.mxu0 0
    %2236 = vmatpush1.bf16.msra.mxu0 0
    %2237 = vmatprep.subr.bf16.mxu0 0
    %2238 = vmatpush1.bf16.msra.mxu0 0
    %2239 = vmatprep.subr.bf16.mxu0 0
    %2240 = vmatpush1.bf16.msra.mxu0 %v2223
    %2241 = vmatprep.subr.bf16.mxu0 0
    %2242 = vmatpush2.bf16.msra.mxu0 0
    %2243 = vmatprep.subr.bf16.mxu0 0
    %2244 = vmatpush2.bf16.msra.mxu0 0
    %2245 = vmatprep.subr.bf16.mxu0 0
    %2246 = vmatpush2.bf16.msra.mxu0 0
    %2247 = vmatprep.subr.bf16.mxu0 0
    %2248 = vmatpush2.bf16.msra.mxu0 0
    %2249 = vmatprep.subr.bf16.mxu0 0
    %2250 = vmatpush2.bf16.msra.mxu0 0
    %2251 = vmatprep.subr.bf16.mxu0 0
    %2252 = vmatpush2.bf16.msra.mxu0 0
    %2253 = vmatprep.subr.bf16.mxu0 0
    %2254 = vmatpush2.bf16.msra.mxu0 0
    %2255 = vmatprep.subr.bf16.mxu0 0
    %2256 = vmatpush2.bf16.msra.mxu0 0
    %2257 = vmatprep.mubr.bf16.mxu0 0
    %2258 = vmatmul.mubr.bf16.gmra.mxu0 %v2220
    %v2259 = vpop.f32.mrf.mxu0
    %v2260 = vadd.f32 0.0, %v2259
    %v2261 = vpop.f32.mrf.mxu0
    %v2262 = vpop.f32.mrf.mxu0
    %v2263 = vpop.f32.mrf.mxu0
    %2264 = vdwg.mxu0
    %v2266 = vsel %vm611, %v2218, 0
    %v2269 = vsel %vm639, %v2102, 0
    %2271 = vmatprep.subr.bf16.mxu0 0
    %2272 = vmatpush1.bf16.msra.mxu0 0
    %2273 = vmatprep.subr.bf16.mxu0 0
    %2274 = vmatpush1.bf16.msra.mxu0 0
    %2275 = vmatprep.subr.bf16.mxu0 0
    %2276 = vmatpush1.bf16.msra.mxu0 0
    %2277 = vmatprep.subr.bf16.mxu0 0
    %2278 = vmatpush1.bf16.msra.mxu0 0
    %2279 = vmatprep.subr.bf16.mxu0 0
    %2280 = vmatpush1.bf16.msra.mxu0 0
    %2281 = vmatprep.subr.bf16.mxu0 0
    %2282 = vmatpush1.bf16.msra.mxu0 0
    %2283 = vmatprep.subr.bf16.mxu0 0
    %2284 = vmatpush1.bf16.msra.mxu0 0
    %2285 = vmatprep.subr.bf16.mxu0 0
    %2286 = vmatpush1.bf16.msra.mxu0 %v2269
    %2287 = vmatprep.subr.bf16.mxu0 0
    %2288 = vmatpush2.bf16.msra.mxu0 0
    %2289 = vmatprep.subr.bf16.mxu0 0
    %2290 = vmatpush2.bf16.msra.mxu0 0
    %2291 = vmatprep.subr.bf16.mxu0 0
    %2292 = vmatpush2.bf16.msra.mxu0 0
    %2293 = vmatprep.subr.bf16.mxu0 0
    %2294 = vmatpush2.bf16.msra.mxu0 0
    %2295 = vmatprep.subr.bf16.mxu0 0
    %2296 = vmatpush2.bf16.msra.mxu0 0
    %2297 = vmatprep.subr.bf16.mxu0 0
    %2298 = vmatpush2.bf16.msra.mxu0 0
    %2299 = vmatprep.subr.bf16.mxu0 0
    %2300 = vmatpush2.bf16.msra.mxu0 0
    %2301 = vmatprep.subr.bf16.mxu0 0
    %2302 = vmatpush2.bf16.msra.mxu0 0
    %2303 = vmatprep.mubr.bf16.mxu0 0
    %2304 = vmatmul.mubr.bf16.gmra.mxu0 %v2266
    %v2305 = vpop.f32.mrf.mxu0
    %v2306 = vadd.f32 0.0, %v2305
    %v2307 = vpop.f32.mrf.mxu0
    %v2308 = vpop.f32.mrf.mxu0
    %v2309 = vpop.f32.mrf.mxu0
    %2310 = vdwg.mxu0
    %v2311 = vpack.c.bf16 %v2306, %v2260
    %s2312 = scalar_lea.vmem %s6, 24
    %v2313 = vld [vmem:[%s2312] sm:$0xf]
    %v2314 = vld [vmem:[%s2312 + $0x4] sm:$0xf]
    %v2317 = vunpack.c.l.b16 %v2313
    %v2318 = vunpack.c.l.b16 %v2314
    %v2319 = vpack.c.b16 %v2318, %v2317
    %v2322 = vsel %vm518, %v2311, 0
    %2324 = vmatprep.subr.bf16.mxu0 0
    %2325 = vmatpush1.bf16.msra.mxu0 0
    %2326 = vmatprep.subr.bf16.mxu0 0
    %2327 = vmatpush1.bf16.msra.mxu0 0
    %2328 = vmatprep.subr.bf16.mxu0 0
    %2329 = vmatpush1.bf16.msra.mxu0 0
    %2330 = vmatprep.subr.bf16.mxu0 0
    %2331 = vmatpush1.bf16.msra.mxu0 0
    %2332 = vmatprep.subr.bf16.mxu0 0
    %2333 = vmatpush1.bf16.msra.mxu0 0
    %2334 = vmatprep.subr.bf16.mxu0 0
    %2335 = vmatpush1.bf16.msra.mxu0 0
    %2336 = vmatprep.subr.bf16.mxu0 0
    %2337 = vmatpush1.bf16.msra.mxu0 0
    %2338 = vmatprep.subr.bf16.mxu0 0
    %2339 = vmatpush1.bf16.msra.mxu0 %v2319
    %2340 = vmatprep.subr.bf16.mxu0 0
    %2341 = vmatpush2.bf16.msra.mxu0 0
    %2342 = vmatprep.subr.bf16.mxu0 0
    %2343 = vmatpush2.bf16.msra.mxu0 0
    %2344 = vmatprep.subr.bf16.mxu0 0
    %2345 = vmatpush2.bf16.msra.mxu0 0
    %2346 = vmatprep.subr.bf16.mxu0 0
    %2347 = vmatpush2.bf16.msra.mxu0 0
    %2348 = vmatprep.subr.bf16.mxu0 0
    %2349 = vmatpush2.bf16.msra.mxu0 0
    %2350 = vmatprep.subr.bf16.mxu0 0
    %2351 = vmatpush2.bf16.msra.mxu0 0
    %2352 = vmatprep.subr.bf16.mxu0 0
    %2353 = vmatpush2.bf16.msra.mxu0 0
    %2354 = vmatprep.subr.bf16.mxu0 0
    %2355 = vmatpush2.bf16.msra.mxu0 0
    %2356 = vmatprep.mubr.bf16.mxu0 0
    %2357 = vmatmul.mubr.bf16.gmra.mxu0 %v2322
    %v2358 = vpop.f32.mrf.mxu0
    %v2359 = vadd.f32 0.0, %v2358
    %v2360 = vpop.f32.mrf.mxu0
    %v2361 = vpop.f32.mrf.mxu0
    %v2362 = vadd.f32 0.0, %v2361
    %v2363 = vpop.f32.mrf.mxu0
    %2364 = vdwg.mxu0
    %v2367 = vunpack.c.l.b16 %v1906
    %v2368 = vunpack.c.l.b16 %v1907
    %v2369 = vpack.c.b16 %v2368, %v2367
    %v2372 = vsel %vm518, %v1904, 0
    %2374 = vmatprep.subr.bf16.mxu0 0
    %2375 = vmatpush1.bf16.msra.mxu0 0
    %2376 = vmatprep.subr.bf16.mxu0 0
    %2377 = vmatpush1.bf16.msra.mxu0 0
    %2378 = vmatprep.subr.bf16.mxu0 0
    %2379 = vmatpush1.bf16.msra.mxu0 0
    %2380 = vmatprep.subr.bf16.mxu0 0
    %2381 = vmatpush1.bf16.msra.mxu0 0
    %2382 = vmatprep.subr.bf16.mxu0 0
    %2383 = vmatpush1.bf16.msra.mxu0 0
    %2384 = vmatprep.subr.bf16.mxu0 0
    %2385 = vmatpush1.bf16.msra.mxu0 0
    %2386 = vmatprep.subr.bf16.mxu0 0
    %2387 = vmatpush1.bf16.msra.mxu0 0
    %2388 = vmatprep.subr.bf16.mxu0 0
    %2389 = vmatpush1.bf16.msra.mxu0 %v2369
    %2390 = vmatprep.subr.bf16.mxu0 0
    %2391 = vmatpush2.bf16.msra.mxu0 0
    %2392 = vmatprep.subr.bf16.mxu0 0
    %2393 = vmatpush2.bf16.msra.mxu0 0
    %2394 = vmatprep.subr.bf16.mxu0 0
    %2395 = vmatpush2.bf16.msra.mxu0 0
    %2396 = vmatprep.subr.bf16.mxu0 0
    %2397 = vmatpush2.bf16.msra.mxu0 0
    %2398 = vmatprep.subr.bf16.mxu0 0
    %2399 = vmatpush2.bf16.msra.mxu0 0
    %2400 = vmatprep.subr.bf16.mxu0 0
    %2401 = vmatpush2.bf16.msra.mxu0 0
    %2402 = vmatprep.subr.bf16.mxu0 0
    %2403 = vmatpush2.bf16.msra.mxu0 0
    %2404 = vmatprep.subr.bf16.mxu0 0
    %2405 = vmatpush2.bf16.msra.mxu0 0
    %2406 = vmatprep.mubr.bf16.mxu0 0
    %2407 = vmatmul.mubr.bf16.gmra.mxu0 %v2372
    %v2408 = vpop.f32.mrf.mxu0
    %v2409 = vadd.f32 %v2359, %v2408
    %v2410 = vpop.f32.mrf.mxu0
    %v2411 = vpop.f32.mrf.mxu0
    %v2412 = vadd.f32 %v2362, %v2411
    %v2413 = vpop.f32.mrf.mxu0
    %2414 = vdwg.mxu0
    %v2415 = vld [vmem:[%s4 + $0x15] sm:$0x1]
    %v2416 = vlaneseq
    %v2417 = vshrl.u32 %v2416, 7
    %v2418 = vsub.s32 0, %v2417
    %v2419 = vrot.slane %v2415, %v2418
    %v2420 = vadd.f32 %v2409, %v2419
    %v2421 = vadd.f32 %v2412, %v2419
    %v2422 = vadd.f32 %v2420, %v1495
    %v2423 = vadd.f32 %v2421, %v1496
    %v2424 = vld [vmem:[%s4 + $0x16] sm:$0x1]
    %v2425 = vld [vmem:[%s4 + $0x17] sm:$0x1]
    %v2426 = vsel %vm243, %v2422, 0.0
    %2427 = vadd.xlane.f32.xlu0 %v2426
    %v2428 = vpop.xlane.xlu0 %2427
    %v2429 = vsel %vm243, %v2423, 0.0
    %2430 = vadd.xlane.f32.xlu0 %v2429
    %v2431 = vpop.xlane.xlu0 %2430
    %v2432 = vmul.f32 %v2428, %v250
    %v2433 = vmul.f32 %v2431, %v250
    %v2434 = vsub.f32 %v2422, %v2432
    %v2435 = vsub.f32 %v2423, %v2433
    %v2436 = vmul.f32 %v2434, %v2434
    %v2437 = vmul.f32 %v2435, %v2435
    %v2438 = vsel %vm243, %v2436, 0.0
    %2439 = vadd.xlane.f32.xlu0 %v2438
    %v2440 = vpop.xlane.xlu0 %2439
    %v2441 = vsel %vm243, %v2437, 0.0
    %2442 = vadd.xlane.f32.xlu0 %v2441
    %v2443 = vpop.xlane.xlu0 %2442
    %v2444 = vmul.f32 %v2440, %v250
    %v2445 = vmul.f32 %v2443, %v250
    %v2446 = vadd.f32 %v2444, 1e-12
    %v2447 = vadd.f32 %v2445, 1e-12
    %v2448 = vrsqrt.pop %v2446
    %v2449 = vrsqrt.pop %v2447
    %v2450 = vmul.f32 %v2434, %v2448
    %v2451 = vmul.f32 %v2435, %v2449
    %v2452 = vlaneseq
    %v2453 = vshrl.u32 %v2452, 7
    %v2454 = vsub.s32 0, %v2453
    %v2455 = vrot.slane %v2424, %v2454
    %v2456 = vmul.f32 %v2450, %v2455
    %v2457 = vmul.f32 %v2451, %v2455
    %v2458 = vlaneseq
    %v2459 = vshrl.u32 %v2458, 7
    %v2460 = vsub.s32 0, %v2459
    %v2461 = vrot.slane %v2425, %v2460
    %v2462 = vadd.f32 %v2456, %v2461
    %v2463 = vadd.f32 %v2457, %v2461
    %v2464 = vpack.c.bf16 %v2463, %v2462
    %s2465 = scalar_lea.vmem %s7, 16
    %v2466 = vld [vmem:[%s2465] sm:$0xf]
    %v2467 = vld [vmem:[%s2465 + $0x4] sm:$0xf]
    %v2468 = vld [vmem:[%s2465 + $0x8] sm:$0xf]
    %v2469 = vld [vmem:[%s2465 + $0xc] sm:$0xf]
    %v2470 = vld [vmem:[%s4 + $0x18] sm:$0x1]
    %v2471 = vlaneseq
    %v2472 = vshrl.u32 %v2471, 7
    %v2473 = vsub.s32 0, %v2472
    %v2474 = vrot.slane %v2470, %v2473
    %v2479 = vunpack.c.l.b16 %v2466
    %v2480 = vunpack.c.l.b16 %v2467
    %v2481 = vunpack.c.l.b16 %v2468
    %v2482 = vunpack.c.l.b16 %v2469
    %v2483 = vpack.c.b16 %v2480, %v2479
    %v2484 = vpack.c.b16 %v2482, %v2481
    %v2488 = vsel %vm243, %v2464, 0
    %2490 = vmatprep.subr.bf16.mxu0 0
    %2491 = vmatpush1.bf16.msra.mxu0 0
    %2492 = vmatprep.subr.bf16.mxu0 0
    %2493 = vmatpush1.bf16.msra.mxu0 0
    %2494 = vmatprep.subr.bf16.mxu0 0
    %2495 = vmatpush1.bf16.msra.mxu0 0
    %2496 = vmatprep.subr.bf16.mxu0 0
    %2497 = vmatpush1.bf16.msra.mxu0 0
    %2498 = vmatprep.subr.bf16.mxu0 0
    %2499 = vmatpush1.bf16.msra.mxu0 0
    %2500 = vmatprep.subr.bf16.mxu0 0
    %2501 = vmatpush1.bf16.msra.mxu0 0
    %2502 = vmatprep.subr.bf16.mxu0 0
    %2503 = vmatpush1.bf16.msra.mxu0 %v2484
    %2504 = vmatprep.subr.bf16.mxu0 0
    %2505 = vmatpush1.bf16.msra.mxu0 %v2483
    %2506 = vmatprep.subr.bf16.mxu0 0
    %2507 = vmatpush2.bf16.msra.mxu0 0
    %2508 = vmatprep.subr.bf16.mxu0 0
    %2509 = vmatpush2.bf16.msra.mxu0 0
    %2510 = vmatprep.subr.bf16.mxu0 0
    %2511 = vmatpush2.bf16.msra.mxu0 0
    %2512 = vmatprep.subr.bf16.mxu0 0
    %2513 = vmatpush2.bf16.msra.mxu0 0
    %2514 = vmatprep.subr.bf16.mxu0 0
    %2515 = vmatpush2.bf16.msra.mxu0 0
    %2516 = vmatprep.subr.bf16.mxu0 0
    %2517 = vmatpush2.bf16.msra.mxu0 0
    %2518 = vmatprep.subr.bf16.mxu0 0
    %2519 = vmatpush2.bf16.msra.mxu0 0
    %2520 = vmatprep.subr.bf16.mxu0 0
    %2521 = vmatpush2.bf16.msra.mxu0 0
    %2522 = vmatprep.mubr.bf16.mxu0 0
    %2523 = vmatmul.mubr.bf16.gmra.mxu0 %v2488
    %v2524 = vpop.f32.mrf.mxu0
    %v2525 = vadd.f32 %v2474, %v2524
    %v2526 = vpop.f32.mrf.mxu0
    %v2527 = vpop.f32.mrf.mxu0
    %v2528 = vadd.f32 %v2474, %v2527
    %v2529 = vpop.f32.mrf.mxu0
    %2530 = vdwg.mxu0
    %v2531 = vmul.f32 %v2525, 0.5
    %v2532 = vmul.f32 %v2528, 0.5
    %v2533 = vmul.f32 %v2525, 0.044715
    %v2534 = vmul.f32 %v2528, 0.044715
    %v2535 = vmul.f32 %v2533, %v2525
    %v2536 = vmul.f32 %v2534, %v2528
    %v2537 = vmul.f32 %v2535, %v2525
    %v2538 = vmul.f32 %v2536, %v2528
    %v2539 = vadd.f32 %v2525, %v2537
    %v2540 = vadd.f32 %v2528, %v2538
    %v2541 = vmul.f32 %v2539, 0.7978846
    %v2542 = vmul.f32 %v2540, 0.7978846
    %v2543 = vtanh.pop %v2541
    %v2544 = vtanh.pop %v2542
    %v2545 = vadd.f32 %v2543, 1.0
    %v2546 = vadd.f32 %v2544, 1.0
    %v2547 = vmul.f32 %v2531, %v2545
    %v2548 = vmul.f32 %v2532, %v2546
    %v2549 = vpack.c.bf16 %v2548, %v2547
    %s2550 = scalar_lea.vmem %s8, 32
    %v2551 = vld [vmem:[%s2550] sm:$0xf]
    %v2552 = vld [vmem:[%s2550 + $0x4] sm:$0xf]
    %v2553 = vld [vmem:[%s2550 + $0x8] sm:$0xf]
    %v2554 = vld [vmem:[%s2550 + $0xc] sm:$0xf]
    %v2555 = vld [vmem:[%s2550 + $0x10] sm:$0xf]
    %v2556 = vld [vmem:[%s2550 + $0x14] sm:$0xf]
    %v2557 = vld [vmem:[%s2550 + $0x18] sm:$0xf]
    %v2558 = vld [vmem:[%s2550 + $0x1c] sm:$0xf]
    %v2559 = vld [vmem:[%s4 + $0x19] sm:$0x1]
    %v2560 = vlaneseq
    %v2561 = vshrl.u32 %v2560, 7
    %v2562 = vsub.s32 0, %v2561
    %v2563 = vrot.slane %v2559, %v2562
    %v2572 = vunpack.c.l.b16 %v2551
    %v2573 = vunpack.c.l.b16 %v2552
    %v2574 = vunpack.c.l.b16 %v2553
    %v2575 = vunpack.c.l.b16 %v2554
    %v2576 = vunpack.c.l.b16 %v2555
    %v2577 = vunpack.c.l.b16 %v2556
    %v2578 = vunpack.c.l.b16 %v2557
    %v2579 = vunpack.c.l.b16 %v2558
    %v2580 = vpack.c.b16 %v2573, %v2572
    %v2581 = vpack.c.b16 %v2575, %v2574
    %v2582 = vpack.c.b16 %v2577, %v2576
    %v2583 = vpack.c.b16 %v2579, %v2578
    %v2589 = vsel %vm1410, %v2549, 0
    %2591 = vmatprep.subr.bf16.mxu0 0
    %2592 = vmatpush1.bf16.msra.mxu0 0
    %2593 = vmatprep.subr.bf16.mxu0 0
    %2594 = vmatpush1.bf16.msra.mxu0 0
    %2595 = vmatprep.subr.bf16.mxu0 0
    %2596 = vmatpush1.bf16.msra.mxu0 0
    %2597 = vmatprep.subr.bf16.mxu0 0
    %2598 = vmatpush1.bf16.msra.mxu0 0
    %2599 = vmatprep.subr.bf16.mxu0 0
    %2600 = vmatpush1.bf16.msra.mxu0 %v2583
    %2601 = vmatprep.subr.bf16.mxu0 0
    %2602 = vmatpush1.bf16.msra.mxu0 %v2582
    %2603 = vmatprep.subr.bf16.mxu0 0
    %2604 = vmatpush1.bf16.msra.mxu0 %v2581
    %2605 = vmatprep.subr.bf16.mxu0 0
    %2606 = vmatpush1.bf16.msra.mxu0 %v2580
    %2607 = vmatprep.subr.bf16.mxu0 0
    %2608 = vmatpush2.bf16.msra.mxu0 0
    %2609 = vmatprep.subr.bf16.mxu0 0
    %2610 = vmatpush2.bf16.msra.mxu0 0
    %2611 = vmatprep.subr.bf16.mxu0 0
    %2612 = vmatpush2.bf16.msra.mxu0 0
    %2613 = vmatprep.subr.bf16.mxu0 0
    %2614 = vmatpush2.bf16.msra.mxu0 0
    %2615 = vmatprep.subr.bf16.mxu0 0
    %2616 = vmatpush2.bf16.msra.mxu0 0
    %2617 = vmatprep.subr.bf16.mxu0 0
    %2618 = vmatpush2.bf16.msra.mxu0 0
    %2619 = vmatprep.subr.bf16.mxu0 0
    %2620 = vmatpush2.bf16.msra.mxu0 0
    %2621 = vmatprep.subr.bf16.mxu0 0
    %2622 = vmatpush2.bf16.msra.mxu0 0
    %2623 = vmatprep.mubr.bf16.mxu0 0
    %2624 = vmatmul.mubr.bf16.gmra.mxu0 %v2589
    %v2625 = vpop.f32.mrf.mxu0
    %v2626 = vadd.f32 %v2563, %v2625
    %v2627 = vpop.f32.mrf.mxu0
    %v2628 = vpop.f32.mrf.mxu0
    %v2629 = vadd.f32 %v2563, %v2628
    %v2630 = vpop.f32.mrf.mxu0
    %2631 = vdwg.mxu0
    %v2632 = vadd.f32 %v2626, %v2462
    %v2633 = vadd.f32 %v2629, %v2463
    %v2634 = vld [vmem:[%s4 + $0x1a] sm:$0x1]
    %v2635 = vld [vmem:[%s4 + $0x1b] sm:$0x1]
    %v2636 = vsel %vm243, %v2632, 0.0
    %2637 = vadd.xlane.f32.xlu0 %v2636
    %v2638 = vpop.xlane.xlu0 %2637
    %v2639 = vsel %vm243, %v2633, 0.0
    %2640 = vadd.xlane.f32.xlu0 %v2639
    %v2641 = vpop.xlane.xlu0 %2640
    %v2642 = vmul.f32 %v2638, %v250
    %v2643 = vmul.f32 %v2641, %v250
    %v2644 = vsub.f32 %v2632, %v2642
    %v2645 = vsub.f32 %v2633, %v2643
    %v2646 = vmul.f32 %v2644, %v2644
    %v2647 = vmul.f32 %v2645, %v2645
    %v2648 = vsel %vm243, %v2646, 0.0
    %2649 = vadd.xlane.f32.xlu0 %v2648
    %v2650 = vpop.xlane.xlu0 %2649
    %v2651 = vsel %vm243, %v2647, 0.0
    %2652 = vadd.xlane.f32.xlu0 %v2651
    %v2653 = vpop.xlane.xlu0 %2652
    %v2654 = vmul.f32 %v2650, %v250
    %v2655 = vmul.f32 %v2653, %v250
    %v2656 = vadd.f32 %v2654, 1e-12
    %v2657 = vadd.f32 %v2655, 1e-12
    %v2658 = vrsqrt.pop %v2656
    %v2659 = vrsqrt.pop %v2657
    %v2660 = vmul.f32 %v2644, %v2658
    %v2661 = vmul.f32 %v2645, %v2659
    %v2662 = vlaneseq
    %v2663 = vshrl.u32 %v2662, 7
    %v2664 = vsub.s32 0, %v2663
    %v2665 = vrot.slane %v2634, %v2664
    %v2666 = vmul.f32 %v2660, %v2665
    %v2667 = vmul.f32 %v2661, %v2665
    %v2668 = vlaneseq
    %v2669 = vshrl.u32 %v2668, 7
    %v2670 = vsub.s32 0, %v2669
    %v2671 = vrot.slane %v2635, %v2670
    %v2672 = vadd.f32 %v2666, %v2671
    %v2673 = vadd.f32 %v2667, %v2671
    %v2674 = vpack.c.bf16 %v2672, %v2672
    %v2675 = vpack.c.bf16 %v2673, %v2673
    %v2676 = vld [vmem:[%s9] sm:$0xf]
    %v2677 = vld [vmem:[%s9 + $0x4] sm:$0xf]
    %v2678 = vld [vmem:[%s9 + $0x8] sm:$0xf]
    %v2679 = vld [vmem:[%s9 + $0xc] sm:$0xf]
    %v2682 = vunpack.c.l.b16 %v2674
    %v2683 = vunpack.c.l.b16 %v2675
    %v2684 = vrot.slane %v2683, 7
    %vm2685 = vcmask 1041409
    %v2686 = vsel %vm2685, %v2684, %v2682
    %v2687 = vpack.c.b16 %v2686, %v2686
    %v2692 = vunpack.c.l.b16 %v2676
    %v2693 = vunpack.c.l.b16 %v2677
    %v2694 = vunpack.c.l.b16 %v2678
    %v2695 = vunpack.c.l.b16 %v2679
    %v2696 = vpack.c.b16 %v2693, %v2692
    %v2697 = vpack.c.b16 %v2695, %v2694
    %v2701 = vsel %vm243, %v2687, 0
    %2703 = vmatprep.subr.bf16.mxu0 0
    %2704 = vmatpush1.bf16.msra.mxu0 0
    %2705 = vmatprep.subr.bf16.mxu0 0
    %2706 = vmatpush1.bf16.msra.mxu0 0
    %2707 = vmatprep.subr.bf16.mxu0 0
    %2708 = vmatpush1.bf16.msra.mxu0 0
    %2709 = vmatprep.subr.bf16.mxu0 0
    %2710 = vmatpush1.bf16.msra.mxu0 0
    %2711 = vmatprep.subr.bf16.mxu0 0
    %2712 = vmatpush1.bf16.msra.mxu0 0
    %2713 = vmatprep.subr.bf16.mxu0 0
    %2714 = vmatpush1.bf16.msra.mxu0 0
    %2715 = vmatprep.subr.bf16.mxu0 0
    %2716 = vmatpush1.bf16.msra.mxu0 %v2697
    %2717 = vmatprep.subr.bf16.mxu0 0
    %2718 = vmatpush1.bf16.msra.mxu0 %v2696
    %2719 = vmatprep.subr.bf16.mxu0 0
    %2720 = vmatpush2.bf16.msra.mxu0 0
    %2721 = vmatprep.subr.bf16.mxu0 0
    %2722 = vmatpush2.bf16.msra.mxu0 0
    %2723 = vmatprep.subr.bf16.mxu0 0
    %2724 = vmatpush2.bf16.msra.mxu0 0
    %2725 = vmatprep.subr.bf16.mxu0 0
    %2726 = vmatpush2.bf16.msra.mxu0 0
    %2727 = vmatprep.subr.bf16.mxu0 0
    %2728 = vmatpush2.bf16.msra.mxu0 0
    %2729 = vmatprep.subr.bf16.mxu0 0
    %2730 = vmatpush2.bf16.msra.mxu0 0
    %2731 = vmatprep.subr.bf16.mxu0 0
    %2732 = vmatpush2.bf16.msra.mxu0 0
    %2733 = vmatprep.subr.bf16.mxu0 0
    %2734 = vmatpush2.bf16.msra.mxu0 0
    %2735 = vmatprep.mubr.bf16.mxu0 0
    %2736 = vmatmul.mubr.bf16.gmra.mxu0 %v2701
    %v2737 = vpop.f32.mrf.mxu0
    %v2738 = vadd.f32 0.0, %v2737
    %v2739 = vpop.f32.mrf.mxu0
    %v2740 = vpop.f32.mrf.mxu0
    %v2741 = vpop.f32.mrf.mxu0
    %2742 = vdwg.mxu0
    %v2743 = vld [vmem:[%s4 + $0x1c] sm:$0x1]
    %v2744 = vlaneseq
    %v2745 = vshrl.u32 %v2744, 7
    %v2746 = vsub.s32 0, %v2745
    %v2747 = vrot.slane %v2743, %v2746
    %v2748 = vadd.f32 %v2738, %v2747
    %v2749 = vtanh.pop %v2748
    %v2750 = vpack.c.bf16 %v2749, %v2749
    %s2751 = scalar_lea.vmem %s9, 16
    %v2752 = vld [vmem:[%s2751] sm:$0xf]
    %v2753 = vld [vmem:[%s2751 + $0x4] sm:$0xf]
    %v2754 = vld [vmem:[%s2751 + $0x8] sm:$0xf]
    %v2755 = vld [vmem:[%s2751 + $0xc] sm:$0xf]
    %v2756 = vld [vmem:[%s4 + $0x1d] sm:$0x1]
    %v2757 = vlaneseq
    %v2758 = vshrl.u32 %v2757, 7
    %v2759 = vsub.s32 0, %v2758
    %v2760 = vrot.slane %v2756, %v2759
    %v2765 = vunpack.c.l.b16 %v2752
    %v2766 = vunpack.c.l.b16 %v2753
    %v2767 = vunpack.c.l.b16 %v2754
    %v2768 = vunpack.c.l.b16 %v2755
    %v2769 = vpack.c.b16 %v2766, %v2765
    %v2770 = vpack.c.b16 %v2768, %v2767
    %v2774 = vsel %vm243, %v2750, 0
    %2776 = vmatprep.subr.bf16.mxu0 0
    %2777 = vmatpush1.bf16.msra.mxu0 0
    %2778 = vmatprep.subr.bf16.mxu0 0
    %2779 = vmatpush1.bf16.msra.mxu0 0
    %2780 = vmatprep.subr.bf16.mxu0 0
    %2781 = vmatpush1.bf16.msra.mxu0 0
    %2782 = vmatprep.subr.bf16.mxu0 0
    %2783 = vmatpush1.bf16.msra.mxu0 0
    %2784 = vmatprep.subr.bf16.mxu0 0
    %2785 = vmatpush1.bf16.msra.mxu0 0
    %2786 = vmatprep.subr.bf16.mxu0 0
    %2787 = vmatpush1.bf16.msra.mxu0 0
    %2788 = vmatprep.subr.bf16.mxu0 0
    %2789 = vmatpush1.bf16.msra.mxu0 %v2770
    %2790 = vmatprep.subr.bf16.mxu0 0
    %2791 = vmatpush1.bf16.msra.mxu0 %v2769
    %2792 = vmatprep.subr.bf16.mxu0 0
    %2793 = vmatpush2.bf16.msra.mxu0 0
    %2794 = vmatprep.subr.bf16.mxu0 0
    %2795 = vmatpush2.bf16.msra.mxu0 0
    %2796 = vmatprep.subr.bf16.mxu0 0
    %2797 = vmatpush2.bf16.msra.mxu0 0
    %2798 = vmatprep.subr.bf16.mxu0 0
    %2799 = vmatpush2.bf16.msra.mxu0 0
    %2800 = vmatprep.subr.bf16.mxu0 0
    %2801 = vmatpush2.bf16.msra.mxu0 0
    %2802 = vmatprep.subr.bf16.mxu0 0
    %2803 = vmatpush2.bf16.msra.mxu0 0
    %2804 = vmatprep.subr.bf16.mxu0 0
    %2805 = vmatpush2.bf16.msra.mxu0 0
    %2806 = vmatprep.subr.bf16.mxu0 0
    %2807 = vmatpush2.bf16.msra.mxu0 0
    %2808 = vmatprep.mubr.bf16.mxu0 0
    %2809 = vmatmul.mubr.bf16.gmra.mxu0 %v2774
    %v2810 = vpop.f32.mrf.mxu0
    %v2811 = vadd.f32 %v2760, %v2810
    %v2812 = vpop.f32.mrf.mxu0
    %v2813 = vpop.f32.mrf.mxu0
    %v2814 = vpop.f32.mrf.mxu0
    %2815 = vdwg.mxu0
    %2816 = vst [vmem:[#allocation8] sm:$0x3] %v2811
    // Predicated region
    $region50: #{emotion_model_forward.1} parent=1 // pred_check
      _
    $region51: #{emotion_model_forward.1} parent=1 // pred_check_branch
      %2818 = sbr.rel (0) target = $region53
    $region52: #{emotion_model_forward.1} parent=1 // pred_region
      %s2820 = ssub.s32 32, 32
      %2821 = vsyncadd [#allocation4], %s2820
      %s2823 = sshll.u32 [#allocation8], 4
      %s2824 = int_to_ptr.vmem [resolvable:$true] %s2823
      %2826 = dma.vmem_to_hbm [thread:$0]  %s2824, 32, %s10, [#allocation4]
    $region53: #{emotion_model_forward.1} parent=1 // pred_fallthru
      _
    // Predicated region
    $region54: #{emotion_model_forward.1} parent=1 // pred_check
      _
    $region55: #{emotion_model_forward.1} parent=1 // pred_check_branch
      %2828 = sbr.rel (0) target = $region57
    $region56: #{emotion_model_forward.1} parent=1 // pred_region
      %2829 = dma.done [#allocation4], 32
    $region57: #{emotion_model_forward.1} parent=1 // pred_fallthru
      _
    %2830 = vsyncpa [#allocation4], 1
    %2831 = vsyncpa [#allocation5], 1
    %2832 = vsyncpa [#allocation7], 1

</llo_original>
